<compile_context>
chip_gen: v6e
topology: v6e:2x2x1
jax: 0.10.0
libtpu: 0.0.40
codegen_flags: <defaults>
</compile_context>

<pallas_src>
import jax
import jax.numpy as jnp
from jax.experimental import pallas as pl
from jax.experimental.pallas import tpu as pltpu

C_IN = 256
C_OUT = 256
KSIZE = 3


def conv3x3_kernel(x_ref, w_ref, b_ref, o_ref):
    """One block of `gb` H-row-bands per grid step.

    x_ref : (gb, th+2, W+2, C_IN) bf16  zero-padded NHWC band block (1-row halo)
    w_ref : (9*C_IN, C_OUT)       bf16  weights, rows ordered (kh, kw, cin)
    b_ref : (1, C_OUT)            f32   bias
    o_ref : (gb*th*W, C_OUT)      bf16  flat, lane-dense output slab
    """
    GB, THP, WP, _ = x_ref.shape
    TH, W = THP - 2, WP - 2
    M = GB * TH * W

    # 9 accumulated K=256 dots, each tap sliced directly from the ref
    # (only one tap live at a time -> no spill pressure), f32 accumulation.
    acc = None
    for kh in range(KSIZE):
        for kw in range(KSIZE):
            t = kh * KSIZE + kw
            tap = x_ref[:, kh:kh + TH, kw:kw + W, :].reshape(M, C_IN)
            part = jnp.dot(tap, w_ref[t * C_IN:(t + 1) * C_IN, :],
                           preferred_element_type=jnp.float32)
            acc = part if acc is None else acc + part

    # Bias in f32, single lane-dense bf16 store.
    o_ref[...] = (acc + b_ref[...]).astype(o_ref.dtype)


def _pick_tiles(N, H, W, m_cap=1024):
    """Pick (th, gb): H row-band size and bands-per-step.

    Keeps M = gb*th*W <= m_cap (VMEM-bounded on v5e/v7x), prefers M a
    multiple of 256 (v6e/v7x MXU) and of 8 (layout rule), and >=2 grid
    steps when that does not starve the MXU.
    """
    # Largest divisor of H whose band already respects the M cap.
    th = 1
    for cand in range(H, 0, -1):
        if H % cand == 0 and cand * W <= m_cap:
            th = cand
            break
    nbands = H // th
    NB = N * nbands

    gb = None
    pref = None
    for cand in range(1, NB + 1):
        if NB % cand:
            continue
        m = cand * th * W
        if m > m_cap:
            break
        if m % 8 == 0:
            gb = cand
            if m % 256 == 0:
                pref = cand
    if pref is not None:
        gb = pref
    if gb is None:
        gb = NB  # full-extent block satisfies Pallas' (8,128) layout rule

    # Prefer >=2 grid steps (v7x megacore + DMA pipelining) if M stays >= 256.
    if NB // gb < 2:
        for cand in range(gb - 1, 0, -1):
            m = cand * th * W
            if NB % cand == 0 and m % 8 == 0 and m >= 256:
                gb = cand
                break
    return th, gb


@jax.jit
def upsample2d_forward(x_nchw, w_oihw, bias):
    """Equivalent of Upsample2D.forward: conv3x3, stride 1, padding='same'."""
    N, C, H, W = x_nchw.shape
    assert C == C_IN

    th, gb = _pick_tiles(N, H, W)
    nbands = H // th
    NB = N * nbands
    m_blk = gb * th * W

    # Layout plumbing (fused by XLA under jit): NCHW -> NHWC, 'same' pad,
    # bf16 cast, H row-banding with a 1-row halo per band.
    x_nhwc = jnp.transpose(x_nchw, (0, 2, 3, 1)).astype(jnp.bfloat16)
    x_pad = jnp.pad(x_nhwc, ((0, 0), (1, 1), (1, 1), (0, 0)))
    if nbands == 1:
        x_bands = x_pad                                   # (N, H+2, W+2, C)
    else:
        row_idx = (jnp.arange(nbands)[:, None] * th
                   + jnp.arange(th + 2)[None, :])         # (nbands, th+2)
        x_bands = jnp.take(x_pad, row_idx, axis=1).reshape(
            NB, th + 2, W + 2, C_IN)

    # OIHW -> HWIO -> (9*C_IN, C_OUT), matching the (kh, kw, cin) tap order.
    w_mat = jnp.transpose(w_oihw, (2, 3, 1, 0)).reshape(
        KSIZE * KSIZE * C_IN, C_OUT).astype(jnp.bfloat16)
    b2 = bias.reshape(1, C_OUT).astype(jnp.float32)

    out_flat = pl.pallas_call(
        conv3x3_kernel,
        out_shape=jax.ShapeDtypeStruct((NB * th * W, C_OUT), jnp.bfloat16),
        grid_spec=pltpu.PrefetchScalarGridSpec(
            num_scalar_prefetch=0,
            grid=(NB // gb,),
            in_specs=[
                pl.BlockSpec((gb, th + 2, W + 2, C_IN),
                             lambda n: (n, 0, 0, 0)),
                pl.BlockSpec((KSIZE * KSIZE * C_IN, C_OUT),
                             lambda n: (0, 0)),
                pl.BlockSpec((1, C_OUT), lambda n: (0, 0)),
            ],
            out_specs=pl.BlockSpec((m_blk, C_OUT), lambda n: (n, 0)),
        ),
        compiler_params=pltpu.CompilerParams(
            dimension_semantics=("parallel",)),
    )(x_bands, w_mat, b2)

    # Band ordering preserves row order, so a plain reshape recovers NHWC.
    out_nhwc = out_flat.reshape(N, H, W, C_OUT)
    return jnp.transpose(out_nhwc, (0, 3, 1, 2)).astype(x_nchw.dtype)


if __name__ == "__main__":
    key = jax.random.PRNGKey(0)
    k_x, k_w, k_b = jax.random.split(key, 3)

    # Small spatial / batch; channels fixed by the module (256 -> 256).
    N, H, W = 2, 8, 8
    x = jax.random.normal(k_x, (N, C_IN, H, W), dtype=jnp.float32)

    # Deterministic init mimicking PyTorch Conv2d defaults (uniform, fan_in).
    fan_in = C_IN * KSIZE * KSIZE
    bound = 1.0 / (fan_in ** 0.5)
    w = jax.random.uniform(k_w, (C_OUT, C_IN, KSIZE, KSIZE),
                           dtype=jnp.float32, minval=-bound, maxval=bound)
    b = jax.random.uniform(k_b, (C_OUT,), dtype=jnp.float32,
                           minval=-bound, maxval=bound)

    out = upsample2d_forward(x, w, b)
    out = jax.block_until_ready(out)

    # Sanity check against XLA's conv (f32 HIGHEST reference). Kernel uses
    # bf16 inputs/weights/output store with f32 accumulation -> relaxed tol.
    ref = jax.lax.conv_general_dilated(
        x, w, window_strides=(1, 1), padding="SAME",
        dimension_numbers=("NCHW", "OIHW", "NCHW"),
        precision=jax.lax.Precision.HIGHEST,
    ) + b.reshape(1, -1, 1, 1)
    assert out.shape == (N, C_OUT, H, W)
    assert jnp.allclose(out, ref, atol=3e-2, rtol=3e-2)

    print("KERNEL_OK")
</pallas_src>

<mosaic_0001>
module attributes {stable_mosaic.version = 11 : i64} {
  func.func @conv3x3_kernel(%arg0: i32, %arg1: memref<2x10x10x256xbf16, #tpu.memory_space<vmem>>, %arg2: memref<2304x256xbf16, #tpu.memory_space<vmem>>, %arg3: memref<1x256xf32, #tpu.memory_space<vmem>>, %arg4: memref<128x256xbf16, #tpu.memory_space<vmem>>) attributes {dimension_semantics = [#tpu.dimension_semantics<parallel>], iteration_bounds = array<i64: 1>, scalar_prefetch = 0 : i64, scratch_operands = 0 : i64, tpu.core_type = #tpu.core_type<tc>, window_params = [{transform_indices = @transform_0, window_bounds = array<i64: 2, 10, 10, 256>}, {pipeline_mode = #tpu.pipeline_mode<synchronous>, transform_indices = @transform_1, window_bounds = array<i64: 2304, 256>}, {pipeline_mode = #tpu.pipeline_mode<synchronous>, transform_indices = @transform_2, window_bounds = array<i64: 1, 256>}, {transform_indices = @transform_3, window_bounds = array<i64: 128, 256>}]} {
    %c0 = arith.constant 0 : index
    %c0_0 = arith.constant 0 : index
    %c0_1 = arith.constant 0 : index
    %c0_2 = arith.constant 0 : index
    %0 = vector.load %arg1[%c0, %c0_0, %c0_1, %c0_2] : memref<2x10x10x256xbf16, #tpu.memory_space<vmem>>, vector<2x8x8x256xbf16>
    %1 = vector.shape_cast %0 : vector<2x8x8x256xbf16> to vector<128x256xbf16>
    %c0_3 = arith.constant 0 : index
    %c0_4 = arith.constant 0 : index
    %2 = vector.load %arg2[%c0_3, %c0_4] : memref<2304x256xbf16, #tpu.memory_space<vmem>>, vector<256x256xbf16>
    %cst = arith.constant dense<0.000000e+00> : vector<128x256xf32>
    %3 = tpu.matmul %1, %2, %cst {dimension_numbers = #tpu.dot_dimension_numbers<[1], [0], [0], [1], [0, 0, 1, 1], [], []>} : vector<128x256xbf16>, vector<256x256xbf16>, vector<128x256xf32> -> vector<128x256xf32>
    %c0_5 = arith.constant 0 : index
    %c0_6 = arith.constant 0 : index
    %c1 = arith.constant 1 : index
    %c0_7 = arith.constant 0 : index
    %4 = vector.load %arg1[%c0_5, %c0_6, %c1, %c0_7] : memref<2x10x10x256xbf16, #tpu.memory_space<vmem>>, vector<2x8x8x256xbf16>
    %5 = vector.shape_cast %4 : vector<2x8x8x256xbf16> to vector<128x256xbf16>
    %c256 = arith.constant 256 : index
    %c0_8 = arith.constant 0 : index
    %6 = vector.load %arg2[%c256, %c0_8] : memref<2304x256xbf16, #tpu.memory_space<vmem>>, vector<256x256xbf16>
    %cst_9 = arith.constant dense<0.000000e+00> : vector<128x256xf32>
    %7 = tpu.matmul %5, %6, %cst_9 {dimension_numbers = #tpu.dot_dimension_numbers<[1], [0], [0], [1], [0, 0, 1, 1], [], []>} : vector<128x256xbf16>, vector<256x256xbf16>, vector<128x256xf32> -> vector<128x256xf32>
    %8 = arith.addf %3, %7 : vector<128x256xf32>
    %c0_10 = arith.constant 0 : index
    %c0_11 = arith.constant 0 : index
    %c2 = arith.constant 2 : index
    %c0_12 = arith.constant 0 : index
    %9 = vector.load %arg1[%c0_10, %c0_11, %c2, %c0_12] : memref<2x10x10x256xbf16, #tpu.memory_space<vmem>>, vector<2x8x8x256xbf16>
    %10 = vector.shape_cast %9 : vector<2x8x8x256xbf16> to vector<128x256xbf16>
    %c512 = arith.constant 512 : index
    %c0_13 = arith.constant 0 : index
    %11 = vector.load %arg2[%c512, %c0_13] : memref<2304x256xbf16, #tpu.memory_space<vmem>>, vector<256x256xbf16>
    %cst_14 = arith.constant dense<0.000000e+00> : vector<128x256xf32>
    %12 = tpu.matmul %10, %11, %cst_14 {dimension_numbers = #tpu.dot_dimension_numbers<[1], [0], [0], [1], [0, 0, 1, 1], [], []>} : vector<128x256xbf16>, vector<256x256xbf16>, vector<128x256xf32> -> vector<128x256xf32>
    %13 = arith.addf %8, %12 : vector<128x256xf32>
    %c0_15 = arith.constant 0 : index
    %c1_16 = arith.constant 1 : index
    %c0_17 = arith.constant 0 : index
    %c0_18 = arith.constant 0 : index
    %14 = vector.load %arg1[%c0_15, %c1_16, %c0_17, %c0_18] : memref<2x10x10x256xbf16, #tpu.memory_space<vmem>>, vector<2x8x8x256xbf16>
    %15 = vector.shape_cast %14 : vector<2x8x8x256xbf16> to vector<128x256xbf16>
    %c768 = arith.constant 768 : index
    %c0_19 = arith.constant 0 : index
    %16 = vector.load %arg2[%c768, %c0_19] : memref<2304x256xbf16, #tpu.memory_space<vmem>>, vector<256x256xbf16>
    %cst_20 = arith.constant dense<0.000000e+00> : vector<128x256xf32>
    %17 = tpu.matmul %15, %16, %cst_20 {dimension_numbers = #tpu.dot_dimension_numbers<[1], [0], [0], [1], [0, 0, 1, 1], [], []>} : vector<128x256xbf16>, vector<256x256xbf16>, vector<128x256xf32> -> vector<128x256xf32>
    %18 = arith.addf %13, %17 : vector<128x256xf32>
    %c0_21 = arith.constant 0 : index
    %c1_22 = arith.constant 1 : index
    %c1_23 = arith.constant 1 : index
    %c0_24 = arith.constant 0 : index
    %19 = vector.load %arg1[%c0_21, %c1_22, %c1_23, %c0_24] : memref<2x10x10x256xbf16, #tpu.memory_space<vmem>>, vector<2x8x8x256xbf16>
    %20 = vector.shape_cast %19 : vector<2x8x8x256xbf16> to vector<128x256xbf16>
    %c1024 = arith.constant 1024 : index
    %c0_25 = arith.constant 0 : index
    %21 = vector.load %arg2[%c1024, %c0_25] : memref<2304x256xbf16, #tpu.memory_space<vmem>>, vector<256x256xbf16>
    %cst_26 = arith.constant dense<0.000000e+00> : vector<128x256xf32>
    %22 = tpu.matmul %20, %21, %cst_26 {dimension_numbers = #tpu.dot_dimension_numbers<[1], [0], [0], [1], [0, 0, 1, 1], [], []>} : vector<128x256xbf16>, vector<256x256xbf16>, vector<128x256xf32> -> vector<128x256xf32>
    %23 = arith.addf %18, %22 : vector<128x256xf32>
    %c0_27 = arith.constant 0 : index
    %c1_28 = arith.constant 1 : index
    %c2_29 = arith.constant 2 : index
    %c0_30 = arith.constant 0 : index
    %24 = vector.load %arg1[%c0_27, %c1_28, %c2_29, %c0_30] : memref<2x10x10x256xbf16, #tpu.memory_space<vmem>>, vector<2x8x8x256xbf16>
    %25 = vector.shape_cast %24 : vector<2x8x8x256xbf16> to vector<128x256xbf16>
    %c1280 = arith.constant 1280 : index
    %c0_31 = arith.constant 0 : index
    %26 = vector.load %arg2[%c1280, %c0_31] : memref<2304x256xbf16, #tpu.memory_space<vmem>>, vector<256x256xbf16>
    %cst_32 = arith.constant dense<0.000000e+00> : vector<128x256xf32>
    %27 = tpu.matmul %25, %26, %cst_32 {dimension_numbers = #tpu.dot_dimension_numbers<[1], [0], [0], [1], [0, 0, 1, 1], [], []>} : vector<128x256xbf16>, vector<256x256xbf16>, vector<128x256xf32> -> vector<128x256xf32>
    %28 = arith.addf %23, %27 : vector<128x256xf32>
    %c0_33 = arith.constant 0 : index
    %c2_34 = arith.constant 2 : index
    %c0_35 = arith.constant 0 : index
    %c0_36 = arith.constant 0 : index
    %29 = vector.load %arg1[%c0_33, %c2_34, %c0_35, %c0_36] : memref<2x10x10x256xbf16, #tpu.memory_space<vmem>>, vector<2x8x8x256xbf16>
    %30 = vector.shape_cast %29 : vector<2x8x8x256xbf16> to vector<128x256xbf16>
    %c1536 = arith.constant 1536 : index
    %c0_37 = arith.constant 0 : index
    %31 = vector.load %arg2[%c1536, %c0_37] : memref<2304x256xbf16, #tpu.memory_space<vmem>>, vector<256x256xbf16>
    %cst_38 = arith.constant dense<0.000000e+00> : vector<128x256xf32>
    %32 = tpu.matmul %30, %31, %cst_38 {dimension_numbers = #tpu.dot_dimension_numbers<[1], [0], [0], [1], [0, 0, 1, 1], [], []>} : vector<128x256xbf16>, vector<256x256xbf16>, vector<128x256xf32> -> vector<128x256xf32>
    %33 = arith.addf %28, %32 : vector<128x256xf32>
    %c0_39 = arith.constant 0 : index
    %c2_40 = arith.constant 2 : index
    %c1_41 = arith.constant 1 : index
    %c0_42 = arith.constant 0 : index
    %34 = vector.load %arg1[%c0_39, %c2_40, %c1_41, %c0_42] : memref<2x10x10x256xbf16, #tpu.memory_space<vmem>>, vector<2x8x8x256xbf16>
    %35 = vector.shape_cast %34 : vector<2x8x8x256xbf16> to vector<128x256xbf16>
    %c1792 = arith.constant 1792 : index
    %c0_43 = arith.constant 0 : index
    %36 = vector.load %arg2[%c1792, %c0_43] : memref<2304x256xbf16, #tpu.memory_space<vmem>>, vector<256x256xbf16>
    %cst_44 = arith.constant dense<0.000000e+00> : vector<128x256xf32>
    %37 = tpu.matmul %35, %36, %cst_44 {dimension_numbers = #tpu.dot_dimension_numbers<[1], [0], [0], [1], [0, 0, 1, 1], [], []>} : vector<128x256xbf16>, vector<256x256xbf16>, vector<128x256xf32> -> vector<128x256xf32>
    %38 = arith.addf %33, %37 : vector<128x256xf32>
    %c0_45 = arith.constant 0 : index
    %c2_46 = arith.constant 2 : index
    %c2_47 = arith.constant 2 : index
    %c0_48 = arith.constant 0 : index
    %39 = vector.load %arg1[%c0_45, %c2_46, %c2_47, %c0_48] : memref<2x10x10x256xbf16, #tpu.memory_space<vmem>>, vector<2x8x8x256xbf16>
    %40 = vector.shape_cast %39 : vector<2x8x8x256xbf16> to vector<128x256xbf16>
    %c2048 = arith.constant 2048 : index
    %c0_49 = arith.constant 0 : index
    %41 = vector.load %arg2[%c2048, %c0_49] : memref<2304x256xbf16, #tpu.memory_space<vmem>>, vector<256x256xbf16>
    %cst_50 = arith.constant dense<0.000000e+00> : vector<128x256xf32>
    %42 = tpu.matmul %40, %41, %cst_50 {dimension_numbers = #tpu.dot_dimension_numbers<[1], [0], [0], [1], [0, 0, 1, 1], [], []>} : vector<128x256xbf16>, vector<256x256xbf16>, vector<128x256xf32> -> vector<128x256xf32>
    %43 = arith.addf %38, %42 : vector<128x256xf32>
    %c0_51 = arith.constant 0 : index
    %c0_52 = arith.constant 0 : index
    %44 = vector.load %arg3[%c0_51, %c0_52] : memref<1x256xf32, #tpu.memory_space<vmem>>, vector<1x256xf32>
    %45 = vector.broadcast %44 : vector<1x256xf32> to vector<128x256xf32>
    %46 = arith.addf %43, %45 : vector<128x256xf32>
    %47 = arith.truncf %46 : vector<128x256xf32> to vector<128x256xbf16>
    %c0_53 = arith.constant 0 : index
    %c0_54 = arith.constant 0 : index
    %48 = vector.load %arg4[%c0_53, %c0_54] : memref<128x256xbf16, #tpu.memory_space<vmem>>, vector<128x256xbf16>
    tpu.vector_store %arg4[%c0_53, %c0_54], %47 {strides = array<i32>} : memref<128x256xbf16, #tpu.memory_space<vmem>>, vector<128x256xbf16>,
    return
  }
  func.func @transform_0(%arg0: i32) -> (i32, i32, i32, i32) {
    %c0_i32 = arith.constant 0 : i32
    %c0_i32_0 = arith.constant 0 : i32
    %c0_i32_1 = arith.constant 0 : i32
    %c0_i32_2 = arith.constant 0 : i32
    return %arg0, %c0_i32, %c0_i32_0, %c0_i32_1 : i32, i32, i32, i32
  }
  func.func @transform_1(%arg0: i32) -> (i32, i32) {
    %c0_i32 = arith.constant 0 : i32
    %c0_i32_0 = arith.constant 0 : i32
    %c0_i32_1 = arith.constant 0 : i32
    return %c0_i32, %c0_i32_0 : i32, i32
  }
  func.func @transform_2(%arg0: i32) -> (i32, i32) {
    %c0_i32 = arith.constant 0 : i32
    %c0_i32_0 = arith.constant 0 : i32
    %c0_i32_1 = arith.constant 0 : i32
    return %c0_i32, %c0_i32_0 : i32, i32
  }
  func.func @transform_3(%arg0: i32) -> (i32, i32) {
    %c0_i32 = arith.constant 0 : i32
    %c0_i32_0 = arith.constant 0 : i32
    return %arg0, %c0_i32 : i32, i32
  }
}

</mosaic_0001>

<llo_original>
// kernel: upsample2d_forward.1
$region0: #{upsample2d_forward.1}
  #allocation0 [shape = 'u32[]', space=smem, size = 0x4, offset = 0x4, fixed_abs, tag = 'smem constant byte address 0x4 - core index']
  #allocation1 [shape = 'u32[144,128]{1,0:T(1,128)}', space=vmem, size = 0x12000, scoped, tag = 'internal scratch']
  %s0 = inlined_call_operand.vmem [shape: bf16[2,10,10,256], index: 0, kind: input, shape index: {}]
  %s1 = inlined_call_operand.vmem [shape: bf16[2304,256], index: 1, kind: input, shape index: {}]
  %s2 = inlined_call_operand.vmem [shape: f32[1,256], index: 2, kind: input, shape index: {}]
  %s3 = inlined_call_operand.vmem [shape: bf16[128,256], index: 3, kind: output, shape index: {}]
  %s4 = sld [smem:[#allocation0]]
  $region22: #{upsample2d_forward.1} parent=0
    _
  %s6 = ssub.s32 1, %s4
  %s7 = scalar_select 0, %s6, %s4
  // Predicated region
  $region2: #{upsample2d_forward.1} parent=0 // pred_check
    _
  $region3: #{upsample2d_forward.1} parent=0 // pred_check_branch
    %9 = sbr.rel (0) target = $region5
  $region4: #{upsample2d_forward.1} parent=0 // pred_region
    _
  $region5: #{upsample2d_forward.1} parent=0 // pred_fallthru
    _
  // Predicated region
  $region6: #{upsample2d_forward.1} parent=0 // pred_check
    _
  $region7: #{upsample2d_forward.1} parent=0 // pred_check_branch
    %11 = sbr.rel (0) target = $region9
  $region8: #{upsample2d_forward.1} parent=0 // pred_region
    _
  $region9: #{upsample2d_forward.1} parent=0 // pred_fallthru
    _
  // Predicated region
  $region10: #{upsample2d_forward.1} parent=0 // pred_check
    _
  $region11: #{upsample2d_forward.1} parent=0 // pred_check_branch
    %13 = sbr.rel (0) target = $region13
  $region12: #{upsample2d_forward.1} parent=0 // pred_region
    _
  $region13: #{upsample2d_forward.1} parent=0 // pred_fallthru
    _
  %v14 = vld [vmem:[%s0] sm:$0xff]
  %v15 = vld [vmem:[%s0 + $0x10] sm:$0xff]
  %v16 = vld [vmem:[%s0 + $0x20] sm:$0xff]
  %v17 = vld [vmem:[%s0 + $0x30] sm:$0xff]
  %v18 = vld [vmem:[%s0 + $0x40] sm:$0xff]
  %v19 = vld [vmem:[%s0 + $0x50] sm:$0xff]
  %v20 = vld [vmem:[%s0 + $0x60] sm:$0xff]
  %v21 = vld [vmem:[%s0 + $0x70] sm:$0xff]
  %v22 = vld [vmem:[%s0 + $0xa0] sm:$0xff]
  %v23 = vld [vmem:[%s0 + $0xb0] sm:$0xff]
  %v24 = vld [vmem:[%s0 + $0xc0] sm:$0xff]
  %v25 = vld [vmem:[%s0 + $0xd0] sm:$0xff]
  %v26 = vld [vmem:[%s0 + $0xe0] sm:$0xff]
  %v27 = vld [vmem:[%s0 + $0xf0] sm:$0xff]
  %v28 = vld [vmem:[%s0 + $0x100] sm:$0xff]
  %v29 = vld [vmem:[%s0 + $0x110] sm:$0xff]
  %v30 = vld [vmem:[%s1] sm:$0xff]
  %v31 = vld [vmem:[%s1 + $0x8] sm:$0xff]
  %v32 = vld [vmem:[%s1 + $0x10] sm:$0xff]
  %v33 = vld [vmem:[%s1 + $0x18] sm:$0xff]
  %v34 = vld [vmem:[%s1 + $0x20] sm:$0xff]
  %v35 = vld [vmem:[%s1 + $0x28] sm:$0xff]
  %v36 = vld [vmem:[%s1 + $0x30] sm:$0xff]
  %v37 = vld [vmem:[%s1 + $0x38] sm:$0xff]
  %v38 = vld [vmem:[%s1 + $0x40] sm:$0xff]
  %v39 = vld [vmem:[%s1 + $0x48] sm:$0xff]
  %v40 = vld [vmem:[%s1 + $0x50] sm:$0xff]
  %v41 = vld [vmem:[%s1 + $0x58] sm:$0xff]
  %v42 = vld [vmem:[%s1 + $0x60] sm:$0xff]
  %v43 = vld [vmem:[%s1 + $0x68] sm:$0xff]
  %v44 = vld [vmem:[%s1 + $0x70] sm:$0xff]
  %v45 = vld [vmem:[%s1 + $0x78] sm:$0xff]
  %v46 = vld [vmem:[%s1 + $0x80] sm:$0xff]
  %v47 = vld [vmem:[%s1 + $0x88] sm:$0xff]
  %v48 = vld [vmem:[%s1 + $0x90] sm:$0xff]
  %v49 = vld [vmem:[%s1 + $0x98] sm:$0xff]
  %v50 = vld [vmem:[%s1 + $0xa0] sm:$0xff]
  %v51 = vld [vmem:[%s1 + $0xa8] sm:$0xff]
  %v52 = vld [vmem:[%s1 + $0xb0] sm:$0xff]
  %v53 = vld [vmem:[%s1 + $0xb8] sm:$0xff]
  %v54 = vld [vmem:[%s1 + $0xc0] sm:$0xff]
  %v55 = vld [vmem:[%s1 + $0xc8] sm:$0xff]
  %v56 = vld [vmem:[%s1 + $0xd0] sm:$0xff]
  %v57 = vld [vmem:[%s1 + $0xd8] sm:$0xff]
  %v58 = vld [vmem:[%s1 + $0xe0] sm:$0xff]
  %v59 = vld [vmem:[%s1 + $0xe8] sm:$0xff]
  %v60 = vld [vmem:[%s1 + $0xf0] sm:$0xff]
  %v61 = vld [vmem:[%s1 + $0xf8] sm:$0xff]
  %v62 = vld [vmem:[%s0 + $0x8] sm:$0x11]
  %v63 = vld [vmem:[%s0 + $0x18] sm:$0x11]
  %v64 = vld [vmem:[%s0 + $0x28] sm:$0x11]
  %v65 = vld [vmem:[%s0 + $0x38] sm:$0x11]
  %v66 = vld [vmem:[%s0 + $0x48] sm:$0x11]
  %v67 = vld [vmem:[%s0 + $0x58] sm:$0x11]
  %v68 = vld [vmem:[%s0 + $0x68] sm:$0x11]
  %v69 = vld [vmem:[%s0 + $0x78] sm:$0x11]
  %v70 = vld [vmem:[%s0 + $0xa8] sm:$0x11]
  %v71 = vld [vmem:[%s0 + $0xb8] sm:$0x11]
  %v72 = vld [vmem:[%s0 + $0xc8] sm:$0x11]
  %v73 = vld [vmem:[%s0 + $0xd8] sm:$0x11]
  %v74 = vld [vmem:[%s0 + $0xe8] sm:$0x11]
  %v75 = vld [vmem:[%s0 + $0xf8] sm:$0x11]
  %v76 = vld [vmem:[%s0 + $0x108] sm:$0x11]
  %v77 = vld [vmem:[%s0 + $0x118] sm:$0x11]
  %vm78 = vsmask.f32 3328
  %vm79 = vsmask.f32 7440
  %vm80 = vmor %vm78, %vm79
  %v82 = vshrl.u32 %v14, 16
  %v84 = vrot.slane %v82, 4
  %v85 = vshll.u32 %v14, 16
  %v87 = vrot.slane %v85, 5
  %v88 = vor.u32 %v84, %v87
  %v89 = vrot.slane %v88, 4
  %v91 = vshll.u32 %v62, 16
  %v93 = vrot.slane %v91, 5
  %v94 = vsel %vm80, %v89, %v93
  %v96 = vshrl.u32 %v15, 16
  %v98 = vrot.slane %v96, 4
  %v99 = vshll.u32 %v15, 16
  %v101 = vrot.slane %v99, 5
  %v102 = vor.u32 %v98, %v101
  %v103 = vrot.slane %v102, 4
  %v105 = vshll.u32 %v63, 16
  %v107 = vrot.slane %v105, 5
  %v108 = vsel %vm80, %v103, %v107
  %v110 = vshrl.u32 %v16, 16
  %v112 = vrot.slane %v110, 4
  %v113 = vshll.u32 %v16, 16
  %v115 = vrot.slane %v113, 5
  %v116 = vor.u32 %v112, %v115
  %v117 = vrot.slane %v116, 4
  %v119 = vshll.u32 %v64, 16
  %v121 = vrot.slane %v119, 5
  %v122 = vsel %vm80, %v117, %v121
  %v124 = vshrl.u32 %v17, 16
  %v126 = vrot.slane %v124, 4
  %v127 = vshll.u32 %v17, 16
  %v129 = vrot.slane %v127, 5
  %v130 = vor.u32 %v126, %v129
  %v131 = vrot.slane %v130, 4
  %v133 = vshll.u32 %v65, 16
  %v135 = vrot.slane %v133, 5
  %v136 = vsel %vm80, %v131, %v135
  %v138 = vshrl.u32 %v18, 16
  %v140 = vrot.slane %v138, 4
  %v141 = vshll.u32 %v18, 16
  %v143 = vrot.slane %v141, 5
  %v144 = vor.u32 %v140, %v143
  %v145 = vrot.slane %v144, 4
  %v147 = vshll.u32 %v66, 16
  %v149 = vrot.slane %v147, 5
  %v150 = vsel %vm80, %v145, %v149
  %v152 = vshrl.u32 %v19, 16
  %v154 = vrot.slane %v152, 4
  %v155 = vshll.u32 %v19, 16
  %v157 = vrot.slane %v155, 5
  %v158 = vor.u32 %v154, %v157
  %v159 = vrot.slane %v158, 4
  %v161 = vshll.u32 %v67, 16
  %v163 = vrot.slane %v161, 5
  %v164 = vsel %vm80, %v159, %v163
  %v166 = vshrl.u32 %v20, 16
  %v168 = vrot.slane %v166, 4
  %v169 = vshll.u32 %v20, 16
  %v171 = vrot.slane %v169, 5
  %v172 = vor.u32 %v168, %v171
  %v173 = vrot.slane %v172, 4
  %v175 = vshll.u32 %v68, 16
  %v177 = vrot.slane %v175, 5
  %v178 = vsel %vm80, %v173, %v177
  %v180 = vshrl.u32 %v21, 16
  %v182 = vrot.slane %v180, 4
  %v183 = vshll.u32 %v21, 16
  %v185 = vrot.slane %v183, 5
  %v186 = vor.u32 %v182, %v185
  %v187 = vrot.slane %v186, 4
  %v189 = vshll.u32 %v69, 16
  %v191 = vrot.slane %v189, 5
  %v192 = vsel %vm80, %v187, %v191
  %v194 = vshrl.u32 %v22, 16
  %v196 = vrot.slane %v194, 4
  %v197 = vshll.u32 %v22, 16
  %v199 = vrot.slane %v197, 5
  %v200 = vor.u32 %v196, %v199
  %v201 = vrot.slane %v200, 4
  %v203 = vshll.u32 %v70, 16
  %v205 = vrot.slane %v203, 5
  %v206 = vsel %vm80, %v201, %v205
  %v208 = vshrl.u32 %v23, 16
  %v210 = vrot.slane %v208, 4
  %v211 = vshll.u32 %v23, 16
  %v213 = vrot.slane %v211, 5
  %v214 = vor.u32 %v210, %v213
  %v215 = vrot.slane %v214, 4
  %v217 = vshll.u32 %v71, 16
  %v219 = vrot.slane %v217, 5
  %v220 = vsel %vm80, %v215, %v219
  %v222 = vshrl.u32 %v24, 16
  %v224 = vrot.slane %v222, 4
  %v225 = vshll.u32 %v24, 16
  %v227 = vrot.slane %v225, 5
  %v228 = vor.u32 %v224, %v227
  %v229 = vrot.slane %v228, 4
  %v231 = vshll.u32 %v72, 16
  %v233 = vrot.slane %v231, 5
  %v234 = vsel %vm80, %v229, %v233
  %v236 = vshrl.u32 %v25, 16
  %v238 = vrot.slane %v236, 4
  %v239 = vshll.u32 %v25, 16
  %v241 = vrot.slane %v239, 5
  %v242 = vor.u32 %v238, %v241
  %v243 = vrot.slane %v242, 4
  %v245 = vshll.u32 %v73, 16
  %v247 = vrot.slane %v245, 5
  %v248 = vsel %vm80, %v243, %v247
  %v250 = vshrl.u32 %v26, 16
  %v252 = vrot.slane %v250, 4
  %v253 = vshll.u32 %v26, 16
  %v255 = vrot.slane %v253, 5
  %v256 = vor.u32 %v252, %v255
  %v257 = vrot.slane %v256, 4
  %v259 = vshll.u32 %v74, 16
  %v261 = vrot.slane %v259, 5
  %v262 = vsel %vm80, %v257, %v261
  %v264 = vshrl.u32 %v27, 16
  %v266 = vrot.slane %v264, 4
  %v267 = vshll.u32 %v27, 16
  %v269 = vrot.slane %v267, 5
  %v270 = vor.u32 %v266, %v269
  %v271 = vrot.slane %v270, 4
  %v273 = vshll.u32 %v75, 16
  %v275 = vrot.slane %v273, 5
  %v276 = vsel %vm80, %v271, %v275
  %v278 = vshrl.u32 %v28, 16
  %v280 = vrot.slane %v278, 4
  %v281 = vshll.u32 %v28, 16
  %v283 = vrot.slane %v281, 5
  %v284 = vor.u32 %v280, %v283
  %v285 = vrot.slane %v284, 4
  %v287 = vshll.u32 %v76, 16
  %v289 = vrot.slane %v287, 5
  %v290 = vsel %vm80, %v285, %v289
  %v292 = vshrl.u32 %v29, 16
  %v294 = vrot.slane %v292, 4
  %v295 = vshll.u32 %v29, 16
  %v297 = vrot.slane %v295, 5
  %v298 = vor.u32 %v294, %v297
  %v299 = vrot.slane %v298, 4
  %v301 = vshll.u32 %v77, 16
  %v303 = vrot.slane %v301, 5
  %v304 = vsel %vm80, %v299, %v303
  %v305 = vld [vmem:[%s1 + $0x100] sm:$0xff]
  %v306 = vld [vmem:[%s1 + $0x108] sm:$0xff]
  %v307 = vld [vmem:[%s1 + $0x110] sm:$0xff]
  %v308 = vld [vmem:[%s1 + $0x118] sm:$0xff]
  %v309 = vld [vmem:[%s1 + $0x120] sm:$0xff]
  %v310 = vld [vmem:[%s1 + $0x128] sm:$0xff]
  %v311 = vld [vmem:[%s1 + $0x130] sm:$0xff]
  %v312 = vld [vmem:[%s1 + $0x138] sm:$0xff]
  %v313 = vld [vmem:[%s1 + $0x140] sm:$0xff]
  %v314 = vld [vmem:[%s1 + $0x148] sm:$0xff]
  %v315 = vld [vmem:[%s1 + $0x150] sm:$0xff]
  %v316 = vld [vmem:[%s1 + $0x158] sm:$0xff]
  %v317 = vld [vmem:[%s1 + $0x160] sm:$0xff]
  %v318 = vld [vmem:[%s1 + $0x168] sm:$0xff]
  %v319 = vld [vmem:[%s1 + $0x170] sm:$0xff]
  %v320 = vld [vmem:[%s1 + $0x178] sm:$0xff]
  %v321 = vld [vmem:[%s1 + $0x180] sm:$0xff]
  %v322 = vld [vmem:[%s1 + $0x188] sm:$0xff]
  %v323 = vld [vmem:[%s1 + $0x190] sm:$0xff]
  %v324 = vld [vmem:[%s1 + $0x198] sm:$0xff]
  %v325 = vld [vmem:[%s1 + $0x1a0] sm:$0xff]
  %v326 = vld [vmem:[%s1 + $0x1a8] sm:$0xff]
  %v327 = vld [vmem:[%s1 + $0x1b0] sm:$0xff]
  %v328 = vld [vmem:[%s1 + $0x1b8] sm:$0xff]
  %v329 = vld [vmem:[%s1 + $0x1c0] sm:$0xff]
  %v330 = vld [vmem:[%s1 + $0x1c8] sm:$0xff]
  %v331 = vld [vmem:[%s1 + $0x1d0] sm:$0xff]
  %v332 = vld [vmem:[%s1 + $0x1d8] sm:$0xff]
  %v333 = vld [vmem:[%s1 + $0x1e0] sm:$0xff]
  %v334 = vld [vmem:[%s1 + $0x1e8] sm:$0xff]
  %v335 = vld [vmem:[%s1 + $0x1f0] sm:$0xff]
  %v336 = vld [vmem:[%s1 + $0x1f8] sm:$0xff]
  %v337 = vunpack.c.l.b16 %v94
  %v338 = vunpack.c.h.b16 %v94
  %v339 = vunpack.c.l.b16 %v108
  %v340 = vunpack.c.h.b16 %v108
  %v341 = vunpack.c.l.b16 %v122
  %v342 = vunpack.c.h.b16 %v122
  %v343 = vunpack.c.l.b16 %v136
  %v344 = vunpack.c.h.b16 %v136
  %v345 = vunpack.c.l.b16 %v150
  %v346 = vunpack.c.h.b16 %v150
  %v347 = vunpack.c.l.b16 %v164
  %v348 = vunpack.c.h.b16 %v164
  %v349 = vunpack.c.l.b16 %v178
  %v350 = vunpack.c.h.b16 %v178
  %v351 = vunpack.c.l.b16 %v192
  %v352 = vunpack.c.h.b16 %v192
  %v353 = vunpack.c.l.b16 %v206
  %v354 = vunpack.c.h.b16 %v206
  %v355 = vunpack.c.l.b16 %v220
  %v356 = vunpack.c.h.b16 %v220
  %v357 = vunpack.c.l.b16 %v234
  %v358 = vunpack.c.h.b16 %v234
  %v359 = vunpack.c.l.b16 %v248
  %v360 = vunpack.c.h.b16 %v248
  %v361 = vunpack.c.l.b16 %v262
  %v362 = vunpack.c.h.b16 %v262
  %v363 = vunpack.c.l.b16 %v276
  %v364 = vunpack.c.h.b16 %v276
  %v365 = vunpack.c.l.b16 %v290
  %v366 = vunpack.c.h.b16 %v290
  %v367 = vunpack.c.l.b16 %v304
  %v368 = vunpack.c.h.b16 %v304
  %v369 = vpack.c.b16 %v339, %v337
  %v370 = vpack.c.b16 %v340, %v338
  %v371 = vpack.c.b16 %v343, %v341
  %v372 = vpack.c.b16 %v344, %v342
  %v373 = vpack.c.b16 %v347, %v345
  %v374 = vpack.c.b16 %v348, %v346
  %v375 = vpack.c.b16 %v351, %v349
  %v376 = vpack.c.b16 %v352, %v350
  %v377 = vpack.c.b16 %v355, %v353
  %v378 = vpack.c.b16 %v356, %v354
  %v379 = vpack.c.b16 %v359, %v357
  %v380 = vpack.c.b16 %v360, %v358
  %v381 = vpack.c.b16 %v363, %v361
  %v382 = vpack.c.b16 %v364, %v362
  %v383 = vpack.c.b16 %v367, %v365
  %v384 = vpack.c.b16 %v368, %v366
  %v433 = vunpack.c.l.b16 %v305
  %v434 = vunpack.c.h.b16 %v305
  %v435 = vunpack.c.l.b16 %v306
  %v436 = vunpack.c.h.b16 %v306
  %v437 = vunpack.c.l.b16 %v307
  %v438 = vunpack.c.h.b16 %v307
  %v439 = vunpack.c.l.b16 %v308
  %v440 = vunpack.c.h.b16 %v308
  %v441 = vunpack.c.l.b16 %v309
  %v442 = vunpack.c.h.b16 %v309
  %v443 = vunpack.c.l.b16 %v310
  %v444 = vunpack.c.h.b16 %v310
  %v445 = vunpack.c.l.b16 %v311
  %v446 = vunpack.c.h.b16 %v311
  %v447 = vunpack.c.l.b16 %v312
  %v448 = vunpack.c.h.b16 %v312
  %v449 = vunpack.c.l.b16 %v313
  %v450 = vunpack.c.h.b16 %v313
  %v451 = vunpack.c.l.b16 %v314
  %v452 = vunpack.c.h.b16 %v314
  %v453 = vunpack.c.l.b16 %v315
  %v454 = vunpack.c.h.b16 %v315
  %v455 = vunpack.c.l.b16 %v316
  %v456 = vunpack.c.h.b16 %v316
  %v457 = vunpack.c.l.b16 %v317
  %v458 = vunpack.c.h.b16 %v317
  %v459 = vunpack.c.l.b16 %v318
  %v460 = vunpack.c.h.b16 %v318
  %v461 = vunpack.c.l.b16 %v319
  %v462 = vunpack.c.h.b16 %v319
  %v463 = vunpack.c.l.b16 %v320
  %v464 = vunpack.c.h.b16 %v320
  %v465 = vunpack.c.l.b16 %v321
  %v466 = vunpack.c.h.b16 %v321
  %v467 = vunpack.c.l.b16 %v322
  %v468 = vunpack.c.h.b16 %v322
  %v469 = vunpack.c.l.b16 %v323
  %v470 = vunpack.c.h.b16 %v323
  %v471 = vunpack.c.l.b16 %v324
  %v472 = vunpack.c.h.b16 %v324
  %v473 = vunpack.c.l.b16 %v325
  %v474 = vunpack.c.h.b16 %v325
  %v475 = vunpack.c.l.b16 %v326
  %v476 = vunpack.c.h.b16 %v326
  %v477 = vunpack.c.l.b16 %v327
  %v478 = vunpack.c.h.b16 %v327
  %v479 = vunpack.c.l.b16 %v328
  %v480 = vunpack.c.h.b16 %v328
  %v481 = vunpack.c.l.b16 %v329
  %v482 = vunpack.c.h.b16 %v329
  %v483 = vunpack.c.l.b16 %v330
  %v484 = vunpack.c.h.b16 %v330
  %v485 = vunpack.c.l.b16 %v331
  %v486 = vunpack.c.h.b16 %v331
  %v487 = vunpack.c.l.b16 %v332
  %v488 = vunpack.c.h.b16 %v332
  %v489 = vunpack.c.l.b16 %v333
  %v490 = vunpack.c.h.b16 %v333
  %v491 = vunpack.c.l.b16 %v334
  %v492 = vunpack.c.h.b16 %v334
  %v493 = vunpack.c.l.b16 %v335
  %v494 = vunpack.c.h.b16 %v335
  %v495 = vunpack.c.l.b16 %v336
  %v496 = vunpack.c.h.b16 %v336
  %v497 = vpack.c.b16 %v435, %v433
  %v498 = vpack.c.b16 %v436, %v434
  %v499 = vpack.c.b16 %v439, %v437
  %v500 = vpack.c.b16 %v440, %v438
  %v501 = vpack.c.b16 %v443, %v441
  %v502 = vpack.c.b16 %v444, %v442
  %v503 = vpack.c.b16 %v447, %v445
  %v504 = vpack.c.b16 %v448, %v446
  %v505 = vpack.c.b16 %v451, %v449
  %v506 = vpack.c.b16 %v452, %v450
  %v507 = vpack.c.b16 %v455, %v453
  %v508 = vpack.c.b16 %v456, %v454
  %v509 = vpack.c.b16 %v459, %v457
  %v510 = vpack.c.b16 %v460, %v458
  %v511 = vpack.c.b16 %v463, %v461
  %v512 = vpack.c.b16 %v464, %v462
  %v513 = vpack.c.b16 %v467, %v465
  %v514 = vpack.c.b16 %v468, %v466
  %v515 = vpack.c.b16 %v471, %v469
  %v516 = vpack.c.b16 %v472, %v470
  %v517 = vpack.c.b16 %v475, %v473
  %v518 = vpack.c.b16 %v476, %v474
  %v519 = vpack.c.b16 %v479, %v477
  %v520 = vpack.c.b16 %v480, %v478
  %v521 = vpack.c.b16 %v483, %v481
  %v522 = vpack.c.b16 %v484, %v482
  %v523 = vpack.c.b16 %v487, %v485
  %v524 = vpack.c.b16 %v488, %v486
  %v525 = vpack.c.b16 %v491, %v489
  %v526 = vpack.c.b16 %v492, %v490
  %v527 = vpack.c.b16 %v495, %v493
  %v528 = vpack.c.b16 %v496, %v494
  %561 = vmatprep.subr.bf16.mxu0 %v512
  %562 = vmatpush1.bf16.msra.mxu0 %v511
  %563 = vmatprep.subr.bf16.mxu0 %v510
  %564 = vmatpush1.bf16.msra.mxu0 %v509
  %565 = vmatprep.subr.bf16.mxu0 %v508
  %566 = vmatpush1.bf16.msra.mxu0 %v507
  %567 = vmatprep.subr.bf16.mxu0 %v506
  %568 = vmatpush1.bf16.msra.mxu0 %v505
  %569 = vmatprep.subr.bf16.mxu0 %v504
  %570 = vmatpush1.bf16.msra.mxu0 %v503
  %571 = vmatprep.subr.bf16.mxu0 %v502
  %572 = vmatpush1.bf16.msra.mxu0 %v501
  %573 = vmatprep.subr.bf16.mxu0 %v500
  %574 = vmatpush1.bf16.msra.mxu0 %v499
  %575 = vmatprep.subr.bf16.mxu0 %v498
  %576 = vmatpush1.bf16.msra.mxu0 %v497
  %577 = vmatprep.subr.bf16.mxu0 %v528
  %578 = vmatpush2.bf16.msra.mxu0 %v527
  %579 = vmatprep.subr.bf16.mxu0 %v526
  %580 = vmatpush2.bf16.msra.mxu0 %v525
  %581 = vmatprep.subr.bf16.mxu0 %v524
  %582 = vmatpush2.bf16.msra.mxu0 %v523
  %583 = vmatprep.subr.bf16.mxu0 %v522
  %584 = vmatpush2.bf16.msra.mxu0 %v521
  %585 = vmatprep.subr.bf16.mxu0 %v520
  %586 = vmatpush2.bf16.msra.mxu0 %v519
  %587 = vmatprep.subr.bf16.mxu0 %v518
  %588 = vmatpush2.bf16.msra.mxu0 %v517
  %589 = vmatprep.subr.bf16.mxu0 %v516
  %590 = vmatpush2.bf16.msra.mxu0 %v515
  %591 = vmatprep.subr.bf16.mxu0 %v514
  %592 = vmatpush2.bf16.msra.mxu0 %v513
  %593 = vmatprep.mubr.bf16.mxu0 %v370
  %594 = vmatmul.mubr.bf16.gmra.mxu0 %v369
  %v595 = vpop.f32.mrf.mxu0
  %v596 = vadd.f32 0.0, %v595
  %v597 = vpop.f32.mrf.mxu0
  %v598 = vadd.f32 0.0, %v597
  %v599 = vpop.f32.mrf.mxu0
  %v600 = vadd.f32 0.0, %v599
  %v601 = vpop.f32.mrf.mxu0
  %v602 = vadd.f32 0.0, %v601
  %603 = vmatprep.mubr.bf16.mxu0 %v372
  %604 = vmatmul.mubr.bf16.gmra.mxu0 %v371
  %v605 = vpop.f32.mrf.mxu0
  %v606 = vadd.f32 0.0, %v605
  %v607 = vpop.f32.mrf.mxu0
  %v608 = vadd.f32 0.0, %v607
  %v609 = vpop.f32.mrf.mxu0
  %v610 = vadd.f32 0.0, %v609
  %v611 = vpop.f32.mrf.mxu0
  %v612 = vadd.f32 0.0, %v611
  %613 = vmatprep.mubr.bf16.mxu0 %v374
  %614 = vmatmul.mubr.bf16.gmra.mxu0 %v373
  %v615 = vpop.f32.mrf.mxu0
  %v616 = vadd.f32 0.0, %v615
  %v617 = vpop.f32.mrf.mxu0
  %v618 = vadd.f32 0.0, %v617
  %v619 = vpop.f32.mrf.mxu0
  %v620 = vadd.f32 0.0, %v619
  %v621 = vpop.f32.mrf.mxu0
  %v622 = vadd.f32 0.0, %v621
  %623 = vmatprep.mubr.bf16.mxu0 %v376
  %624 = vmatmul.mubr.bf16.gmra.mxu0 %v375
  %v625 = vpop.f32.mrf.mxu0
  %v626 = vadd.f32 0.0, %v625
  %v627 = vpop.f32.mrf.mxu0
  %v628 = vadd.f32 0.0, %v627
  %v629 = vpop.f32.mrf.mxu0
  %v630 = vadd.f32 0.0, %v629
  %v631 = vpop.f32.mrf.mxu0
  %v632 = vadd.f32 0.0, %v631
  %633 = vmatprep.mubr.bf16.mxu0 %v378
  %634 = vmatmul.mubr.bf16.gmra.mxu0 %v377
  %v635 = vpop.f32.mrf.mxu0
  %v636 = vadd.f32 0.0, %v635
  %v637 = vpop.f32.mrf.mxu0
  %v638 = vadd.f32 0.0, %v637
  %v639 = vpop.f32.mrf.mxu0
  %v640 = vadd.f32 0.0, %v639
  %v641 = vpop.f32.mrf.mxu0
  %v642 = vadd.f32 0.0, %v641
  %643 = vmatprep.mubr.bf16.mxu0 %v380
  %644 = vmatmul.mubr.bf16.gmra.mxu0 %v379
  %v645 = vpop.f32.mrf.mxu0
  %v646 = vadd.f32 0.0, %v645
  %v647 = vpop.f32.mrf.mxu0
  %v648 = vadd.f32 0.0, %v647
  %v649 = vpop.f32.mrf.mxu0
  %v650 = vadd.f32 0.0, %v649
  %v651 = vpop.f32.mrf.mxu0
  %v652 = vadd.f32 0.0, %v651
  %653 = vmatprep.mubr.bf16.mxu0 %v382
  %654 = vmatmul.mubr.bf16.gmra.mxu0 %v381
  %v655 = vpop.f32.mrf.mxu0
  %v656 = vadd.f32 0.0, %v655
  %v657 = vpop.f32.mrf.mxu0
  %v658 = vadd.f32 0.0, %v657
  %v659 = vpop.f32.mrf.mxu0
  %v660 = vadd.f32 0.0, %v659
  %v661 = vpop.f32.mrf.mxu0
  %v662 = vadd.f32 0.0, %v661
  %663 = vmatprep.mubr.bf16.mxu0 %v384
  %664 = vmatmul.mubr.bf16.gmra.mxu0 %v383
  %v665 = vpop.f32.mrf.mxu0
  %v666 = vadd.f32 0.0, %v665
  %v667 = vpop.f32.mrf.mxu0
  %v668 = vadd.f32 0.0, %v667
  %v669 = vpop.f32.mrf.mxu0
  %v670 = vadd.f32 0.0, %v669
  %v671 = vpop.f32.mrf.mxu0
  %v672 = vadd.f32 0.0, %v671
  %673 = vdwg.mxu0
  %v690 = vunpack.c.l.b16 %v14
  %v691 = vunpack.c.h.b16 %v14
  %v692 = vunpack.c.l.b16 %v15
  %v693 = vunpack.c.h.b16 %v15
  %v694 = vunpack.c.l.b16 %v16
  %v695 = vunpack.c.h.b16 %v16
  %v696 = vunpack.c.l.b16 %v17
  %v697 = vunpack.c.h.b16 %v17
  %v698 = vunpack.c.l.b16 %v18
  %v699 = vunpack.c.h.b16 %v18
  %v700 = vunpack.c.l.b16 %v19
  %v701 = vunpack.c.h.b16 %v19
  %v702 = vunpack.c.l.b16 %v20
  %v703 = vunpack.c.h.b16 %v20
  %v704 = vunpack.c.l.b16 %v21
  %v705 = vunpack.c.h.b16 %v21
  %v706 = vunpack.c.l.b16 %v22
  %v707 = vunpack.c.h.b16 %v22
  %v708 = vunpack.c.l.b16 %v23
  %v709 = vunpack.c.h.b16 %v23
  %v710 = vunpack.c.l.b16 %v24
  %v711 = vunpack.c.h.b16 %v24
  %v712 = vunpack.c.l.b16 %v25
  %v713 = vunpack.c.h.b16 %v25
  %v714 = vunpack.c.l.b16 %v26
  %v715 = vunpack.c.h.b16 %v26
  %v716 = vunpack.c.l.b16 %v27
  %v717 = vunpack.c.h.b16 %v27
  %v718 = vunpack.c.l.b16 %v28
  %v719 = vunpack.c.h.b16 %v28
  %v720 = vunpack.c.l.b16 %v29
  %v721 = vunpack.c.h.b16 %v29
  %v722 = vpack.c.b16 %v692, %v690
  %v723 = vpack.c.b16 %v693, %v691
  %v724 = vpack.c.b16 %v696, %v694
  %v725 = vpack.c.b16 %v697, %v695
  %v726 = vpack.c.b16 %v700, %v698
  %v727 = vpack.c.b16 %v701, %v699
  %v728 = vpack.c.b16 %v704, %v702
  %v729 = vpack.c.b16 %v705, %v703
  %v730 = vpack.c.b16 %v708, %v706
  %v731 = vpack.c.b16 %v709, %v707
  %v732 = vpack.c.b16 %v712, %v710
  %v733 = vpack.c.b16 %v713, %v711
  %v734 = vpack.c.b16 %v716, %v714
  %v735 = vpack.c.b16 %v717, %v715
  %v736 = vpack.c.b16 %v720, %v718
  %v737 = vpack.c.b16 %v721, %v719
  %v786 = vunpack.c.l.b16 %v30
  %v787 = vunpack.c.h.b16 %v30
  %v788 = vunpack.c.l.b16 %v31
  %v789 = vunpack.c.h.b16 %v31
  %v790 = vunpack.c.l.b16 %v32
  %v791 = vunpack.c.h.b16 %v32
  %v792 = vunpack.c.l.b16 %v33
  %v793 = vunpack.c.h.b16 %v33
  %v794 = vunpack.c.l.b16 %v34
  %v795 = vunpack.c.h.b16 %v34
  %v796 = vunpack.c.l.b16 %v35
  %v797 = vunpack.c.h.b16 %v35
  %v798 = vunpack.c.l.b16 %v36
  %v799 = vunpack.c.h.b16 %v36
  %v800 = vunpack.c.l.b16 %v37
  %v801 = vunpack.c.h.b16 %v37
  %v802 = vunpack.c.l.b16 %v38
  %v803 = vunpack.c.h.b16 %v38
  %v804 = vunpack.c.l.b16 %v39
  %v805 = vunpack.c.h.b16 %v39
  %v806 = vunpack.c.l.b16 %v40
  %v807 = vunpack.c.h.b16 %v40
  %v808 = vunpack.c.l.b16 %v41
  %v809 = vunpack.c.h.b16 %v41
  %v810 = vunpack.c.l.b16 %v42
  %v811 = vunpack.c.h.b16 %v42
  %v812 = vunpack.c.l.b16 %v43
  %v813 = vunpack.c.h.b16 %v43
  %v814 = vunpack.c.l.b16 %v44
  %v815 = vunpack.c.h.b16 %v44
  %v816 = vunpack.c.l.b16 %v45
  %v817 = vunpack.c.h.b16 %v45
  %v818 = vunpack.c.l.b16 %v46
  %v819 = vunpack.c.h.b16 %v46
  %v820 = vunpack.c.l.b16 %v47
  %v821 = vunpack.c.h.b16 %v47
  %v822 = vunpack.c.l.b16 %v48
  %v823 = vunpack.c.h.b16 %v48
  %v824 = vunpack.c.l.b16 %v49
  %v825 = vunpack.c.h.b16 %v49
  %v826 = vunpack.c.l.b16 %v50
  %v827 = vunpack.c.h.b16 %v50
  %v828 = vunpack.c.l.b16 %v51
  %v829 = vunpack.c.h.b16 %v51
  %v830 = vunpack.c.l.b16 %v52
  %v831 = vunpack.c.h.b16 %v52
  %v832 = vunpack.c.l.b16 %v53
  %v833 = vunpack.c.h.b16 %v53
  %v834 = vunpack.c.l.b16 %v54
  %v835 = vunpack.c.h.b16 %v54
  %v836 = vunpack.c.l.b16 %v55
  %v837 = vunpack.c.h.b16 %v55
  %v838 = vunpack.c.l.b16 %v56
  %v839 = vunpack.c.h.b16 %v56
  %v840 = vunpack.c.l.b16 %v57
  %v841 = vunpack.c.h.b16 %v57
  %v842 = vunpack.c.l.b16 %v58
  %v843 = vunpack.c.h.b16 %v58
  %v844 = vunpack.c.l.b16 %v59
  %v845 = vunpack.c.h.b16 %v59
  %v846 = vunpack.c.l.b16 %v60
  %v847 = vunpack.c.h.b16 %v60
  %v848 = vunpack.c.l.b16 %v61
  %v849 = vunpack.c.h.b16 %v61
  %v850 = vpack.c.b16 %v788, %v786
  %v851 = vpack.c.b16 %v789, %v787
  %v852 = vpack.c.b16 %v792, %v790
  %v853 = vpack.c.b16 %v793, %v791
  %v854 = vpack.c.b16 %v796, %v794
  %v855 = vpack.c.b16 %v797, %v795
  %v856 = vpack.c.b16 %v800, %v798
  %v857 = vpack.c.b16 %v801, %v799
  %v858 = vpack.c.b16 %v804, %v802
  %v859 = vpack.c.b16 %v805, %v803
  %v860 = vpack.c.b16 %v808, %v806
  %v861 = vpack.c.b16 %v809, %v807
  %v862 = vpack.c.b16 %v812, %v810
  %v863 = vpack.c.b16 %v813, %v811
  %v864 = vpack.c.b16 %v816, %v814
  %v865 = vpack.c.b16 %v817, %v815
  %v866 = vpack.c.b16 %v820, %v818
  %v867 = vpack.c.b16 %v821, %v819
  %v868 = vpack.c.b16 %v824, %v822
  %v869 = vpack.c.b16 %v825, %v823
  %v870 = vpack.c.b16 %v828, %v826
  %v871 = vpack.c.b16 %v829, %v827
  %v872 = vpack.c.b16 %v832, %v830
  %v873 = vpack.c.b16 %v833, %v831
  %v874 = vpack.c.b16 %v836, %v834
  %v875 = vpack.c.b16 %v837, %v835
  %v876 = vpack.c.b16 %v840, %v838
  %v877 = vpack.c.b16 %v841, %v839
  %v878 = vpack.c.b16 %v844, %v842
  %v879 = vpack.c.b16 %v845, %v843
  %v880 = vpack.c.b16 %v848, %v846
  %v881 = vpack.c.b16 %v849, %v847
  %914 = vmatprep.subr.bf16.mxu0 %v865
  %915 = vmatpush1.bf16.msra.mxu0 %v864
  %916 = vmatprep.subr.bf16.mxu0 %v863
  %917 = vmatpush1.bf16.msra.mxu0 %v862
  %918 = vmatprep.subr.bf16.mxu0 %v861
  %919 = vmatpush1.bf16.msra.mxu0 %v860
  %920 = vmatprep.subr.bf16.mxu0 %v859
  %921 = vmatpush1.bf16.msra.mxu0 %v858
  %922 = vmatprep.subr.bf16.mxu0 %v857
  %923 = vmatpush1.bf16.msra.mxu0 %v856
  %924 = vmatprep.subr.bf16.mxu0 %v855
  %925 = vmatpush1.bf16.msra.mxu0 %v854
  %926 = vmatprep.subr.bf16.mxu0 %v853
  %927 = vmatpush1.bf16.msra.mxu0 %v852
  %928 = vmatprep.subr.bf16.mxu0 %v851
  %929 = vmatpush1.bf16.msra.mxu0 %v850
  %930 = vmatprep.subr.bf16.mxu0 %v881
  %931 = vmatpush2.bf16.msra.mxu0 %v880
  %932 = vmatprep.subr.bf16.mxu0 %v879
  %933 = vmatpush2.bf16.msra.mxu0 %v878
  %934 = vmatprep.subr.bf16.mxu0 %v877
  %935 = vmatpush2.bf16.msra.mxu0 %v876
  %936 = vmatprep.subr.bf16.mxu0 %v875
  %937 = vmatpush2.bf16.msra.mxu0 %v874
  %938 = vmatprep.subr.bf16.mxu0 %v873
  %939 = vmatpush2.bf16.msra.mxu0 %v872
  %940 = vmatprep.subr.bf16.mxu0 %v871
  %941 = vmatpush2.bf16.msra.mxu0 %v870
  %942 = vmatprep.subr.bf16.mxu0 %v869
  %943 = vmatpush2.bf16.msra.mxu0 %v868
  %944 = vmatprep.subr.bf16.mxu0 %v867
  %945 = vmatpush2.bf16.msra.mxu0 %v866
  %946 = vmatprep.mubr.bf16.mxu0 %v723
  %947 = vmatmul.mubr.bf16.gmra.mxu0 %v722
  %v948 = vpop.f32.mrf.mxu0
  %v949 = vadd.f32 %v596, %v948
  %v950 = vpop.f32.mrf.mxu0
  %v951 = vadd.f32 %v598, %v950
  %v952 = vpop.f32.mrf.mxu0
  %v953 = vadd.f32 %v600, %v952
  %v954 = vpop.f32.mrf.mxu0
  %v955 = vadd.f32 %v602, %v954
  %956 = vmatprep.mubr.bf16.mxu0 %v725
  %957 = vmatmul.mubr.bf16.gmra.mxu0 %v724
  %v958 = vpop.f32.mrf.mxu0
  %v959 = vadd.f32 %v606, %v958
  %v960 = vpop.f32.mrf.mxu0
  %v961 = vadd.f32 %v608, %v960
  %v962 = vpop.f32.mrf.mxu0
  %v963 = vadd.f32 %v610, %v962
  %v964 = vpop.f32.mrf.mxu0
  %v965 = vadd.f32 %v612, %v964
  %966 = vmatprep.mubr.bf16.mxu0 %v727
  %967 = vmatmul.mubr.bf16.gmra.mxu0 %v726
  %v968 = vpop.f32.mrf.mxu0
  %v969 = vadd.f32 %v616, %v968
  %v970 = vpop.f32.mrf.mxu0
  %v971 = vadd.f32 %v618, %v970
  %v972 = vpop.f32.mrf.mxu0
  %v973 = vadd.f32 %v620, %v972
  %v974 = vpop.f32.mrf.mxu0
  %v975 = vadd.f32 %v622, %v974
  %976 = vmatprep.mubr.bf16.mxu0 %v729
  %977 = vmatmul.mubr.bf16.gmra.mxu0 %v728
  %v978 = vpop.f32.mrf.mxu0
  %v979 = vadd.f32 %v626, %v978
  %v980 = vpop.f32.mrf.mxu0
  %v981 = vadd.f32 %v628, %v980
  %v982 = vpop.f32.mrf.mxu0
  %v983 = vadd.f32 %v630, %v982
  %v984 = vpop.f32.mrf.mxu0
  %v985 = vadd.f32 %v632, %v984
  %986 = vmatprep.mubr.bf16.mxu0 %v731
  %987 = vmatmul.mubr.bf16.gmra.mxu0 %v730
  %v988 = vpop.f32.mrf.mxu0
  %v989 = vadd.f32 %v636, %v988
  %v990 = vpop.f32.mrf.mxu0
  %v991 = vadd.f32 %v638, %v990
  %v992 = vpop.f32.mrf.mxu0
  %v993 = vadd.f32 %v640, %v992
  %v994 = vpop.f32.mrf.mxu0
  %v995 = vadd.f32 %v642, %v994
  %996 = vmatprep.mubr.bf16.mxu0 %v733
  %997 = vmatmul.mubr.bf16.gmra.mxu0 %v732
  %v998 = vpop.f32.mrf.mxu0
  %v999 = vadd.f32 %v646, %v998
  %v1000 = vpop.f32.mrf.mxu0
  %v1001 = vadd.f32 %v648, %v1000
  %v1002 = vpop.f32.mrf.mxu0
  %v1003 = vadd.f32 %v650, %v1002
  %v1004 = vpop.f32.mrf.mxu0
  %v1005 = vadd.f32 %v652, %v1004
  %1006 = vmatprep.mubr.bf16.mxu0 %v735
  %1007 = vmatmul.mubr.bf16.gmra.mxu0 %v734
  %v1008 = vpop.f32.mrf.mxu0
  %v1009 = vadd.f32 %v656, %v1008
  %v1010 = vpop.f32.mrf.mxu0
  %v1011 = vadd.f32 %v658, %v1010
  %v1012 = vpop.f32.mrf.mxu0
  %v1013 = vadd.f32 %v660, %v1012
  %v1014 = vpop.f32.mrf.mxu0
  %v1015 = vadd.f32 %v662, %v1014
  %1016 = vmatprep.mubr.bf16.mxu0 %v737
  %1017 = vmatmul.mubr.bf16.gmra.mxu0 %v736
  %v1018 = vpop.f32.mrf.mxu0
  %v1019 = vadd.f32 %v666, %v1018
  %v1020 = vpop.f32.mrf.mxu0
  %v1021 = vadd.f32 %v668, %v1020
  %v1022 = vpop.f32.mrf.mxu0
  %v1023 = vadd.f32 %v670, %v1022
  %v1024 = vpop.f32.mrf.mxu0
  %v1025 = vadd.f32 %v672, %v1024
  %1026 = vdwg.mxu0
  %v1027 = vld [vmem:[%s0] sm:$0xee]
  %v1028 = vld [vmem:[%s0 + $0x10] sm:$0xee]
  %v1029 = vld [vmem:[%s0 + $0x20] sm:$0xee]
  %v1030 = vld [vmem:[%s0 + $0x30] sm:$0xee]
  %v1031 = vld [vmem:[%s0 + $0x40] sm:$0xee]
  %v1032 = vld [vmem:[%s0 + $0x50] sm:$0xee]
  %v1033 = vld [vmem:[%s0 + $0x60] sm:$0xee]
  %v1034 = vld [vmem:[%s0 + $0x70] sm:$0xee]
  %v1035 = vld [vmem:[%s0 + $0xa0] sm:$0xee]
  %v1036 = vld [vmem:[%s0 + $0xb0] sm:$0xee]
  %v1037 = vld [vmem:[%s0 + $0xc0] sm:$0xee]
  %v1038 = vld [vmem:[%s0 + $0xd0] sm:$0xee]
  %v1039 = vld [vmem:[%s0 + $0xe0] sm:$0xee]
  %v1040 = vld [vmem:[%s0 + $0xf0] sm:$0xee]
  %v1041 = vld [vmem:[%s0 + $0x100] sm:$0xee]
  %v1042 = vld [vmem:[%s0 + $0x110] sm:$0xee]
  %vm1075 = vcmask 1042432
  %vm1076 = vcmask 1046532
  %vm1077 = vmor %vm1075, %vm1076
  %v1078 = vrot.slane %v1027, 5
  %v1079 = vrot.slane %v1078, 4
  %v1080 = vrot.slane %v62, 5
  %v1081 = vsel %vm1077, %v1079, %v1080
  %v1082 = vrot.slane %v1028, 5
  %v1083 = vrot.slane %v1082, 4
  %v1084 = vrot.slane %v63, 5
  %v1085 = vsel %vm1077, %v1083, %v1084
  %v1086 = vrot.slane %v1029, 5
  %v1087 = vrot.slane %v1086, 4
  %v1088 = vrot.slane %v64, 5
  %v1089 = vsel %vm1077, %v1087, %v1088
  %v1090 = vrot.slane %v1030, 5
  %v1091 = vrot.slane %v1090, 4
  %v1092 = vrot.slane %v65, 5
  %v1093 = vsel %vm1077, %v1091, %v1092
  %v1094 = vrot.slane %v1031, 5
  %v1095 = vrot.slane %v1094, 4
  %v1096 = vrot.slane %v66, 5
  %v1097 = vsel %vm1077, %v1095, %v1096
  %v1098 = vrot.slane %v1032, 5
  %v1099 = vrot.slane %v1098, 4
  %v1100 = vrot.slane %v67, 5
  %v1101 = vsel %vm1077, %v1099, %v1100
  %v1102 = vrot.slane %v1033, 5
  %v1103 = vrot.slane %v1102, 4
  %v1104 = vrot.slane %v68, 5
  %v1105 = vsel %vm1077, %v1103, %v1104
  %v1106 = vrot.slane %v1034, 5
  %v1107 = vrot.slane %v1106, 4
  %v1108 = vrot.slane %v69, 5
  %v1109 = vsel %vm1077, %v1107, %v1108
  %v1110 = vrot.slane %v1035, 5
  %v1111 = vrot.slane %v1110, 4
  %v1112 = vrot.slane %v70, 5
  %v1113 = vsel %vm1077, %v1111, %v1112
  %v1114 = vrot.slane %v1036, 5
  %v1115 = vrot.slane %v1114, 4
  %v1116 = vrot.slane %v71, 5
  %v1117 = vsel %vm1077, %v1115, %v1116
  %v1118 = vrot.slane %v1037, 5
  %v1119 = vrot.slane %v1118, 4
  %v1120 = vrot.slane %v72, 5
  %v1121 = vsel %vm1077, %v1119, %v1120
  %v1122 = vrot.slane %v1038, 5
  %v1123 = vrot.slane %v1122, 4
  %v1124 = vrot.slane %v73, 5
  %v1125 = vsel %vm1077, %v1123, %v1124
  %v1126 = vrot.slane %v1039, 5
  %v1127 = vrot.slane %v1126, 4
  %v1128 = vrot.slane %v74, 5
  %v1129 = vsel %vm1077, %v1127, %v1128
  %v1130 = vrot.slane %v1040, 5
  %v1131 = vrot.slane %v1130, 4
  %v1132 = vrot.slane %v75, 5
  %v1133 = vsel %vm1077, %v1131, %v1132
  %v1134 = vrot.slane %v1041, 5
  %v1135 = vrot.slane %v1134, 4
  %v1136 = vrot.slane %v76, 5
  %v1137 = vsel %vm1077, %v1135, %v1136
  %v1138 = vrot.slane %v1042, 5
  %v1139 = vrot.slane %v1138, 4
  %v1140 = vrot.slane %v77, 5
  %v1141 = vsel %vm1077, %v1139, %v1140
  %v1142 = vld [vmem:[%s1 + $0x200] sm:$0xff]
  %v1143 = vld [vmem:[%s1 + $0x208] sm:$0xff]
  %v1144 = vld [vmem:[%s1 + $0x210] sm:$0xff]
  %v1145 = vld [vmem:[%s1 + $0x218] sm:$0xff]
  %v1146 = vld [vmem:[%s1 + $0x220] sm:$0xff]
  %v1147 = vld [vmem:[%s1 + $0x228] sm:$0xff]
  %v1148 = vld [vmem:[%s1 + $0x230] sm:$0xff]
  %v1149 = vld [vmem:[%s1 + $0x238] sm:$0xff]
  %v1150 = vld [vmem:[%s1 + $0x240] sm:$0xff]
  %v1151 = vld [vmem:[%s1 + $0x248] sm:$0xff]
  %v1152 = vld [vmem:[%s1 + $0x250] sm:$0xff]
  %v1153 = vld [vmem:[%s1 + $0x258] sm:$0xff]
  %v1154 = vld [vmem:[%s1 + $0x260] sm:$0xff]
  %v1155 = vld [vmem:[%s1 + $0x268] sm:$0xff]
  %v1156 = vld [vmem:[%s1 + $0x270] sm:$0xff]
  %v1157 = vld [vmem:[%s1 + $0x278] sm:$0xff]
  %v1158 = vld [vmem:[%s1 + $0x280] sm:$0xff]
  %v1159 = vld [vmem:[%s1 + $0x288] sm:$0xff]
  %v1160 = vld [vmem:[%s1 + $0x290] sm:$0xff]
  %v1161 = vld [vmem:[%s1 + $0x298] sm:$0xff]
  %v1162 = vld [vmem:[%s1 + $0x2a0] sm:$0xff]
  %v1163 = vld [vmem:[%s1 + $0x2a8] sm:$0xff]
  %v1164 = vld [vmem:[%s1 + $0x2b0] sm:$0xff]
  %v1165 = vld [vmem:[%s1 + $0x2b8] sm:$0xff]
  %v1166 = vld [vmem:[%s1 + $0x2c0] sm:$0xff]
  %v1167 = vld [vmem:[%s1 + $0x2c8] sm:$0xff]
  %v1168 = vld [vmem:[%s1 + $0x2d0] sm:$0xff]
  %v1169 = vld [vmem:[%s1 + $0x2d8] sm:$0xff]
  %v1170 = vld [vmem:[%s1 + $0x2e0] sm:$0xff]
  %v1171 = vld [vmem:[%s1 + $0x2e8] sm:$0xff]
  %v1172 = vld [vmem:[%s1 + $0x2f0] sm:$0xff]
  %v1173 = vld [vmem:[%s1 + $0x2f8] sm:$0xff]
  %v1174 = vunpack.c.l.b16 %v1081
  %v1175 = vunpack.c.h.b16 %v1081
  %v1176 = vunpack.c.l.b16 %v1085
  %v1177 = vunpack.c.h.b16 %v1085
  %v1178 = vunpack.c.l.b16 %v1089
  %v1179 = vunpack.c.h.b16 %v1089
  %v1180 = vunpack.c.l.b16 %v1093
  %v1181 = vunpack.c.h.b16 %v1093
  %v1182 = vunpack.c.l.b16 %v1097
  %v1183 = vunpack.c.h.b16 %v1097
  %v1184 = vunpack.c.l.b16 %v1101
  %v1185 = vunpack.c.h.b16 %v1101
  %v1186 = vunpack.c.l.b16 %v1105
  %v1187 = vunpack.c.h.b16 %v1105
  %v1188 = vunpack.c.l.b16 %v1109
  %v1189 = vunpack.c.h.b16 %v1109
  %v1190 = vunpack.c.l.b16 %v1113
  %v1191 = vunpack.c.h.b16 %v1113
  %v1192 = vunpack.c.l.b16 %v1117
  %v1193 = vunpack.c.h.b16 %v1117
  %v1194 = vunpack.c.l.b16 %v1121
  %v1195 = vunpack.c.h.b16 %v1121
  %v1196 = vunpack.c.l.b16 %v1125
  %v1197 = vunpack.c.h.b16 %v1125
  %v1198 = vunpack.c.l.b16 %v1129
  %v1199 = vunpack.c.h.b16 %v1129
  %v1200 = vunpack.c.l.b16 %v1133
  %v1201 = vunpack.c.h.b16 %v1133
  %v1202 = vunpack.c.l.b16 %v1137
  %v1203 = vunpack.c.h.b16 %v1137
  %v1204 = vunpack.c.l.b16 %v1141
  %v1205 = vunpack.c.h.b16 %v1141
  %v1206 = vpack.c.b16 %v1176, %v1174
  %v1207 = vpack.c.b16 %v1177, %v1175
  %v1208 = vpack.c.b16 %v1180, %v1178
  %v1209 = vpack.c.b16 %v1181, %v1179
  %v1210 = vpack.c.b16 %v1184, %v1182
  %v1211 = vpack.c.b16 %v1185, %v1183
  %v1212 = vpack.c.b16 %v1188, %v1186
  %v1213 = vpack.c.b16 %v1189, %v1187
  %v1214 = vpack.c.b16 %v1192, %v1190
  %v1215 = vpack.c.b16 %v1193, %v1191
  %v1216 = vpack.c.b16 %v1196, %v1194
  %v1217 = vpack.c.b16 %v1197, %v1195
  %v1218 = vpack.c.b16 %v1200, %v1198
  %v1219 = vpack.c.b16 %v1201, %v1199
  %v1220 = vpack.c.b16 %v1204, %v1202
  %v1221 = vpack.c.b16 %v1205, %v1203
  %v1270 = vunpack.c.l.b16 %v1142
  %v1271 = vunpack.c.h.b16 %v1142
  %v1272 = vunpack.c.l.b16 %v1143
  %v1273 = vunpack.c.h.b16 %v1143
  %v1274 = vunpack.c.l.b16 %v1144
  %v1275 = vunpack.c.h.b16 %v1144
  %v1276 = vunpack.c.l.b16 %v1145
  %v1277 = vunpack.c.h.b16 %v1145
  %v1278 = vunpack.c.l.b16 %v1146
  %v1279 = vunpack.c.h.b16 %v1146
  %v1280 = vunpack.c.l.b16 %v1147
  %v1281 = vunpack.c.h.b16 %v1147
  %v1282 = vunpack.c.l.b16 %v1148
  %v1283 = vunpack.c.h.b16 %v1148
  %v1284 = vunpack.c.l.b16 %v1149
  %v1285 = vunpack.c.h.b16 %v1149
  %v1286 = vunpack.c.l.b16 %v1150
  %v1287 = vunpack.c.h.b16 %v1150
  %v1288 = vunpack.c.l.b16 %v1151
  %v1289 = vunpack.c.h.b16 %v1151
  %v1290 = vunpack.c.l.b16 %v1152
  %v1291 = vunpack.c.h.b16 %v1152
  %v1292 = vunpack.c.l.b16 %v1153
  %v1293 = vunpack.c.h.b16 %v1153
  %v1294 = vunpack.c.l.b16 %v1154
  %v1295 = vunpack.c.h.b16 %v1154
  %v1296 = vunpack.c.l.b16 %v1155
  %v1297 = vunpack.c.h.b16 %v1155
  %v1298 = vunpack.c.l.b16 %v1156
  %v1299 = vunpack.c.h.b16 %v1156
  %v1300 = vunpack.c.l.b16 %v1157
  %v1301 = vunpack.c.h.b16 %v1157
  %v1302 = vunpack.c.l.b16 %v1158
  %v1303 = vunpack.c.h.b16 %v1158
  %v1304 = vunpack.c.l.b16 %v1159
  %v1305 = vunpack.c.h.b16 %v1159
  %v1306 = vunpack.c.l.b16 %v1160
  %v1307 = vunpack.c.h.b16 %v1160
  %v1308 = vunpack.c.l.b16 %v1161
  %v1309 = vunpack.c.h.b16 %v1161
  %v1310 = vunpack.c.l.b16 %v1162
  %v1311 = vunpack.c.h.b16 %v1162
  %v1312 = vunpack.c.l.b16 %v1163
  %v1313 = vunpack.c.h.b16 %v1163
  %v1314 = vunpack.c.l.b16 %v1164
  %v1315 = vunpack.c.h.b16 %v1164
  %v1316 = vunpack.c.l.b16 %v1165
  %v1317 = vunpack.c.h.b16 %v1165
  %v1318 = vunpack.c.l.b16 %v1166
  %v1319 = vunpack.c.h.b16 %v1166
  %v1320 = vunpack.c.l.b16 %v1167
  %v1321 = vunpack.c.h.b16 %v1167
  %v1322 = vunpack.c.l.b16 %v1168
  %v1323 = vunpack.c.h.b16 %v1168
  %v1324 = vunpack.c.l.b16 %v1169
  %v1325 = vunpack.c.h.b16 %v1169
  %v1326 = vunpack.c.l.b16 %v1170
  %v1327 = vunpack.c.h.b16 %v1170
  %v1328 = vunpack.c.l.b16 %v1171
  %v1329 = vunpack.c.h.b16 %v1171
  %v1330 = vunpack.c.l.b16 %v1172
  %v1331 = vunpack.c.h.b16 %v1172
  %v1332 = vunpack.c.l.b16 %v1173
  %v1333 = vunpack.c.h.b16 %v1173
  %v1334 = vpack.c.b16 %v1272, %v1270
  %v1335 = vpack.c.b16 %v1273, %v1271
  %v1336 = vpack.c.b16 %v1276, %v1274
  %v1337 = vpack.c.b16 %v1277, %v1275
  %v1338 = vpack.c.b16 %v1280, %v1278
  %v1339 = vpack.c.b16 %v1281, %v1279
  %v1340 = vpack.c.b16 %v1284, %v1282
  %v1341 = vpack.c.b16 %v1285, %v1283
  %v1342 = vpack.c.b16 %v1288, %v1286
  %v1343 = vpack.c.b16 %v1289, %v1287
  %v1344 = vpack.c.b16 %v1292, %v1290
  %v1345 = vpack.c.b16 %v1293, %v1291
  %v1346 = vpack.c.b16 %v1296, %v1294
  %v1347 = vpack.c.b16 %v1297, %v1295
  %v1348 = vpack.c.b16 %v1300, %v1298
  %v1349 = vpack.c.b16 %v1301, %v1299
  %v1350 = vpack.c.b16 %v1304, %v1302
  %v1351 = vpack.c.b16 %v1305, %v1303
  %v1352 = vpack.c.b16 %v1308, %v1306
  %v1353 = vpack.c.b16 %v1309, %v1307
  %v1354 = vpack.c.b16 %v1312, %v1310
  %v1355 = vpack.c.b16 %v1313, %v1311
  %v1356 = vpack.c.b16 %v1316, %v1314
  %v1357 = vpack.c.b16 %v1317, %v1315
  %v1358 = vpack.c.b16 %v1320, %v1318
  %v1359 = vpack.c.b16 %v1321, %v1319
  %v1360 = vpack.c.b16 %v1324, %v1322
  %v1361 = vpack.c.b16 %v1325, %v1323
  %v1362 = vpack.c.b16 %v1328, %v1326
  %v1363 = vpack.c.b16 %v1329, %v1327
  %v1364 = vpack.c.b16 %v1332, %v1330
  %v1365 = vpack.c.b16 %v1333, %v1331
  %1398 = vmatprep.subr.bf16.mxu0 %v1349
  %1399 = vmatpush1.bf16.msra.mxu0 %v1348
  %1400 = vmatprep.subr.bf16.mxu0 %v1347
  %1401 = vmatpush1.bf16.msra.mxu0 %v1346
  %1402 = vmatprep.subr.bf16.mxu0 %v1345
  %1403 = vmatpush1.bf16.msra.mxu0 %v1344
  %1404 = vmatprep.subr.bf16.mxu0 %v1343
  %1405 = vmatpush1.bf16.msra.mxu0 %v1342
  %1406 = vmatprep.subr.bf16.mxu0 %v1341
  %1407 = vmatpush1.bf16.msra.mxu0 %v1340
  %1408 = vmatprep.subr.bf16.mxu0 %v1339
  %1409 = vmatpush1.bf16.msra.mxu0 %v1338
  %1410 = vmatprep.subr.bf16.mxu0 %v1337
  %1411 = vmatpush1.bf16.msra.mxu0 %v1336
  %1412 = vmatprep.subr.bf16.mxu0 %v1335
  %1413 = vmatpush1.bf16.msra.mxu0 %v1334
  %1414 = vmatprep.subr.bf16.mxu0 %v1365
  %1415 = vmatpush2.bf16.msra.mxu0 %v1364
  %1416 = vmatprep.subr.bf16.mxu0 %v1363
  %1417 = vmatpush2.bf16.msra.mxu0 %v1362
  %1418 = vmatprep.subr.bf16.mxu0 %v1361
  %1419 = vmatpush2.bf16.msra.mxu0 %v1360
  %1420 = vmatprep.subr.bf16.mxu0 %v1359
  %1421 = vmatpush2.bf16.msra.mxu0 %v1358
  %1422 = vmatprep.subr.bf16.mxu0 %v1357
  %1423 = vmatpush2.bf16.msra.mxu0 %v1356
  %1424 = vmatprep.subr.bf16.mxu0 %v1355
  %1425 = vmatpush2.bf16.msra.mxu0 %v1354
  %1426 = vmatprep.subr.bf16.mxu0 %v1353
  %1427 = vmatpush2.bf16.msra.mxu0 %v1352
  %1428 = vmatprep.subr.bf16.mxu0 %v1351
  %1429 = vmatpush2.bf16.msra.mxu0 %v1350
  %1430 = vmatprep.mubr.bf16.mxu0 %v1207
  %1431 = vmatmul.mubr.bf16.gmra.mxu0 %v1206
  %v1432 = vpop.f32.mrf.mxu0
  %v1433 = vadd.f32 0.0, %v1432
  %v1434 = vpop.f32.mrf.mxu0
  %v1435 = vadd.f32 0.0, %v1434
  %v1436 = vpop.f32.mrf.mxu0
  %v1437 = vadd.f32 0.0, %v1436
  %v1438 = vpop.f32.mrf.mxu0
  %v1439 = vadd.f32 0.0, %v1438
  %1440 = vmatprep.mubr.bf16.mxu0 %v1209
  %1441 = vmatmul.mubr.bf16.gmra.mxu0 %v1208
  %v1442 = vpop.f32.mrf.mxu0
  %v1443 = vadd.f32 0.0, %v1442
  %v1444 = vpop.f32.mrf.mxu0
  %v1445 = vadd.f32 0.0, %v1444
  %v1446 = vpop.f32.mrf.mxu0
  %v1447 = vadd.f32 0.0, %v1446
  %v1448 = vpop.f32.mrf.mxu0
  %v1449 = vadd.f32 0.0, %v1448
  %1450 = vmatprep.mubr.bf16.mxu0 %v1211
  %1451 = vmatmul.mubr.bf16.gmra.mxu0 %v1210
  %v1452 = vpop.f32.mrf.mxu0
  %v1453 = vadd.f32 0.0, %v1452
  %v1454 = vpop.f32.mrf.mxu0
  %v1455 = vadd.f32 0.0, %v1454
  %v1456 = vpop.f32.mrf.mxu0
  %v1457 = vadd.f32 0.0, %v1456
  %v1458 = vpop.f32.mrf.mxu0
  %v1459 = vadd.f32 0.0, %v1458
  %1460 = vmatprep.mubr.bf16.mxu0 %v1213
  %1461 = vmatmul.mubr.bf16.gmra.mxu0 %v1212
  %v1462 = vpop.f32.mrf.mxu0
  %v1463 = vadd.f32 0.0, %v1462
  %v1464 = vpop.f32.mrf.mxu0
  %v1465 = vadd.f32 0.0, %v1464
  %v1466 = vpop.f32.mrf.mxu0
  %v1467 = vadd.f32 0.0, %v1466
  %v1468 = vpop.f32.mrf.mxu0
  %v1469 = vadd.f32 0.0, %v1468
  %1470 = vmatprep.mubr.bf16.mxu0 %v1215
  %1471 = vmatmul.mubr.bf16.gmra.mxu0 %v1214
  %v1472 = vpop.f32.mrf.mxu0
  %v1473 = vadd.f32 0.0, %v1472
  %v1474 = vpop.f32.mrf.mxu0
  %v1475 = vadd.f32 0.0, %v1474
  %v1476 = vpop.f32.mrf.mxu0
  %v1477 = vadd.f32 0.0, %v1476
  %v1478 = vpop.f32.mrf.mxu0
  %v1479 = vadd.f32 0.0, %v1478
  %1480 = vmatprep.mubr.bf16.mxu0 %v1217
  %1481 = vmatmul.mubr.bf16.gmra.mxu0 %v1216
  %v1482 = vpop.f32.mrf.mxu0
  %v1483 = vadd.f32 0.0, %v1482
  %v1484 = vpop.f32.mrf.mxu0
  %v1485 = vadd.f32 0.0, %v1484
  %v1486 = vpop.f32.mrf.mxu0
  %v1487 = vadd.f32 0.0, %v1486
  %v1488 = vpop.f32.mrf.mxu0
  %v1489 = vadd.f32 0.0, %v1488
  %1490 = vmatprep.mubr.bf16.mxu0 %v1219
  %1491 = vmatmul.mubr.bf16.gmra.mxu0 %v1218
  %v1492 = vpop.f32.mrf.mxu0
  %v1493 = vadd.f32 0.0, %v1492
  %v1494 = vpop.f32.mrf.mxu0
  %v1495 = vadd.f32 0.0, %v1494
  %v1496 = vpop.f32.mrf.mxu0
  %v1497 = vadd.f32 0.0, %v1496
  %v1498 = vpop.f32.mrf.mxu0
  %v1499 = vadd.f32 0.0, %v1498
  %1500 = vmatprep.mubr.bf16.mxu0 %v1221
  %1501 = vmatmul.mubr.bf16.gmra.mxu0 %v1220
  %v1502 = vpop.f32.mrf.mxu0
  %v1503 = vadd.f32 0.0, %v1502
  %v1504 = vpop.f32.mrf.mxu0
  %v1505 = vadd.f32 0.0, %v1504
  %v1506 = vpop.f32.mrf.mxu0
  %v1507 = vadd.f32 0.0, %v1506
  %v1508 = vpop.f32.mrf.mxu0
  %v1509 = vadd.f32 0.0, %v1508
  %1510 = vdwg.mxu0
  %v1511 = vadd.f32 %v949, %v1433
  %v1512 = vadd.f32 %v951, %v1435
  %v1513 = vadd.f32 %v953, %v1437
  %v1514 = vadd.f32 %v955, %v1439
  %v1515 = vadd.f32 %v959, %v1443
  %v1516 = vadd.f32 %v961, %v1445
  %v1517 = vadd.f32 %v963, %v1447
  %v1518 = vadd.f32 %v965, %v1449
  %v1519 = vadd.f32 %v969, %v1453
  %v1520 = vadd.f32 %v971, %v1455
  %v1521 = vadd.f32 %v973, %v1457
  %v1522 = vadd.f32 %v975, %v1459
  %v1523 = vadd.f32 %v979, %v1463
  %v1524 = vadd.f32 %v981, %v1465
  %v1525 = vadd.f32 %v983, %v1467
  %v1526 = vadd.f32 %v985, %v1469
  %v1527 = vadd.f32 %v989, %v1473
  %v1528 = vadd.f32 %v991, %v1475
  %v1529 = vadd.f32 %v993, %v1477
  %v1530 = vadd.f32 %v995, %v1479
  %v1531 = vadd.f32 %v999, %v1483
  %v1532 = vadd.f32 %v1001, %v1485
  %v1533 = vadd.f32 %v1003, %v1487
  %v1534 = vadd.f32 %v1005, %v1489
  %v1535 = vadd.f32 %v1009, %v1493
  %v1536 = vadd.f32 %v1011, %v1495
  %v1537 = vadd.f32 %v1013, %v1497
  %v1538 = vadd.f32 %v1015, %v1499
  %v1539 = vadd.f32 %v1019, %v1503
  %v1540 = vadd.f32 %v1021, %v1505
  %v1541 = vadd.f32 %v1023, %v1507
  %v1542 = vadd.f32 %v1025, %v1509
  %s1543 = scalar_lea.vmem %s0, 16
  %v1544 = vld [vmem:[%s1543] sm:$0xff]
  %v1545 = vld [vmem:[%s1543 + $0x10] sm:$0xff]
  %v1546 = vld [vmem:[%s1543 + $0x20] sm:$0xff]
  %v1547 = vld [vmem:[%s1543 + $0x30] sm:$0xff]
  %v1548 = vld [vmem:[%s1543 + $0x40] sm:$0xff]
  %v1549 = vld [vmem:[%s1543 + $0x50] sm:$0xff]
  %v1550 = vld [vmem:[%s1543 + $0x60] sm:$0xff]
  %v1551 = vld [vmem:[%s1543 + $0x70] sm:$0xff]
  %v1552 = vld [vmem:[%s1543 + $0xa0] sm:$0xff]
  %v1553 = vld [vmem:[%s1543 + $0xb0] sm:$0xff]
  %v1554 = vld [vmem:[%s1543 + $0xc0] sm:$0xff]
  %v1555 = vld [vmem:[%s1543 + $0xd0] sm:$0xff]
  %v1556 = vld [vmem:[%s1543 + $0xe0] sm:$0xff]
  %v1557 = vld [vmem:[%s1543 + $0xf0] sm:$0xff]
  %v1558 = vld [vmem:[%s1543 + $0x100] sm:$0xff]
  %v1559 = vld [vmem:[%s1543 + $0x110] sm:$0xff]
  %v1560 = vld [vmem:[%s1 + $0x300] sm:$0xff]
  %v1561 = vld [vmem:[%s1 + $0x308] sm:$0xff]
  %v1562 = vld [vmem:[%s1 + $0x310] sm:$0xff]
  %v1563 = vld [vmem:[%s1 + $0x318] sm:$0xff]
  %v1564 = vld [vmem:[%s1 + $0x320] sm:$0xff]
  %v1565 = vld [vmem:[%s1 + $0x328] sm:$0xff]
  %v1566 = vld [vmem:[%s1 + $0x330] sm:$0xff]
  %v1567 = vld [vmem:[%s1 + $0x338] sm:$0xff]
  %v1568 = vld [vmem:[%s1 + $0x340] sm:$0xff]
  %v1569 = vld [vmem:[%s1 + $0x348] sm:$0xff]
  %v1570 = vld [vmem:[%s1 + $0x350] sm:$0xff]
  %v1571 = vld [vmem:[%s1 + $0x358] sm:$0xff]
  %v1572 = vld [vmem:[%s1 + $0x360] sm:$0xff]
  %v1573 = vld [vmem:[%s1 + $0x368] sm:$0xff]
  %v1574 = vld [vmem:[%s1 + $0x370] sm:$0xff]
  %v1575 = vld [vmem:[%s1 + $0x378] sm:$0xff]
  %v1576 = vld [vmem:[%s1 + $0x380] sm:$0xff]
  %v1577 = vld [vmem:[%s1 + $0x388] sm:$0xff]
  %v1578 = vld [vmem:[%s1 + $0x390] sm:$0xff]
  %v1579 = vld [vmem:[%s1 + $0x398] sm:$0xff]
  %v1580 = vld [vmem:[%s1 + $0x3a0] sm:$0xff]
  %v1581 = vld [vmem:[%s1 + $0x3a8] sm:$0xff]
  %v1582 = vld [vmem:[%s1 + $0x3b0] sm:$0xff]
  %v1583 = vld [vmem:[%s1 + $0x3b8] sm:$0xff]
  %v1584 = vld [vmem:[%s1 + $0x3c0] sm:$0xff]
  %v1585 = vld [vmem:[%s1 + $0x3c8] sm:$0xff]
  %v1586 = vld [vmem:[%s1 + $0x3d0] sm:$0xff]
  %v1587 = vld [vmem:[%s1 + $0x3d8] sm:$0xff]
  %v1588 = vld [vmem:[%s1 + $0x3e0] sm:$0xff]
  %v1589 = vld [vmem:[%s1 + $0x3e8] sm:$0xff]
  %v1590 = vld [vmem:[%s1 + $0x3f0] sm:$0xff]
  %v1591 = vld [vmem:[%s1 + $0x3f8] sm:$0xff]
  %v1608 = vunpack.c.l.b16 %v1544
  %v1609 = vunpack.c.h.b16 %v1544
  %v1610 = vunpack.c.l.b16 %v1545
  %v1611 = vunpack.c.h.b16 %v1545
  %v1612 = vunpack.c.l.b16 %v1546
  %v1613 = vunpack.c.h.b16 %v1546
  %v1614 = vunpack.c.l.b16 %v1547
  %v1615 = vunpack.c.h.b16 %v1547
  %v1616 = vunpack.c.l.b16 %v1548
  %v1617 = vunpack.c.h.b16 %v1548
  %v1618 = vunpack.c.l.b16 %v1549
  %v1619 = vunpack.c.h.b16 %v1549
  %v1620 = vunpack.c.l.b16 %v1550
  %v1621 = vunpack.c.h.b16 %v1550
  %v1622 = vunpack.c.l.b16 %v1551
  %v1623 = vunpack.c.h.b16 %v1551
  %v1624 = vunpack.c.l.b16 %v1552
  %v1625 = vunpack.c.h.b16 %v1552
  %v1626 = vunpack.c.l.b16 %v1553
  %v1627 = vunpack.c.h.b16 %v1553
  %v1628 = vunpack.c.l.b16 %v1554
  %v1629 = vunpack.c.h.b16 %v1554
  %v1630 = vunpack.c.l.b16 %v1555
  %v1631 = vunpack.c.h.b16 %v1555
  %v1632 = vunpack.c.l.b16 %v1556
  %v1633 = vunpack.c.h.b16 %v1556
  %v1634 = vunpack.c.l.b16 %v1557
  %v1635 = vunpack.c.h.b16 %v1557
  %v1636 = vunpack.c.l.b16 %v1558
  %v1637 = vunpack.c.h.b16 %v1558
  %v1638 = vunpack.c.l.b16 %v1559
  %v1639 = vunpack.c.h.b16 %v1559
  %v1640 = vpack.c.b16 %v1610, %v1608
  %v1641 = vpack.c.b16 %v1611, %v1609
  %v1642 = vpack.c.b16 %v1614, %v1612
  %v1643 = vpack.c.b16 %v1615, %v1613
  %v1644 = vpack.c.b16 %v1618, %v1616
  %v1645 = vpack.c.b16 %v1619, %v1617
  %v1646 = vpack.c.b16 %v1622, %v1620
  %v1647 = vpack.c.b16 %v1623, %v1621
  %v1648 = vpack.c.b16 %v1626, %v1624
  %v1649 = vpack.c.b16 %v1627, %v1625
  %v1650 = vpack.c.b16 %v1630, %v1628
  %v1651 = vpack.c.b16 %v1631, %v1629
  %v1652 = vpack.c.b16 %v1634, %v1632
  %v1653 = vpack.c.b16 %v1635, %v1633
  %v1654 = vpack.c.b16 %v1638, %v1636
  %v1655 = vpack.c.b16 %v1639, %v1637
  %v1704 = vunpack.c.l.b16 %v1560
  %v1705 = vunpack.c.h.b16 %v1560
  %v1706 = vunpack.c.l.b16 %v1561
  %v1707 = vunpack.c.h.b16 %v1561
  %v1708 = vunpack.c.l.b16 %v1562
  %v1709 = vunpack.c.h.b16 %v1562
  %v1710 = vunpack.c.l.b16 %v1563
  %v1711 = vunpack.c.h.b16 %v1563
  %v1712 = vunpack.c.l.b16 %v1564
  %v1713 = vunpack.c.h.b16 %v1564
  %v1714 = vunpack.c.l.b16 %v1565
  %v1715 = vunpack.c.h.b16 %v1565
  %v1716 = vunpack.c.l.b16 %v1566
  %v1717 = vunpack.c.h.b16 %v1566
  %v1718 = vunpack.c.l.b16 %v1567
  %v1719 = vunpack.c.h.b16 %v1567
  %v1720 = vunpack.c.l.b16 %v1568
  %v1721 = vunpack.c.h.b16 %v1568
  %v1722 = vunpack.c.l.b16 %v1569
  %v1723 = vunpack.c.h.b16 %v1569
  %v1724 = vunpack.c.l.b16 %v1570
  %v1725 = vunpack.c.h.b16 %v1570
  %v1726 = vunpack.c.l.b16 %v1571
  %v1727 = vunpack.c.h.b16 %v1571
  %v1728 = vunpack.c.l.b16 %v1572
  %v1729 = vunpack.c.h.b16 %v1572
  %v1730 = vunpack.c.l.b16 %v1573
  %v1731 = vunpack.c.h.b16 %v1573
  %v1732 = vunpack.c.l.b16 %v1574
  %v1733 = vunpack.c.h.b16 %v1574
  %v1734 = vunpack.c.l.b16 %v1575
  %v1735 = vunpack.c.h.b16 %v1575
  %v1736 = vunpack.c.l.b16 %v1576
  %v1737 = vunpack.c.h.b16 %v1576
  %v1738 = vunpack.c.l.b16 %v1577
  %v1739 = vunpack.c.h.b16 %v1577
  %v1740 = vunpack.c.l.b16 %v1578
  %v1741 = vunpack.c.h.b16 %v1578
  %v1742 = vunpack.c.l.b16 %v1579
  %v1743 = vunpack.c.h.b16 %v1579
  %v1744 = vunpack.c.l.b16 %v1580
  %v1745 = vunpack.c.h.b16 %v1580
  %v1746 = vunpack.c.l.b16 %v1581
  %v1747 = vunpack.c.h.b16 %v1581
  %v1748 = vunpack.c.l.b16 %v1582
  %v1749 = vunpack.c.h.b16 %v1582
  %v1750 = vunpack.c.l.b16 %v1583
  %v1751 = vunpack.c.h.b16 %v1583
  %v1752 = vunpack.c.l.b16 %v1584
  %v1753 = vunpack.c.h.b16 %v1584
  %v1754 = vunpack.c.l.b16 %v1585
  %v1755 = vunpack.c.h.b16 %v1585
  %v1756 = vunpack.c.l.b16 %v1586
  %v1757 = vunpack.c.h.b16 %v1586
  %v1758 = vunpack.c.l.b16 %v1587
  %v1759 = vunpack.c.h.b16 %v1587
  %v1760 = vunpack.c.l.b16 %v1588
  %v1761 = vunpack.c.h.b16 %v1588
  %v1762 = vunpack.c.l.b16 %v1589
  %v1763 = vunpack.c.h.b16 %v1589
  %v1764 = vunpack.c.l.b16 %v1590
  %v1765 = vunpack.c.h.b16 %v1590
  %v1766 = vunpack.c.l.b16 %v1591
  %v1767 = vunpack.c.h.b16 %v1591
  %v1768 = vpack.c.b16 %v1706, %v1704
  %v1769 = vpack.c.b16 %v1707, %v1705
  %v1770 = vpack.c.b16 %v1710, %v1708
  %v1771 = vpack.c.b16 %v1711, %v1709
  %v1772 = vpack.c.b16 %v1714, %v1712
  %v1773 = vpack.c.b16 %v1715, %v1713
  %v1774 = vpack.c.b16 %v1718, %v1716
  %v1775 = vpack.c.b16 %v1719, %v1717
  %v1776 = vpack.c.b16 %v1722, %v1720
  %v1777 = vpack.c.b16 %v1723, %v1721
  %v1778 = vpack.c.b16 %v1726, %v1724
  %v1779 = vpack.c.b16 %v1727, %v1725
  %v1780 = vpack.c.b16 %v1730, %v1728
  %v1781 = vpack.c.b16 %v1731, %v1729
  %v1782 = vpack.c.b16 %v1734, %v1732
  %v1783 = vpack.c.b16 %v1735, %v1733
  %v1784 = vpack.c.b16 %v1738, %v1736
  %v1785 = vpack.c.b16 %v1739, %v1737
  %v1786 = vpack.c.b16 %v1742, %v1740
  %v1787 = vpack.c.b16 %v1743, %v1741
  %v1788 = vpack.c.b16 %v1746, %v1744
  %v1789 = vpack.c.b16 %v1747, %v1745
  %v1790 = vpack.c.b16 %v1750, %v1748
  %v1791 = vpack.c.b16 %v1751, %v1749
  %v1792 = vpack.c.b16 %v1754, %v1752
  %v1793 = vpack.c.b16 %v1755, %v1753
  %v1794 = vpack.c.b16 %v1758, %v1756
  %v1795 = vpack.c.b16 %v1759, %v1757
  %v1796 = vpack.c.b16 %v1762, %v1760
  %v1797 = vpack.c.b16 %v1763, %v1761
  %v1798 = vpack.c.b16 %v1766, %v1764
  %v1799 = vpack.c.b16 %v1767, %v1765
  %1832 = vmatprep.subr.bf16.mxu0 %v1783
  %1833 = vmatpush1.bf16.msra.mxu0 %v1782
  %1834 = vmatprep.subr.bf16.mxu0 %v1781
  %1835 = vmatpush1.bf16.msra.mxu0 %v1780
  %1836 = vmatprep.subr.bf16.mxu0 %v1779
  %1837 = vmatpush1.bf16.msra.mxu0 %v1778
  %1838 = vmatprep.subr.bf16.mxu0 %v1777
  %1839 = vmatpush1.bf16.msra.mxu0 %v1776
  %1840 = vmatprep.subr.bf16.mxu0 %v1775
  %1841 = vmatpush1.bf16.msra.mxu0 %v1774
  %1842 = vmatprep.subr.bf16.mxu0 %v1773
  %1843 = vmatpush1.bf16.msra.mxu0 %v1772
  %1844 = vmatprep.subr.bf16.mxu0 %v1771
  %1845 = vmatpush1.bf16.msra.mxu0 %v1770
  %1846 = vmatprep.subr.bf16.mxu0 %v1769
  %1847 = vmatpush1.bf16.msra.mxu0 %v1768
  %1848 = vmatprep.subr.bf16.mxu0 %v1799
  %1849 = vmatpush2.bf16.msra.mxu0 %v1798
  %1850 = vmatprep.subr.bf16.mxu0 %v1797
  %1851 = vmatpush2.bf16.msra.mxu0 %v1796
  %1852 = vmatprep.subr.bf16.mxu0 %v1795
  %1853 = vmatpush2.bf16.msra.mxu0 %v1794
  %1854 = vmatprep.subr.bf16.mxu0 %v1793
  %1855 = vmatpush2.bf16.msra.mxu0 %v1792
  %1856 = vmatprep.subr.bf16.mxu0 %v1791
  %1857 = vmatpush2.bf16.msra.mxu0 %v1790
  %1858 = vmatprep.subr.bf16.mxu0 %v1789
  %1859 = vmatpush2.bf16.msra.mxu0 %v1788
  %1860 = vmatprep.subr.bf16.mxu0 %v1787
  %1861 = vmatpush2.bf16.msra.mxu0 %v1786
  %1862 = vmatprep.subr.bf16.mxu0 %v1785
  %1863 = vmatpush2.bf16.msra.mxu0 %v1784
  %1864 = vmatprep.mubr.bf16.mxu0 %v1641
  %1865 = vmatmul.mubr.bf16.gmra.mxu0 %v1640
  %v1866 = vpop.f32.mrf.mxu0
  %v1867 = vadd.f32 0.0, %v1866
  %v1868 = vpop.f32.mrf.mxu0
  %v1869 = vadd.f32 0.0, %v1868
  %v1870 = vpop.f32.mrf.mxu0
  %v1871 = vadd.f32 0.0, %v1870
  %v1872 = vpop.f32.mrf.mxu0
  %v1873 = vadd.f32 0.0, %v1872
  %1874 = vmatprep.mubr.bf16.mxu0 %v1643
  %1875 = vmatmul.mubr.bf16.gmra.mxu0 %v1642
  %v1876 = vpop.f32.mrf.mxu0
  %v1877 = vadd.f32 0.0, %v1876
  %v1878 = vpop.f32.mrf.mxu0
  %v1879 = vadd.f32 0.0, %v1878
  %v1880 = vpop.f32.mrf.mxu0
  %v1881 = vadd.f32 0.0, %v1880
  %v1882 = vpop.f32.mrf.mxu0
  %v1883 = vadd.f32 0.0, %v1882
  %1884 = vmatprep.mubr.bf16.mxu0 %v1645
  %1885 = vmatmul.mubr.bf16.gmra.mxu0 %v1644
  %v1886 = vpop.f32.mrf.mxu0
  %v1887 = vadd.f32 0.0, %v1886
  %v1888 = vpop.f32.mrf.mxu0
  %v1889 = vadd.f32 0.0, %v1888
  %v1890 = vpop.f32.mrf.mxu0
  %v1891 = vadd.f32 0.0, %v1890
  %v1892 = vpop.f32.mrf.mxu0
  %v1893 = vadd.f32 0.0, %v1892
  %1894 = vmatprep.mubr.bf16.mxu0 %v1647
  %1895 = vmatmul.mubr.bf16.gmra.mxu0 %v1646
  %v1896 = vpop.f32.mrf.mxu0
  %v1897 = vadd.f32 0.0, %v1896
  %v1898 = vpop.f32.mrf.mxu0
  %v1899 = vadd.f32 0.0, %v1898
  %v1900 = vpop.f32.mrf.mxu0
  %v1901 = vadd.f32 0.0, %v1900
  %v1902 = vpop.f32.mrf.mxu0
  %v1903 = vadd.f32 0.0, %v1902
  %1904 = vmatprep.mubr.bf16.mxu0 %v1649
  %1905 = vmatmul.mubr.bf16.gmra.mxu0 %v1648
  %v1906 = vpop.f32.mrf.mxu0
  %v1907 = vadd.f32 0.0, %v1906
  %v1908 = vpop.f32.mrf.mxu0
  %v1909 = vadd.f32 0.0, %v1908
  %v1910 = vpop.f32.mrf.mxu0
  %v1911 = vadd.f32 0.0, %v1910
  %v1912 = vpop.f32.mrf.mxu0
  %v1913 = vadd.f32 0.0, %v1912
  %1914 = vmatprep.mubr.bf16.mxu0 %v1651
  %1915 = vmatmul.mubr.bf16.gmra.mxu0 %v1650
  %v1916 = vpop.f32.mrf.mxu0
  %v1917 = vadd.f32 0.0, %v1916
  %v1918 = vpop.f32.mrf.mxu0
  %v1919 = vadd.f32 0.0, %v1918
  %v1920 = vpop.f32.mrf.mxu0
  %v1921 = vadd.f32 0.0, %v1920
  %v1922 = vpop.f32.mrf.mxu0
  %v1923 = vadd.f32 0.0, %v1922
  %1924 = vmatprep.mubr.bf16.mxu0 %v1653
  %1925 = vmatmul.mubr.bf16.gmra.mxu0 %v1652
  %v1926 = vpop.f32.mrf.mxu0
  %v1927 = vadd.f32 0.0, %v1926
  %v1928 = vpop.f32.mrf.mxu0
  %v1929 = vadd.f32 0.0, %v1928
  %v1930 = vpop.f32.mrf.mxu0
  %v1931 = vadd.f32 0.0, %v1930
  %v1932 = vpop.f32.mrf.mxu0
  %v1933 = vadd.f32 0.0, %v1932
  %1934 = vmatprep.mubr.bf16.mxu0 %v1655
  %1935 = vmatmul.mubr.bf16.gmra.mxu0 %v1654
  %v1936 = vpop.f32.mrf.mxu0
  %v1937 = vadd.f32 0.0, %v1936
  %v1938 = vpop.f32.mrf.mxu0
  %v1939 = vadd.f32 0.0, %v1938
  %v1940 = vpop.f32.mrf.mxu0
  %v1941 = vadd.f32 0.0, %v1940
  %v1942 = vpop.f32.mrf.mxu0
  %v1943 = vadd.f32 0.0, %v1942
  %1944 = vdwg.mxu0
  %v1945 = vadd.f32 %v1511, %v1867
  %v1946 = vadd.f32 %v1512, %v1869
  %v1947 = vadd.f32 %v1513, %v1871
  %v1948 = vadd.f32 %v1514, %v1873
  %v1949 = vadd.f32 %v1515, %v1877
  %v1950 = vadd.f32 %v1516, %v1879
  %v1951 = vadd.f32 %v1517, %v1881
  %v1952 = vadd.f32 %v1518, %v1883
  %v1953 = vadd.f32 %v1519, %v1887
  %v1954 = vadd.f32 %v1520, %v1889
  %v1955 = vadd.f32 %v1521, %v1891
  %v1956 = vadd.f32 %v1522, %v1893
  %v1957 = vadd.f32 %v1523, %v1897
  %v1958 = vadd.f32 %v1524, %v1899
  %v1959 = vadd.f32 %v1525, %v1901
  %v1960 = vadd.f32 %v1526, %v1903
  %v1961 = vadd.f32 %v1527, %v1907
  %v1962 = vadd.f32 %v1528, %v1909
  %v1963 = vadd.f32 %v1529, %v1911
  %v1964 = vadd.f32 %v1530, %v1913
  %v1965 = vadd.f32 %v1531, %v1917
  %v1966 = vadd.f32 %v1532, %v1919
  %v1967 = vadd.f32 %v1533, %v1921
  %v1968 = vadd.f32 %v1534, %v1923
  %v1969 = vadd.f32 %v1535, %v1927
  %v1970 = vadd.f32 %v1536, %v1929
  %v1971 = vadd.f32 %v1537, %v1931
  %v1972 = vadd.f32 %v1538, %v1933
  %v1973 = vadd.f32 %v1539, %v1937
  %v1974 = vadd.f32 %v1540, %v1939
  %v1975 = vadd.f32 %v1541, %v1941
  %v1976 = vadd.f32 %v1542, %v1943
  %v1977 = vld [vmem:[%s1543] sm:$0xff]
  %v1978 = vld [vmem:[%s1543 + $0x8] sm:$0x11]
  %v1979 = vld [vmem:[%s1543 + $0x10] sm:$0xff]
  %v1980 = vld [vmem:[%s1543 + $0x18] sm:$0x11]
  %v1981 = vld [vmem:[%s1543 + $0x20] sm:$0xff]
  %v1982 = vld [vmem:[%s1543 + $0x28] sm:$0x11]
  %v1983 = vld [vmem:[%s1543 + $0x30] sm:$0xff]
  %v1984 = vld [vmem:[%s1543 + $0x38] sm:$0x11]
  %v1985 = vld [vmem:[%s1543 + $0x40] sm:$0xff]
  %v1986 = vld [vmem:[%s1543 + $0x48] sm:$0x11]
  %v1987 = vld [vmem:[%s1543 + $0x50] sm:$0xff]
  %v1988 = vld [vmem:[%s1543 + $0x58] sm:$0x11]
  %v1989 = vld [vmem:[%s1543 + $0x60] sm:$0xff]
  %v1990 = vld [vmem:[%s1543 + $0x68] sm:$0x11]
  %v1991 = vld [vmem:[%s1543 + $0x70] sm:$0xff]
  %v1992 = vld [vmem:[%s1543 + $0x78] sm:$0x11]
  %v1993 = vld [vmem:[%s1543 + $0xa0] sm:$0xff]
  %v1994 = vld [vmem:[%s1543 + $0xa8] sm:$0x11]
  %v1995 = vld [vmem:[%s1543 + $0xb0] sm:$0xff]
  %v1996 = vld [vmem:[%s1543 + $0xb8] sm:$0x11]
  %v1997 = vld [vmem:[%s1543 + $0xc0] sm:$0xff]
  %v1998 = vld [vmem:[%s1543 + $0xc8] sm:$0x11]
  %v1999 = vld [vmem:[%s1543 + $0xd0] sm:$0xff]
  %v2000 = vld [vmem:[%s1543 + $0xd8] sm:$0x11]
  %v2001 = vld [vmem:[%s1543 + $0xe0] sm:$0xff]
  %v2002 = vld [vmem:[%s1543 + $0xe8] sm:$0x11]
  %v2003 = vld [vmem:[%s1543 + $0xf0] sm:$0xff]
  %v2004 = vld [vmem:[%s1543 + $0xf8] sm:$0x11]
  %v2005 = vld [vmem:[%s1543 + $0x100] sm:$0xff]
  %v2006 = vld [vmem:[%s1543 + $0x108] sm:$0x11]
  %v2007 = vld [vmem:[%s1543 + $0x110] sm:$0xff]
  %v2008 = vld [vmem:[%s1543 + $0x118] sm:$0x11]
  %v2010 = vshrl.u32 %v1977, 16
  %v2012 = vrot.slane %v2010, 4
  %v2013 = vshll.u32 %v1977, 16
  %v2015 = vrot.slane %v2013, 5
  %v2016 = vor.u32 %v2012, %v2015
  %v2017 = vrot.slane %v2016, 4
  %v2019 = vshll.u32 %v1978, 16
  %v2021 = vrot.slane %v2019, 5
  %v2022 = vsel %vm80, %v2017, %v2021
  %v2024 = vshrl.u32 %v1979, 16
  %v2026 = vrot.slane %v2024, 4
  %v2027 = vshll.u32 %v1979, 16
  %v2029 = vrot.slane %v2027, 5
  %v2030 = vor.u32 %v2026, %v2029
  %v2031 = vrot.slane %v2030, 4
  %v2033 = vshll.u32 %v1980, 16
  %v2035 = vrot.slane %v2033, 5
  %v2036 = vsel %vm80, %v2031, %v2035
  %v2038 = vshrl.u32 %v1981, 16
  %v2040 = vrot.slane %v2038, 4
  %v2041 = vshll.u32 %v1981, 16
  %v2043 = vrot.slane %v2041, 5
  %v2044 = vor.u32 %v2040, %v2043
  %v2045 = vrot.slane %v2044, 4
  %v2047 = vshll.u32 %v1982, 16
  %v2049 = vrot.slane %v2047, 5
  %v2050 = vsel %vm80, %v2045, %v2049
  %v2052 = vshrl.u32 %v1983, 16
  %v2054 = vrot.slane %v2052, 4
  %v2055 = vshll.u32 %v1983, 16
  %v2057 = vrot.slane %v2055, 5
  %v2058 = vor.u32 %v2054, %v2057
  %v2059 = vrot.slane %v2058, 4
  %v2061 = vshll.u32 %v1984, 16
  %v2063 = vrot.slane %v2061, 5
  %v2064 = vsel %vm80, %v2059, %v2063
  %v2066 = vshrl.u32 %v1985, 16
  %v2068 = vrot.slane %v2066, 4
  %v2069 = vshll.u32 %v1985, 16
  %v2071 = vrot.slane %v2069, 5
  %v2072 = vor.u32 %v2068, %v2071
  %v2073 = vrot.slane %v2072, 4
  %v2075 = vshll.u32 %v1986, 16
  %v2077 = vrot.slane %v2075, 5
  %v2078 = vsel %vm80, %v2073, %v2077
  %v2080 = vshrl.u32 %v1987, 16
  %v2082 = vrot.slane %v2080, 4
  %v2083 = vshll.u32 %v1987, 16
  %v2085 = vrot.slane %v2083, 5
  %v2086 = vor.u32 %v2082, %v2085
  %v2087 = vrot.slane %v2086, 4
  %v2089 = vshll.u32 %v1988, 16
  %v2091 = vrot.slane %v2089, 5
  %v2092 = vsel %vm80, %v2087, %v2091
  %v2094 = vshrl.u32 %v1989, 16
  %v2096 = vrot.slane %v2094, 4
  %v2097 = vshll.u32 %v1989, 16
  %v2099 = vrot.slane %v2097, 5
  %v2100 = vor.u32 %v2096, %v2099
  %v2101 = vrot.slane %v2100, 4
  %v2103 = vshll.u32 %v1990, 16
  %v2105 = vrot.slane %v2103, 5
  %v2106 = vsel %vm80, %v2101, %v2105
  %v2108 = vshrl.u32 %v1991, 16
  %v2110 = vrot.slane %v2108, 4
  %v2111 = vshll.u32 %v1991, 16
  %v2113 = vrot.slane %v2111, 5
  %v2114 = vor.u32 %v2110, %v2113
  %v2115 = vrot.slane %v2114, 4
  %v2117 = vshll.u32 %v1992, 16
  %v2119 = vrot.slane %v2117, 5
  %v2120 = vsel %vm80, %v2115, %v2119
  %v2122 = vshrl.u32 %v1993, 16
  %v2124 = vrot.slane %v2122, 4
  %v2125 = vshll.u32 %v1993, 16
  %v2127 = vrot.slane %v2125, 5
  %v2128 = vor.u32 %v2124, %v2127
  %v2129 = vrot.slane %v2128, 4
  %v2131 = vshll.u32 %v1994, 16
  %v2133 = vrot.slane %v2131, 5
  %v2134 = vsel %vm80, %v2129, %v2133
  %v2136 = vshrl.u32 %v1995, 16
  %v2138 = vrot.slane %v2136, 4
  %v2139 = vshll.u32 %v1995, 16
  %v2141 = vrot.slane %v2139, 5
  %v2142 = vor.u32 %v2138, %v2141
  %v2143 = vrot.slane %v2142, 4
  %v2145 = vshll.u32 %v1996, 16
  %v2147 = vrot.slane %v2145, 5
  %v2148 = vsel %vm80, %v2143, %v2147
  %v2150 = vshrl.u32 %v1997, 16
  %v2152 = vrot.slane %v2150, 4
  %v2153 = vshll.u32 %v1997, 16
  %v2155 = vrot.slane %v2153, 5
  %v2156 = vor.u32 %v2152, %v2155
  %v2157 = vrot.slane %v2156, 4
  %v2159 = vshll.u32 %v1998, 16
  %v2161 = vrot.slane %v2159, 5
  %v2162 = vsel %vm80, %v2157, %v2161
  %v2164 = vshrl.u32 %v1999, 16
  %v2166 = vrot.slane %v2164, 4
  %v2167 = vshll.u32 %v1999, 16
  %v2169 = vrot.slane %v2167, 5
  %v2170 = vor.u32 %v2166, %v2169
  %v2171 = vrot.slane %v2170, 4
  %v2173 = vshll.u32 %v2000, 16
  %v2175 = vrot.slane %v2173, 5
  %v2176 = vsel %vm80, %v2171, %v2175
  %v2178 = vshrl.u32 %v2001, 16
  %v2180 = vrot.slane %v2178, 4
  %v2181 = vshll.u32 %v2001, 16
  %v2183 = vrot.slane %v2181, 5
  %v2184 = vor.u32 %v2180, %v2183
  %v2185 = vrot.slane %v2184, 4
  %v2187 = vshll.u32 %v2002, 16
  %v2189 = vrot.slane %v2187, 5
  %v2190 = vsel %vm80, %v2185, %v2189
  %v2192 = vshrl.u32 %v2003, 16
  %v2194 = vrot.slane %v2192, 4
  %v2195 = vshll.u32 %v2003, 16
  %v2197 = vrot.slane %v2195, 5
  %v2198 = vor.u32 %v2194, %v2197
  %v2199 = vrot.slane %v2198, 4
  %v2201 = vshll.u32 %v2004, 16
  %v2203 = vrot.slane %v2201, 5
  %v2204 = vsel %vm80, %v2199, %v2203
  %v2206 = vshrl.u32 %v2005, 16
  %v2208 = vrot.slane %v2206, 4
  %v2209 = vshll.u32 %v2005, 16
  %v2211 = vrot.slane %v2209, 5
  %v2212 = vor.u32 %v2208, %v2211
  %v2213 = vrot.slane %v2212, 4
  %v2215 = vshll.u32 %v2006, 16
  %v2217 = vrot.slane %v2215, 5
  %v2218 = vsel %vm80, %v2213, %v2217
  %v2220 = vshrl.u32 %v2007, 16
  %v2222 = vrot.slane %v2220, 4
  %v2223 = vshll.u32 %v2007, 16
  %v2225 = vrot.slane %v2223, 5
  %v2226 = vor.u32 %v2222, %v2225
  %v2227 = vrot.slane %v2226, 4
  %v2229 = vshll.u32 %v2008, 16
  %v2231 = vrot.slane %v2229, 5
  %v2232 = vsel %vm80, %v2227, %v2231
  %v2233 = vld [vmem:[%s1 + $0x400] sm:$0xff]
  %v2234 = vld [vmem:[%s1 + $0x408] sm:$0xff]
  %v2235 = vld [vmem:[%s1 + $0x410] sm:$0xff]
  %v2236 = vld [vmem:[%s1 + $0x418] sm:$0xff]
  %v2237 = vld [vmem:[%s1 + $0x420] sm:$0xff]
  %v2238 = vld [vmem:[%s1 + $0x428] sm:$0xff]
  %v2239 = vld [vmem:[%s1 + $0x430] sm:$0xff]
  %v2240 = vld [vmem:[%s1 + $0x438] sm:$0xff]
  %v2241 = vld [vmem:[%s1 + $0x440] sm:$0xff]
  %v2242 = vld [vmem:[%s1 + $0x448] sm:$0xff]
  %v2243 = vld [vmem:[%s1 + $0x450] sm:$0xff]
  %v2244 = vld [vmem:[%s1 + $0x458] sm:$0xff]
  %v2245 = vld [vmem:[%s1 + $0x460] sm:$0xff]
  %v2246 = vld [vmem:[%s1 + $0x468] sm:$0xff]
  %v2247 = vld [vmem:[%s1 + $0x470] sm:$0xff]
  %v2248 = vld [vmem:[%s1 + $0x478] sm:$0xff]
  %v2249 = vld [vmem:[%s1 + $0x480] sm:$0xff]
  %v2250 = vld [vmem:[%s1 + $0x488] sm:$0xff]
  %v2251 = vld [vmem:[%s1 + $0x490] sm:$0xff]
  %v2252 = vld [vmem:[%s1 + $0x498] sm:$0xff]
  %v2253 = vld [vmem:[%s1 + $0x4a0] sm:$0xff]
  %v2254 = vld [vmem:[%s1 + $0x4a8] sm:$0xff]
  %v2255 = vld [vmem:[%s1 + $0x4b0] sm:$0xff]
  %v2256 = vld [vmem:[%s1 + $0x4b8] sm:$0xff]
  %v2257 = vld [vmem:[%s1 + $0x4c0] sm:$0xff]
  %v2258 = vld [vmem:[%s1 + $0x4c8] sm:$0xff]
  %v2259 = vld [vmem:[%s1 + $0x4d0] sm:$0xff]
  %v2260 = vld [vmem:[%s1 + $0x4d8] sm:$0xff]
  %v2261 = vld [vmem:[%s1 + $0x4e0] sm:$0xff]
  %v2262 = vld [vmem:[%s1 + $0x4e8] sm:$0xff]
  %v2263 = vld [vmem:[%s1 + $0x4f0] sm:$0xff]
  %v2264 = vld [vmem:[%s1 + $0x4f8] sm:$0xff]
  %v2265 = vunpack.c.l.b16 %v2022
  %v2266 = vunpack.c.h.b16 %v2022
  %v2267 = vunpack.c.l.b16 %v2036
  %v2268 = vunpack.c.h.b16 %v2036
  %v2269 = vunpack.c.l.b16 %v2050
  %v2270 = vunpack.c.h.b16 %v2050
  %v2271 = vunpack.c.l.b16 %v2064
  %v2272 = vunpack.c.h.b16 %v2064
  %v2273 = vunpack.c.l.b16 %v2078
  %v2274 = vunpack.c.h.b16 %v2078
  %v2275 = vunpack.c.l.b16 %v2092
  %v2276 = vunpack.c.h.b16 %v2092
  %v2277 = vunpack.c.l.b16 %v2106
  %v2278 = vunpack.c.h.b16 %v2106
  %v2279 = vunpack.c.l.b16 %v2120
  %v2280 = vunpack.c.h.b16 %v2120
  %v2281 = vunpack.c.l.b16 %v2134
  %v2282 = vunpack.c.h.b16 %v2134
  %v2283 = vunpack.c.l.b16 %v2148
  %v2284 = vunpack.c.h.b16 %v2148
  %v2285 = vunpack.c.l.b16 %v2162
  %v2286 = vunpack.c.h.b16 %v2162
  %v2287 = vunpack.c.l.b16 %v2176
  %v2288 = vunpack.c.h.b16 %v2176
  %v2289 = vunpack.c.l.b16 %v2190
  %v2290 = vunpack.c.h.b16 %v2190
  %v2291 = vunpack.c.l.b16 %v2204
  %v2292 = vunpack.c.h.b16 %v2204
  %v2293 = vunpack.c.l.b16 %v2218
  %v2294 = vunpack.c.h.b16 %v2218
  %v2295 = vunpack.c.l.b16 %v2232
  %v2296 = vunpack.c.h.b16 %v2232
  %v2297 = vpack.c.b16 %v2267, %v2265
  %v2298 = vpack.c.b16 %v2268, %v2266
  %v2299 = vpack.c.b16 %v2271, %v2269
  %v2300 = vpack.c.b16 %v2272, %v2270
  %v2301 = vpack.c.b16 %v2275, %v2273
  %v2302 = vpack.c.b16 %v2276, %v2274
  %v2303 = vpack.c.b16 %v2279, %v2277
  %v2304 = vpack.c.b16 %v2280, %v2278
  %v2305 = vpack.c.b16 %v2283, %v2281
  %v2306 = vpack.c.b16 %v2284, %v2282
  %v2307 = vpack.c.b16 %v2287, %v2285
  %v2308 = vpack.c.b16 %v2288, %v2286
  %v2309 = vpack.c.b16 %v2291, %v2289
  %v2310 = vpack.c.b16 %v2292, %v2290
  %v2311 = vpack.c.b16 %v2295, %v2293
  %v2312 = vpack.c.b16 %v2296, %v2294
  %v2361 = vunpack.c.l.b16 %v2233
  %v2362 = vunpack.c.h.b16 %v2233
  %v2363 = vunpack.c.l.b16 %v2234
  %v2364 = vunpack.c.h.b16 %v2234
  %v2365 = vunpack.c.l.b16 %v2235
  %v2366 = vunpack.c.h.b16 %v2235
  %v2367 = vunpack.c.l.b16 %v2236
  %v2368 = vunpack.c.h.b16 %v2236
  %v2369 = vunpack.c.l.b16 %v2237
  %v2370 = vunpack.c.h.b16 %v2237
  %v2371 = vunpack.c.l.b16 %v2238
  %v2372 = vunpack.c.h.b16 %v2238
  %v2373 = vunpack.c.l.b16 %v2239
  %v2374 = vunpack.c.h.b16 %v2239
  %v2375 = vunpack.c.l.b16 %v2240
  %v2376 = vunpack.c.h.b16 %v2240
  %v2377 = vunpack.c.l.b16 %v2241
  %v2378 = vunpack.c.h.b16 %v2241
  %v2379 = vunpack.c.l.b16 %v2242
  %v2380 = vunpack.c.h.b16 %v2242
  %v2381 = vunpack.c.l.b16 %v2243
  %v2382 = vunpack.c.h.b16 %v2243
  %v2383 = vunpack.c.l.b16 %v2244
  %v2384 = vunpack.c.h.b16 %v2244
  %v2385 = vunpack.c.l.b16 %v2245
  %v2386 = vunpack.c.h.b16 %v2245
  %v2387 = vunpack.c.l.b16 %v2246
  %v2388 = vunpack.c.h.b16 %v2246
  %v2389 = vunpack.c.l.b16 %v2247
  %v2390 = vunpack.c.h.b16 %v2247
  %v2391 = vunpack.c.l.b16 %v2248
  %v2392 = vunpack.c.h.b16 %v2248
  %v2393 = vunpack.c.l.b16 %v2249
  %v2394 = vunpack.c.h.b16 %v2249
  %v2395 = vunpack.c.l.b16 %v2250
  %v2396 = vunpack.c.h.b16 %v2250
  %v2397 = vunpack.c.l.b16 %v2251
  %v2398 = vunpack.c.h.b16 %v2251
  %v2399 = vunpack.c.l.b16 %v2252
  %v2400 = vunpack.c.h.b16 %v2252
  %v2401 = vunpack.c.l.b16 %v2253
  %v2402 = vunpack.c.h.b16 %v2253
  %v2403 = vunpack.c.l.b16 %v2254
  %v2404 = vunpack.c.h.b16 %v2254
  %v2405 = vunpack.c.l.b16 %v2255
  %v2406 = vunpack.c.h.b16 %v2255
  %v2407 = vunpack.c.l.b16 %v2256
  %v2408 = vunpack.c.h.b16 %v2256
  %v2409 = vunpack.c.l.b16 %v2257
  %v2410 = vunpack.c.h.b16 %v2257
  %v2411 = vunpack.c.l.b16 %v2258
  %v2412 = vunpack.c.h.b16 %v2258
  %v2413 = vunpack.c.l.b16 %v2259
  %v2414 = vunpack.c.h.b16 %v2259
  %v2415 = vunpack.c.l.b16 %v2260
  %v2416 = vunpack.c.h.b16 %v2260
  %v2417 = vunpack.c.l.b16 %v2261
  %v2418 = vunpack.c.h.b16 %v2261
  %v2419 = vunpack.c.l.b16 %v2262
  %v2420 = vunpack.c.h.b16 %v2262
  %v2421 = vunpack.c.l.b16 %v2263
  %v2422 = vunpack.c.h.b16 %v2263
  %v2423 = vunpack.c.l.b16 %v2264
  %v2424 = vunpack.c.h.b16 %v2264
  %v2425 = vpack.c.b16 %v2363, %v2361
  %v2426 = vpack.c.b16 %v2364, %v2362
  %v2427 = vpack.c.b16 %v2367, %v2365
  %v2428 = vpack.c.b16 %v2368, %v2366
  %v2429 = vpack.c.b16 %v2371, %v2369
  %v2430 = vpack.c.b16 %v2372, %v2370
  %v2431 = vpack.c.b16 %v2375, %v2373
  %v2432 = vpack.c.b16 %v2376, %v2374
  %v2433 = vpack.c.b16 %v2379, %v2377
  %v2434 = vpack.c.b16 %v2380, %v2378
  %v2435 = vpack.c.b16 %v2383, %v2381
  %v2436 = vpack.c.b16 %v2384, %v2382
  %v2437 = vpack.c.b16 %v2387, %v2385
  %v2438 = vpack.c.b16 %v2388, %v2386
  %v2439 = vpack.c.b16 %v2391, %v2389
  %v2440 = vpack.c.b16 %v2392, %v2390
  %v2441 = vpack.c.b16 %v2395, %v2393
  %v2442 = vpack.c.b16 %v2396, %v2394
  %v2443 = vpack.c.b16 %v2399, %v2397
  %v2444 = vpack.c.b16 %v2400, %v2398
  %v2445 = vpack.c.b16 %v2403, %v2401
  %v2446 = vpack.c.b16 %v2404, %v2402
  %v2447 = vpack.c.b16 %v2407, %v2405
  %v2448 = vpack.c.b16 %v2408, %v2406
  %v2449 = vpack.c.b16 %v2411, %v2409
  %v2450 = vpack.c.b16 %v2412, %v2410
  %v2451 = vpack.c.b16 %v2415, %v2413
  %v2452 = vpack.c.b16 %v2416, %v2414
  %v2453 = vpack.c.b16 %v2419, %v2417
  %v2454 = vpack.c.b16 %v2420, %v2418
  %v2455 = vpack.c.b16 %v2423, %v2421
  %v2456 = vpack.c.b16 %v2424, %v2422
  %2489 = vmatprep.subr.bf16.mxu0 %v2440
  %2490 = vmatpush1.bf16.msra.mxu0 %v2439
  %2491 = vmatprep.subr.bf16.mxu0 %v2438
  %2492 = vmatpush1.bf16.msra.mxu0 %v2437
  %2493 = vmatprep.subr.bf16.mxu0 %v2436
  %2494 = vmatpush1.bf16.msra.mxu0 %v2435
  %2495 = vmatprep.subr.bf16.mxu0 %v2434
  %2496 = vmatpush1.bf16.msra.mxu0 %v2433
  %2497 = vmatprep.subr.bf16.mxu0 %v2432
  %2498 = vmatpush1.bf16.msra.mxu0 %v2431
  %2499 = vmatprep.subr.bf16.mxu0 %v2430
  %2500 = vmatpush1.bf16.msra.mxu0 %v2429
  %2501 = vmatprep.subr.bf16.mxu0 %v2428
  %2502 = vmatpush1.bf16.msra.mxu0 %v2427
  %2503 = vmatprep.subr.bf16.mxu0 %v2426
  %2504 = vmatpush1.bf16.msra.mxu0 %v2425
  %2505 = vmatprep.subr.bf16.mxu0 %v2456
  %2506 = vmatpush2.bf16.msra.mxu0 %v2455
  %2507 = vmatprep.subr.bf16.mxu0 %v2454
  %2508 = vmatpush2.bf16.msra.mxu0 %v2453
  %2509 = vmatprep.subr.bf16.mxu0 %v2452
  %2510 = vmatpush2.bf16.msra.mxu0 %v2451
  %2511 = vmatprep.subr.bf16.mxu0 %v2450
  %2512 = vmatpush2.bf16.msra.mxu0 %v2449
  %2513 = vmatprep.subr.bf16.mxu0 %v2448
  %2514 = vmatpush2.bf16.msra.mxu0 %v2447
  %2515 = vmatprep.subr.bf16.mxu0 %v2446
  %2516 = vmatpush2.bf16.msra.mxu0 %v2445
  %2517 = vmatprep.subr.bf16.mxu0 %v2444
  %2518 = vmatpush2.bf16.msra.mxu0 %v2443
  %2519 = vmatprep.subr.bf16.mxu0 %v2442
  %2520 = vmatpush2.bf16.msra.mxu0 %v2441
  %2521 = vmatprep.mubr.bf16.mxu0 %v2298
  %2522 = vmatmul.mubr.bf16.gmra.mxu0 %v2297
  %v2523 = vpop.f32.mrf.mxu0
  %v2524 = vadd.f32 0.0, %v2523
  %v2525 = vpop.f32.mrf.mxu0
  %v2526 = vadd.f32 0.0, %v2525
  %v2527 = vpop.f32.mrf.mxu0
  %v2528 = vadd.f32 0.0, %v2527
  %v2529 = vpop.f32.mrf.mxu0
  %v2530 = vadd.f32 0.0, %v2529
  %2531 = vmatprep.mubr.bf16.mxu0 %v2300
  %2532 = vmatmul.mubr.bf16.gmra.mxu0 %v2299
  %v2533 = vpop.f32.mrf.mxu0
  %v2534 = vadd.f32 0.0, %v2533
  %v2535 = vpop.f32.mrf.mxu0
  %v2536 = vadd.f32 0.0, %v2535
  %v2537 = vpop.f32.mrf.mxu0
  %v2538 = vadd.f32 0.0, %v2537
  %v2539 = vpop.f32.mrf.mxu0
  %v2540 = vadd.f32 0.0, %v2539
  %2541 = vmatprep.mubr.bf16.mxu0 %v2302
  %2542 = vmatmul.mubr.bf16.gmra.mxu0 %v2301
  %v2543 = vpop.f32.mrf.mxu0
  %v2544 = vadd.f32 0.0, %v2543
  %v2545 = vpop.f32.mrf.mxu0
  %v2546 = vadd.f32 0.0, %v2545
  %v2547 = vpop.f32.mrf.mxu0
  %v2548 = vadd.f32 0.0, %v2547
  %v2549 = vpop.f32.mrf.mxu0
  %v2550 = vadd.f32 0.0, %v2549
  %2551 = vmatprep.mubr.bf16.mxu0 %v2304
  %2552 = vmatmul.mubr.bf16.gmra.mxu0 %v2303
  %v2553 = vpop.f32.mrf.mxu0
  %v2554 = vadd.f32 0.0, %v2553
  %v2555 = vpop.f32.mrf.mxu0
  %v2556 = vadd.f32 0.0, %v2555
  %v2557 = vpop.f32.mrf.mxu0
  %v2558 = vadd.f32 0.0, %v2557
  %v2559 = vpop.f32.mrf.mxu0
  %v2560 = vadd.f32 0.0, %v2559
  %2561 = vmatprep.mubr.bf16.mxu0 %v2306
  %2562 = vmatmul.mubr.bf16.gmra.mxu0 %v2305
  %v2563 = vpop.f32.mrf.mxu0
  %v2564 = vadd.f32 0.0, %v2563
  %v2565 = vpop.f32.mrf.mxu0
  %v2566 = vadd.f32 0.0, %v2565
  %v2567 = vpop.f32.mrf.mxu0
  %v2568 = vadd.f32 0.0, %v2567
  %v2569 = vpop.f32.mrf.mxu0
  %v2570 = vadd.f32 0.0, %v2569
  %2571 = vmatprep.mubr.bf16.mxu0 %v2308
  %2572 = vmatmul.mubr.bf16.gmra.mxu0 %v2307
  %v2573 = vpop.f32.mrf.mxu0
  %v2574 = vadd.f32 0.0, %v2573
  %v2575 = vpop.f32.mrf.mxu0
  %v2576 = vadd.f32 0.0, %v2575
  %v2577 = vpop.f32.mrf.mxu0
  %v2578 = vadd.f32 0.0, %v2577
  %v2579 = vpop.f32.mrf.mxu0
  %v2580 = vadd.f32 0.0, %v2579
  %2581 = vmatprep.mubr.bf16.mxu0 %v2310
  %2582 = vmatmul.mubr.bf16.gmra.mxu0 %v2309
  %v2583 = vpop.f32.mrf.mxu0
  %v2584 = vadd.f32 0.0, %v2583
  %v2585 = vpop.f32.mrf.mxu0
  %v2586 = vadd.f32 0.0, %v2585
  %v2587 = vpop.f32.mrf.mxu0
  %v2588 = vadd.f32 0.0, %v2587
  %v2589 = vpop.f32.mrf.mxu0
  %v2590 = vadd.f32 0.0, %v2589
  %2591 = vmatprep.mubr.bf16.mxu0 %v2312
  %2592 = vmatmul.mubr.bf16.gmra.mxu0 %v2311
  %v2593 = vpop.f32.mrf.mxu0
  %v2594 = vadd.f32 0.0, %v2593
  %v2595 = vpop.f32.mrf.mxu0
  %v2596 = vadd.f32 0.0, %v2595
  %v2597 = vpop.f32.mrf.mxu0
  %v2598 = vadd.f32 0.0, %v2597
  %v2599 = vpop.f32.mrf.mxu0
  %v2600 = vadd.f32 0.0, %v2599
  %2601 = vdwg.mxu0
  %v2602 = vadd.f32 %v1945, %v2524
  %v2603 = vadd.f32 %v1946, %v2526
  %v2604 = vadd.f32 %v1947, %v2528
  %v2605 = vadd.f32 %v1948, %v2530
  %v2606 = vadd.f32 %v1949, %v2534
  %v2607 = vadd.f32 %v1950, %v2536
  %v2608 = vadd.f32 %v1951, %v2538
  %v2609 = vadd.f32 %v1952, %v2540
  %v2610 = vadd.f32 %v1953, %v2544
  %v2611 = vadd.f32 %v1954, %v2546
  %v2612 = vadd.f32 %v1955, %v2548
  %v2613 = vadd.f32 %v1956, %v2550
  %v2614 = vadd.f32 %v1957, %v2554
  %v2615 = vadd.f32 %v1958, %v2556
  %v2616 = vadd.f32 %v1959, %v2558
  %v2617 = vadd.f32 %v1960, %v2560
  %v2618 = vadd.f32 %v1961, %v2564
  %v2619 = vadd.f32 %v1962, %v2566
  %v2620 = vadd.f32 %v1963, %v2568
  %v2621 = vadd.f32 %v1964, %v2570
  %v2622 = vadd.f32 %v1965, %v2574
  %v2623 = vadd.f32 %v1966, %v2576
  %v2624 = vadd.f32 %v1967, %v2578
  %v2625 = vadd.f32 %v1968, %v2580
  %v2626 = vadd.f32 %v1969, %v2584
  %v2627 = vadd.f32 %v1970, %v2586
  %v2628 = vadd.f32 %v1971, %v2588
  %v2629 = vadd.f32 %v1972, %v2590
  %v2630 = vadd.f32 %v1973, %v2594
  %v2631 = vadd.f32 %v1974, %v2596
  %v2632 = vadd.f32 %v1975, %v2598
  %v2633 = vadd.f32 %v1976, %v2600
  %v2634 = vld [vmem:[%s1543] sm:$0xee]
  %v2635 = vld [vmem:[%s1543 + $0x10] sm:$0xee]
  %v2636 = vld [vmem:[%s1543 + $0x20] sm:$0xee]
  %v2637 = vld [vmem:[%s1543 + $0x30] sm:$0xee]
  %v2638 = vld [vmem:[%s1543 + $0x40] sm:$0xee]
  %v2639 = vld [vmem:[%s1543 + $0x50] sm:$0xee]
  %v2640 = vld [vmem:[%s1543 + $0x60] sm:$0xee]
  %v2641 = vld [vmem:[%s1543 + $0x70] sm:$0xee]
  %v2642 = vld [vmem:[%s1543 + $0xa0] sm:$0xee]
  %v2643 = vld [vmem:[%s1543 + $0xb0] sm:$0xee]
  %v2644 = vld [vmem:[%s1543 + $0xc0] sm:$0xee]
  %v2645 = vld [vmem:[%s1543 + $0xd0] sm:$0xee]
  %v2646 = vld [vmem:[%s1543 + $0xe0] sm:$0xee]
  %v2647 = vld [vmem:[%s1543 + $0xf0] sm:$0xee]
  %v2648 = vld [vmem:[%s1543 + $0x100] sm:$0xee]
  %v2649 = vld [vmem:[%s1543 + $0x110] sm:$0xee]
  %v2682 = vrot.slane %v2634, 5
  %v2683 = vrot.slane %v2682, 4
  %v2684 = vrot.slane %v1978, 5
  %v2685 = vsel %vm1077, %v2683, %v2684
  %v2686 = vrot.slane %v2635, 5
  %v2687 = vrot.slane %v2686, 4
  %v2688 = vrot.slane %v1980, 5
  %v2689 = vsel %vm1077, %v2687, %v2688
  %v2690 = vrot.slane %v2636, 5
  %v2691 = vrot.slane %v2690, 4
  %v2692 = vrot.slane %v1982, 5
  %v2693 = vsel %vm1077, %v2691, %v2692
  %v2694 = vrot.slane %v2637, 5
  %v2695 = vrot.slane %v2694, 4
  %v2696 = vrot.slane %v1984, 5
  %v2697 = vsel %vm1077, %v2695, %v2696
  %v2698 = vrot.slane %v2638, 5
  %v2699 = vrot.slane %v2698, 4
  %v2700 = vrot.slane %v1986, 5
  %v2701 = vsel %vm1077, %v2699, %v2700
  %v2702 = vrot.slane %v2639, 5
  %v2703 = vrot.slane %v2702, 4
  %v2704 = vrot.slane %v1988, 5
  %v2705 = vsel %vm1077, %v2703, %v2704
  %v2706 = vrot.slane %v2640, 5
  %v2707 = vrot.slane %v2706, 4
  %v2708 = vrot.slane %v1990, 5
  %v2709 = vsel %vm1077, %v2707, %v2708
  %v2710 = vrot.slane %v2641, 5
  %v2711 = vrot.slane %v2710, 4
  %v2712 = vrot.slane %v1992, 5
  %v2713 = vsel %vm1077, %v2711, %v2712
  %v2714 = vrot.slane %v2642, 5
  %v2715 = vrot.slane %v2714, 4
  %v2716 = vrot.slane %v1994, 5
  %v2717 = vsel %vm1077, %v2715, %v2716
  %v2718 = vrot.slane %v2643, 5
  %v2719 = vrot.slane %v2718, 4
  %v2720 = vrot.slane %v1996, 5
  %v2721 = vsel %vm1077, %v2719, %v2720
  %v2722 = vrot.slane %v2644, 5
  %v2723 = vrot.slane %v2722, 4
  %v2724 = vrot.slane %v1998, 5
  %v2725 = vsel %vm1077, %v2723, %v2724
  %v2726 = vrot.slane %v2645, 5
  %v2727 = vrot.slane %v2726, 4
  %v2728 = vrot.slane %v2000, 5
  %v2729 = vsel %vm1077, %v2727, %v2728
  %v2730 = vrot.slane %v2646, 5
  %v2731 = vrot.slane %v2730, 4
  %v2732 = vrot.slane %v2002, 5
  %v2733 = vsel %vm1077, %v2731, %v2732
  %v2734 = vrot.slane %v2647, 5
  %v2735 = vrot.slane %v2734, 4
  %v2736 = vrot.slane %v2004, 5
  %v2737 = vsel %vm1077, %v2735, %v2736
  %v2738 = vrot.slane %v2648, 5
  %v2739 = vrot.slane %v2738, 4
  %v2740 = vrot.slane %v2006, 5
  %v2741 = vsel %vm1077, %v2739, %v2740
  %v2742 = vrot.slane %v2649, 5
  %v2743 = vrot.slane %v2742, 4
  %v2744 = vrot.slane %v2008, 5
  %v2745 = vsel %vm1077, %v2743, %v2744
  %v2746 = vld [vmem:[%s1 + $0x500] sm:$0xff]
  %v2747 = vld [vmem:[%s1 + $0x508] sm:$0xff]
  %v2748 = vld [vmem:[%s1 + $0x510] sm:$0xff]
  %v2749 = vld [vmem:[%s1 + $0x518] sm:$0xff]
  %v2750 = vld [vmem:[%s1 + $0x520] sm:$0xff]
  %v2751 = vld [vmem:[%s1 + $0x528] sm:$0xff]
  %v2752 = vld [vmem:[%s1 + $0x530] sm:$0xff]
  %v2753 = vld [vmem:[%s1 + $0x538] sm:$0xff]
  %v2754 = vld [vmem:[%s1 + $0x540] sm:$0xff]
  %v2755 = vld [vmem:[%s1 + $0x548] sm:$0xff]
  %v2756 = vld [vmem:[%s1 + $0x550] sm:$0xff]
  %v2757 = vld [vmem:[%s1 + $0x558] sm:$0xff]
  %v2758 = vld [vmem:[%s1 + $0x560] sm:$0xff]
  %v2759 = vld [vmem:[%s1 + $0x568] sm:$0xff]
  %v2760 = vld [vmem:[%s1 + $0x570] sm:$0xff]
  %v2761 = vld [vmem:[%s1 + $0x578] sm:$0xff]
  %v2762 = vld [vmem:[%s1 + $0x580] sm:$0xff]
  %v2763 = vld [vmem:[%s1 + $0x588] sm:$0xff]
  %v2764 = vld [vmem:[%s1 + $0x590] sm:$0xff]
  %v2765 = vld [vmem:[%s1 + $0x598] sm:$0xff]
  %v2766 = vld [vmem:[%s1 + $0x5a0] sm:$0xff]
  %v2767 = vld [vmem:[%s1 + $0x5a8] sm:$0xff]
  %v2768 = vld [vmem:[%s1 + $0x5b0] sm:$0xff]
  %v2769 = vld [vmem:[%s1 + $0x5b8] sm:$0xff]
  %v2770 = vld [vmem:[%s1 + $0x5c0] sm:$0xff]
  %v2771 = vld [vmem:[%s1 + $0x5c8] sm:$0xff]
  %v2772 = vld [vmem:[%s1 + $0x5d0] sm:$0xff]
  %v2773 = vld [vmem:[%s1 + $0x5d8] sm:$0xff]
  %v2774 = vld [vmem:[%s1 + $0x5e0] sm:$0xff]
  %v2775 = vld [vmem:[%s1 + $0x5e8] sm:$0xff]
  %v2776 = vld [vmem:[%s1 + $0x5f0] sm:$0xff]
  %v2777 = vld [vmem:[%s1 + $0x5f8] sm:$0xff]
  %v2778 = vunpack.c.l.b16 %v2685
  %v2779 = vunpack.c.h.b16 %v2685
  %v2780 = vunpack.c.l.b16 %v2689
  %v2781 = vunpack.c.h.b16 %v2689
  %v2782 = vunpack.c.l.b16 %v2693
  %v2783 = vunpack.c.h.b16 %v2693
  %v2784 = vunpack.c.l.b16 %v2697
  %v2785 = vunpack.c.h.b16 %v2697
  %v2786 = vunpack.c.l.b16 %v2701
  %v2787 = vunpack.c.h.b16 %v2701
  %v2788 = vunpack.c.l.b16 %v2705
  %v2789 = vunpack.c.h.b16 %v2705
  %v2790 = vunpack.c.l.b16 %v2709
  %v2791 = vunpack.c.h.b16 %v2709
  %v2792 = vunpack.c.l.b16 %v2713
  %v2793 = vunpack.c.h.b16 %v2713
  %v2794 = vunpack.c.l.b16 %v2717
  %v2795 = vunpack.c.h.b16 %v2717
  %v2796 = vunpack.c.l.b16 %v2721
  %v2797 = vunpack.c.h.b16 %v2721
  %v2798 = vunpack.c.l.b16 %v2725
  %v2799 = vunpack.c.h.b16 %v2725
  %v2800 = vunpack.c.l.b16 %v2729
  %v2801 = vunpack.c.h.b16 %v2729
  %v2802 = vunpack.c.l.b16 %v2733
  %v2803 = vunpack.c.h.b16 %v2733
  %v2804 = vunpack.c.l.b16 %v2737
  %v2805 = vunpack.c.h.b16 %v2737
  %v2806 = vunpack.c.l.b16 %v2741
  %v2807 = vunpack.c.h.b16 %v2741
  %v2808 = vunpack.c.l.b16 %v2745
  %v2809 = vunpack.c.h.b16 %v2745
  %v2810 = vpack.c.b16 %v2780, %v2778
  %v2811 = vpack.c.b16 %v2781, %v2779
  %v2812 = vpack.c.b16 %v2784, %v2782
  %v2813 = vpack.c.b16 %v2785, %v2783
  %v2814 = vpack.c.b16 %v2788, %v2786
  %v2815 = vpack.c.b16 %v2789, %v2787
  %v2816 = vpack.c.b16 %v2792, %v2790
  %v2817 = vpack.c.b16 %v2793, %v2791
  %v2818 = vpack.c.b16 %v2796, %v2794
  %v2819 = vpack.c.b16 %v2797, %v2795
  %v2820 = vpack.c.b16 %v2800, %v2798
  %v2821 = vpack.c.b16 %v2801, %v2799
  %v2822 = vpack.c.b16 %v2804, %v2802
  %v2823 = vpack.c.b16 %v2805, %v2803
  %v2824 = vpack.c.b16 %v2808, %v2806
  %v2825 = vpack.c.b16 %v2809, %v2807
  %v2874 = vunpack.c.l.b16 %v2746
  %v2875 = vunpack.c.h.b16 %v2746
  %v2876 = vunpack.c.l.b16 %v2747
  %v2877 = vunpack.c.h.b16 %v2747
  %v2878 = vunpack.c.l.b16 %v2748
  %v2879 = vunpack.c.h.b16 %v2748
  %v2880 = vunpack.c.l.b16 %v2749
  %v2881 = vunpack.c.h.b16 %v2749
  %v2882 = vunpack.c.l.b16 %v2750
  %v2883 = vunpack.c.h.b16 %v2750
  %v2884 = vunpack.c.l.b16 %v2751
  %v2885 = vunpack.c.h.b16 %v2751
  %v2886 = vunpack.c.l.b16 %v2752
  %v2887 = vunpack.c.h.b16 %v2752
  %v2888 = vunpack.c.l.b16 %v2753
  %v2889 = vunpack.c.h.b16 %v2753
  %v2890 = vunpack.c.l.b16 %v2754
  %v2891 = vunpack.c.h.b16 %v2754
  %v2892 = vunpack.c.l.b16 %v2755
  %v2893 = vunpack.c.h.b16 %v2755
  %v2894 = vunpack.c.l.b16 %v2756
  %v2895 = vunpack.c.h.b16 %v2756
  %v2896 = vunpack.c.l.b16 %v2757
  %v2897 = vunpack.c.h.b16 %v2757
  %v2898 = vunpack.c.l.b16 %v2758
  %v2899 = vunpack.c.h.b16 %v2758
  %v2900 = vunpack.c.l.b16 %v2759
  %v2901 = vunpack.c.h.b16 %v2759
  %v2902 = vunpack.c.l.b16 %v2760
  %v2903 = vunpack.c.h.b16 %v2760
  %v2904 = vunpack.c.l.b16 %v2761
  %v2905 = vunpack.c.h.b16 %v2761
  %v2906 = vunpack.c.l.b16 %v2762
  %v2907 = vunpack.c.h.b16 %v2762
  %v2908 = vunpack.c.l.b16 %v2763
  %v2909 = vunpack.c.h.b16 %v2763
  %v2910 = vunpack.c.l.b16 %v2764
  %v2911 = vunpack.c.h.b16 %v2764
  %v2912 = vunpack.c.l.b16 %v2765
  %v2913 = vunpack.c.h.b16 %v2765
  %v2914 = vunpack.c.l.b16 %v2766
  %v2915 = vunpack.c.h.b16 %v2766
  %v2916 = vunpack.c.l.b16 %v2767
  %v2917 = vunpack.c.h.b16 %v2767
  %v2918 = vunpack.c.l.b16 %v2768
  %v2919 = vunpack.c.h.b16 %v2768
  %v2920 = vunpack.c.l.b16 %v2769
  %v2921 = vunpack.c.h.b16 %v2769
  %v2922 = vunpack.c.l.b16 %v2770
  %v2923 = vunpack.c.h.b16 %v2770
  %v2924 = vunpack.c.l.b16 %v2771
  %v2925 = vunpack.c.h.b16 %v2771
  %v2926 = vunpack.c.l.b16 %v2772
  %v2927 = vunpack.c.h.b16 %v2772
  %v2928 = vunpack.c.l.b16 %v2773
  %v2929 = vunpack.c.h.b16 %v2773
  %v2930 = vunpack.c.l.b16 %v2774
  %v2931 = vunpack.c.h.b16 %v2774
  %v2932 = vunpack.c.l.b16 %v2775
  %v2933 = vunpack.c.h.b16 %v2775
  %v2934 = vunpack.c.l.b16 %v2776
  %v2935 = vunpack.c.h.b16 %v2776
  %v2936 = vunpack.c.l.b16 %v2777
  %v2937 = vunpack.c.h.b16 %v2777
  %v2938 = vpack.c.b16 %v2876, %v2874
  %v2939 = vpack.c.b16 %v2877, %v2875
  %v2940 = vpack.c.b16 %v2880, %v2878
  %v2941 = vpack.c.b16 %v2881, %v2879
  %v2942 = vpack.c.b16 %v2884, %v2882
  %v2943 = vpack.c.b16 %v2885, %v2883
  %v2944 = vpack.c.b16 %v2888, %v2886
  %v2945 = vpack.c.b16 %v2889, %v2887
  %v2946 = vpack.c.b16 %v2892, %v2890
  %v2947 = vpack.c.b16 %v2893, %v2891
  %v2948 = vpack.c.b16 %v2896, %v2894
  %v2949 = vpack.c.b16 %v2897, %v2895
  %v2950 = vpack.c.b16 %v2900, %v2898
  %v2951 = vpack.c.b16 %v2901, %v2899
  %v2952 = vpack.c.b16 %v2904, %v2902
  %v2953 = vpack.c.b16 %v2905, %v2903
  %v2954 = vpack.c.b16 %v2908, %v2906
  %v2955 = vpack.c.b16 %v2909, %v2907
  %v2956 = vpack.c.b16 %v2912, %v2910
  %v2957 = vpack.c.b16 %v2913, %v2911
  %v2958 = vpack.c.b16 %v2916, %v2914
  %v2959 = vpack.c.b16 %v2917, %v2915
  %v2960 = vpack.c.b16 %v2920, %v2918
  %v2961 = vpack.c.b16 %v2921, %v2919
  %v2962 = vpack.c.b16 %v2924, %v2922
  %v2963 = vpack.c.b16 %v2925, %v2923
  %v2964 = vpack.c.b16 %v2928, %v2926
  %v2965 = vpack.c.b16 %v2929, %v2927
  %v2966 = vpack.c.b16 %v2932, %v2930
  %v2967 = vpack.c.b16 %v2933, %v2931
  %v2968 = vpack.c.b16 %v2936, %v2934
  %v2969 = vpack.c.b16 %v2937, %v2935
  %3002 = vmatprep.subr.bf16.mxu0 %v2953
  %3003 = vmatpush1.bf16.msra.mxu0 %v2952
  %3004 = vmatprep.subr.bf16.mxu0 %v2951
  %3005 = vmatpush1.bf16.msra.mxu0 %v2950
  %3006 = vmatprep.subr.bf16.mxu0 %v2949
  %3007 = vmatpush1.bf16.msra.mxu0 %v2948
  %3008 = vmatprep.subr.bf16.mxu0 %v2947
  %3009 = vmatpush1.bf16.msra.mxu0 %v2946
  %3010 = vmatprep.subr.bf16.mxu0 %v2945
  %3011 = vmatpush1.bf16.msra.mxu0 %v2944
  %3012 = vmatprep.subr.bf16.mxu0 %v2943
  %3013 = vmatpush1.bf16.msra.mxu0 %v2942
  %3014 = vmatprep.subr.bf16.mxu0 %v2941
  %3015 = vmatpush1.bf16.msra.mxu0 %v2940
  %3016 = vmatprep.subr.bf16.mxu0 %v2939
  %3017 = vmatpush1.bf16.msra.mxu0 %v2938
  %3018 = vmatprep.subr.bf16.mxu0 %v2969
  %3019 = vmatpush2.bf16.msra.mxu0 %v2968
  %3020 = vmatprep.subr.bf16.mxu0 %v2967
  %3021 = vmatpush2.bf16.msra.mxu0 %v2966
  %3022 = vmatprep.subr.bf16.mxu0 %v2965
  %3023 = vmatpush2.bf16.msra.mxu0 %v2964
  %3024 = vmatprep.subr.bf16.mxu0 %v2963
  %3025 = vmatpush2.bf16.msra.mxu0 %v2962
  %3026 = vmatprep.subr.bf16.mxu0 %v2961
  %3027 = vmatpush2.bf16.msra.mxu0 %v2960
  %3028 = vmatprep.subr.bf16.mxu0 %v2959
  %3029 = vmatpush2.bf16.msra.mxu0 %v2958
  %3030 = vmatprep.subr.bf16.mxu0 %v2957
  %3031 = vmatpush2.bf16.msra.mxu0 %v2956
  %3032 = vmatprep.subr.bf16.mxu0 %v2955
  %3033 = vmatpush2.bf16.msra.mxu0 %v2954
  %3034 = vmatprep.mubr.bf16.mxu0 %v2811
  %3035 = vmatmul.mubr.bf16.gmra.mxu0 %v2810
  %v3036 = vpop.f32.mrf.mxu0
  %v3037 = vadd.f32 0.0, %v3036
  %v3038 = vpop.f32.mrf.mxu0
  %v3039 = vadd.f32 0.0, %v3038
  %v3040 = vpop.f32.mrf.mxu0
  %v3041 = vadd.f32 0.0, %v3040
  %v3042 = vpop.f32.mrf.mxu0
  %v3043 = vadd.f32 0.0, %v3042
  %3044 = vmatprep.mubr.bf16.mxu0 %v2813
  %3045 = vmatmul.mubr.bf16.gmra.mxu0 %v2812
  %v3046 = vpop.f32.mrf.mxu0
  %v3047 = vadd.f32 0.0, %v3046
  %v3048 = vpop.f32.mrf.mxu0
  %v3049 = vadd.f32 0.0, %v3048
  %v3050 = vpop.f32.mrf.mxu0
  %v3051 = vadd.f32 0.0, %v3050
  %v3052 = vpop.f32.mrf.mxu0
  %v3053 = vadd.f32 0.0, %v3052
  %3054 = vmatprep.mubr.bf16.mxu0 %v2815
  %3055 = vmatmul.mubr.bf16.gmra.mxu0 %v2814
  %v3056 = vpop.f32.mrf.mxu0
  %v3057 = vadd.f32 0.0, %v3056
  %v3058 = vpop.f32.mrf.mxu0
  %v3059 = vadd.f32 0.0, %v3058
  %v3060 = vpop.f32.mrf.mxu0
  %v3061 = vadd.f32 0.0, %v3060
  %v3062 = vpop.f32.mrf.mxu0
  %v3063 = vadd.f32 0.0, %v3062
  %3064 = vmatprep.mubr.bf16.mxu0 %v2817
  %3065 = vmatmul.mubr.bf16.gmra.mxu0 %v2816
  %v3066 = vpop.f32.mrf.mxu0
  %v3067 = vadd.f32 0.0, %v3066
  %v3068 = vpop.f32.mrf.mxu0
  %v3069 = vadd.f32 0.0, %v3068
  %v3070 = vpop.f32.mrf.mxu0
  %v3071 = vadd.f32 0.0, %v3070
  %v3072 = vpop.f32.mrf.mxu0
  %v3073 = vadd.f32 0.0, %v3072
  %3074 = vmatprep.mubr.bf16.mxu0 %v2819
  %3075 = vmatmul.mubr.bf16.gmra.mxu0 %v2818
  %v3076 = vpop.f32.mrf.mxu0
  %v3077 = vadd.f32 0.0, %v3076
  %v3078 = vpop.f32.mrf.mxu0
  %v3079 = vadd.f32 0.0, %v3078
  %v3080 = vpop.f32.mrf.mxu0
  %v3081 = vadd.f32 0.0, %v3080
  %v3082 = vpop.f32.mrf.mxu0
  %v3083 = vadd.f32 0.0, %v3082
  %3084 = vmatprep.mubr.bf16.mxu0 %v2821
  %3085 = vmatmul.mubr.bf16.gmra.mxu0 %v2820
  %v3086 = vpop.f32.mrf.mxu0
  %v3087 = vadd.f32 0.0, %v3086
  %v3088 = vpop.f32.mrf.mxu0
  %v3089 = vadd.f32 0.0, %v3088
  %v3090 = vpop.f32.mrf.mxu0
  %v3091 = vadd.f32 0.0, %v3090
  %v3092 = vpop.f32.mrf.mxu0
  %v3093 = vadd.f32 0.0, %v3092
  %3094 = vmatprep.mubr.bf16.mxu0 %v2823
  %3095 = vmatmul.mubr.bf16.gmra.mxu0 %v2822
  %v3096 = vpop.f32.mrf.mxu0
  %v3097 = vadd.f32 0.0, %v3096
  %v3098 = vpop.f32.mrf.mxu0
  %v3099 = vadd.f32 0.0, %v3098
  %v3100 = vpop.f32.mrf.mxu0
  %v3101 = vadd.f32 0.0, %v3100
  %v3102 = vpop.f32.mrf.mxu0
  %v3103 = vadd.f32 0.0, %v3102
  %3104 = vmatprep.mubr.bf16.mxu0 %v2825
  %3105 = vmatmul.mubr.bf16.gmra.mxu0 %v2824
  %v3106 = vpop.f32.mrf.mxu0
  %v3107 = vadd.f32 0.0, %v3106
  %v3108 = vpop.f32.mrf.mxu0
  %v3109 = vadd.f32 0.0, %v3108
  %v3110 = vpop.f32.mrf.mxu0
  %v3111 = vadd.f32 0.0, %v3110
  %v3112 = vpop.f32.mrf.mxu0
  %v3113 = vadd.f32 0.0, %v3112
  %3114 = vdwg.mxu0
  %v3115 = vadd.f32 %v2602, %v3037
  %v3116 = vadd.f32 %v2603, %v3039
  %v3117 = vadd.f32 %v2604, %v3041
  %v3118 = vadd.f32 %v2605, %v3043
  %v3119 = vadd.f32 %v2606, %v3047
  %v3120 = vadd.f32 %v2607, %v3049
  %v3121 = vadd.f32 %v2608, %v3051
  %v3122 = vadd.f32 %v2609, %v3053
  %v3123 = vadd.f32 %v2610, %v3057
  %v3124 = vadd.f32 %v2611, %v3059
  %v3125 = vadd.f32 %v2612, %v3061
  %v3126 = vadd.f32 %v2613, %v3063
  %v3127 = vadd.f32 %v2614, %v3067
  %v3128 = vadd.f32 %v2615, %v3069
  %v3129 = vadd.f32 %v2616, %v3071
  %v3130 = vadd.f32 %v2617, %v3073
  %v3131 = vadd.f32 %v2618, %v3077
  %v3132 = vadd.f32 %v2619, %v3079
  %v3133 = vadd.f32 %v2620, %v3081
  %v3134 = vadd.f32 %v2621, %v3083
  %v3135 = vadd.f32 %v2622, %v3087
  %v3136 = vadd.f32 %v2623, %v3089
  %v3137 = vadd.f32 %v2624, %v3091
  %v3138 = vadd.f32 %v2625, %v3093
  %v3139 = vadd.f32 %v2626, %v3097
  %v3140 = vadd.f32 %v2627, %v3099
  %v3141 = vadd.f32 %v2628, %v3101
  %v3142 = vadd.f32 %v2629, %v3103
  %v3143 = vadd.f32 %v2630, %v3107
  %v3144 = vadd.f32 %v2631, %v3109
  %v3145 = vadd.f32 %v2632, %v3111
  %v3146 = vadd.f32 %v2633, %v3113
  %s3147 = scalar_lea.vmem %s0, 32
  %v3148 = vld [vmem:[%s3147] sm:$0xff]
  %v3149 = vld [vmem:[%s3147 + $0x10] sm:$0xff]
  %v3150 = vld [vmem:[%s3147 + $0x20] sm:$0xff]
  %v3151 = vld [vmem:[%s3147 + $0x30] sm:$0xff]
  %v3152 = vld [vmem:[%s3147 + $0x40] sm:$0xff]
  %v3153 = vld [vmem:[%s3147 + $0x50] sm:$0xff]
  %v3154 = vld [vmem:[%s3147 + $0x60] sm:$0xff]
  %v3155 = vld [vmem:[%s3147 + $0x70] sm:$0xff]
  %v3156 = vld [vmem:[%s3147 + $0xa0] sm:$0xff]
  %v3157 = vld [vmem:[%s3147 + $0xb0] sm:$0xff]
  %v3158 = vld [vmem:[%s3147 + $0xc0] sm:$0xff]
  %v3159 = vld [vmem:[%s3147 + $0xd0] sm:$0xff]
  %v3160 = vld [vmem:[%s3147 + $0xe0] sm:$0xff]
  %v3161 = vld [vmem:[%s3147 + $0xf0] sm:$0xff]
  %v3162 = vld [vmem:[%s3147 + $0x100] sm:$0xff]
  %v3163 = vld [vmem:[%s3147 + $0x110] sm:$0xff]
  %v3164 = vld [vmem:[%s1 + $0x600] sm:$0xff]
  %v3165 = vld [vmem:[%s1 + $0x608] sm:$0xff]
  %v3166 = vld [vmem:[%s1 + $0x610] sm:$0xff]
  %v3167 = vld [vmem:[%s1 + $0x618] sm:$0xff]
  %v3168 = vld [vmem:[%s1 + $0x620] sm:$0xff]
  %v3169 = vld [vmem:[%s1 + $0x628] sm:$0xff]
  %v3170 = vld [vmem:[%s1 + $0x630] sm:$0xff]
  %v3171 = vld [vmem:[%s1 + $0x638] sm:$0xff]
  %v3172 = vld [vmem:[%s1 + $0x640] sm:$0xff]
  %v3173 = vld [vmem:[%s1 + $0x648] sm:$0xff]
  %v3174 = vld [vmem:[%s1 + $0x650] sm:$0xff]
  %v3175 = vld [vmem:[%s1 + $0x658] sm:$0xff]
  %v3176 = vld [vmem:[%s1 + $0x660] sm:$0xff]
  %v3177 = vld [vmem:[%s1 + $0x668] sm:$0xff]
  %v3178 = vld [vmem:[%s1 + $0x670] sm:$0xff]
  %v3179 = vld [vmem:[%s1 + $0x678] sm:$0xff]
  %v3180 = vld [vmem:[%s1 + $0x680] sm:$0xff]
  %v3181 = vld [vmem:[%s1 + $0x688] sm:$0xff]
  %v3182 = vld [vmem:[%s1 + $0x690] sm:$0xff]
  %v3183 = vld [vmem:[%s1 + $0x698] sm:$0xff]
  %v3184 = vld [vmem:[%s1 + $0x6a0] sm:$0xff]
  %v3185 = vld [vmem:[%s1 + $0x6a8] sm:$0xff]
  %v3186 = vld [vmem:[%s1 + $0x6b0] sm:$0xff]
  %v3187 = vld [vmem:[%s1 + $0x6b8] sm:$0xff]
  %v3188 = vld [vmem:[%s1 + $0x6c0] sm:$0xff]
  %v3189 = vld [vmem:[%s1 + $0x6c8] sm:$0xff]
  %v3190 = vld [vmem:[%s1 + $0x6d0] sm:$0xff]
  %v3191 = vld [vmem:[%s1 + $0x6d8] sm:$0xff]
  %v3192 = vld [vmem:[%s1 + $0x6e0] sm:$0xff]
  %v3193 = vld [vmem:[%s1 + $0x6e8] sm:$0xff]
  %v3194 = vld [vmem:[%s1 + $0x6f0] sm:$0xff]
  %v3195 = vld [vmem:[%s1 + $0x6f8] sm:$0xff]
  %v3212 = vunpack.c.l.b16 %v3148
  %v3213 = vunpack.c.h.b16 %v3148
  %v3214 = vunpack.c.l.b16 %v3149
  %v3215 = vunpack.c.h.b16 %v3149
  %v3216 = vunpack.c.l.b16 %v3150
  %v3217 = vunpack.c.h.b16 %v3150
  %v3218 = vunpack.c.l.b16 %v3151
  %v3219 = vunpack.c.h.b16 %v3151
  %v3220 = vunpack.c.l.b16 %v3152
  %v3221 = vunpack.c.h.b16 %v3152
  %v3222 = vunpack.c.l.b16 %v3153
  %v3223 = vunpack.c.h.b16 %v3153
  %v3224 = vunpack.c.l.b16 %v3154
  %v3225 = vunpack.c.h.b16 %v3154
  %v3226 = vunpack.c.l.b16 %v3155
  %v3227 = vunpack.c.h.b16 %v3155
  %v3228 = vunpack.c.l.b16 %v3156
  %v3229 = vunpack.c.h.b16 %v3156
  %v3230 = vunpack.c.l.b16 %v3157
  %v3231 = vunpack.c.h.b16 %v3157
  %v3232 = vunpack.c.l.b16 %v3158
  %v3233 = vunpack.c.h.b16 %v3158
  %v3234 = vunpack.c.l.b16 %v3159
  %v3235 = vunpack.c.h.b16 %v3159
  %v3236 = vunpack.c.l.b16 %v3160
  %v3237 = vunpack.c.h.b16 %v3160
  %v3238 = vunpack.c.l.b16 %v3161
  %v3239 = vunpack.c.h.b16 %v3161
  %v3240 = vunpack.c.l.b16 %v3162
  %v3241 = vunpack.c.h.b16 %v3162
  %v3242 = vunpack.c.l.b16 %v3163
  %v3243 = vunpack.c.h.b16 %v3163
  %v3244 = vpack.c.b16 %v3214, %v3212
  %v3245 = vpack.c.b16 %v3215, %v3213
  %v3246 = vpack.c.b16 %v3218, %v3216
  %v3247 = vpack.c.b16 %v3219, %v3217
  %v3248 = vpack.c.b16 %v3222, %v3220
  %v3249 = vpack.c.b16 %v3223, %v3221
  %v3250 = vpack.c.b16 %v3226, %v3224
  %v3251 = vpack.c.b16 %v3227, %v3225
  %v3252 = vpack.c.b16 %v3230, %v3228
  %v3253 = vpack.c.b16 %v3231, %v3229
  %v3254 = vpack.c.b16 %v3234, %v3232
  %v3255 = vpack.c.b16 %v3235, %v3233
  %v3256 = vpack.c.b16 %v3238, %v3236
  %v3257 = vpack.c.b16 %v3239, %v3237
  %v3258 = vpack.c.b16 %v3242, %v3240
  %v3259 = vpack.c.b16 %v3243, %v3241
  %v3308 = vunpack.c.l.b16 %v3164
  %v3309 = vunpack.c.h.b16 %v3164
  %v3310 = vunpack.c.l.b16 %v3165
  %v3311 = vunpack.c.h.b16 %v3165
  %v3312 = vunpack.c.l.b16 %v3166
  %v3313 = vunpack.c.h.b16 %v3166
  %v3314 = vunpack.c.l.b16 %v3167
  %v3315 = vunpack.c.h.b16 %v3167
  %v3316 = vunpack.c.l.b16 %v3168
  %v3317 = vunpack.c.h.b16 %v3168
  %v3318 = vunpack.c.l.b16 %v3169
  %v3319 = vunpack.c.h.b16 %v3169
  %v3320 = vunpack.c.l.b16 %v3170
  %v3321 = vunpack.c.h.b16 %v3170
  %v3322 = vunpack.c.l.b16 %v3171
  %v3323 = vunpack.c.h.b16 %v3171
  %v3324 = vunpack.c.l.b16 %v3172
  %v3325 = vunpack.c.h.b16 %v3172
  %v3326 = vunpack.c.l.b16 %v3173
  %v3327 = vunpack.c.h.b16 %v3173
  %v3328 = vunpack.c.l.b16 %v3174
  %v3329 = vunpack.c.h.b16 %v3174
  %v3330 = vunpack.c.l.b16 %v3175
  %v3331 = vunpack.c.h.b16 %v3175
  %v3332 = vunpack.c.l.b16 %v3176
  %v3333 = vunpack.c.h.b16 %v3176
  %v3334 = vunpack.c.l.b16 %v3177
  %v3335 = vunpack.c.h.b16 %v3177
  %v3336 = vunpack.c.l.b16 %v3178
  %v3337 = vunpack.c.h.b16 %v3178
  %v3338 = vunpack.c.l.b16 %v3179
  %v3339 = vunpack.c.h.b16 %v3179
  %v3340 = vunpack.c.l.b16 %v3180
  %v3341 = vunpack.c.h.b16 %v3180
  %v3342 = vunpack.c.l.b16 %v3181
  %v3343 = vunpack.c.h.b16 %v3181
  %v3344 = vunpack.c.l.b16 %v3182
  %v3345 = vunpack.c.h.b16 %v3182
  %v3346 = vunpack.c.l.b16 %v3183
  %v3347 = vunpack.c.h.b16 %v3183
  %v3348 = vunpack.c.l.b16 %v3184
  %v3349 = vunpack.c.h.b16 %v3184
  %v3350 = vunpack.c.l.b16 %v3185
  %v3351 = vunpack.c.h.b16 %v3185
  %v3352 = vunpack.c.l.b16 %v3186
  %v3353 = vunpack.c.h.b16 %v3186
  %v3354 = vunpack.c.l.b16 %v3187
  %v3355 = vunpack.c.h.b16 %v3187
  %v3356 = vunpack.c.l.b16 %v3188
  %v3357 = vunpack.c.h.b16 %v3188
  %v3358 = vunpack.c.l.b16 %v3189
  %v3359 = vunpack.c.h.b16 %v3189
  %v3360 = vunpack.c.l.b16 %v3190
  %v3361 = vunpack.c.h.b16 %v3190
  %v3362 = vunpack.c.l.b16 %v3191
  %v3363 = vunpack.c.h.b16 %v3191
  %v3364 = vunpack.c.l.b16 %v3192
  %v3365 = vunpack.c.h.b16 %v3192
  %v3366 = vunpack.c.l.b16 %v3193
  %v3367 = vunpack.c.h.b16 %v3193
  %v3368 = vunpack.c.l.b16 %v3194
  %v3369 = vunpack.c.h.b16 %v3194
  %v3370 = vunpack.c.l.b16 %v3195
  %v3371 = vunpack.c.h.b16 %v3195
  %v3372 = vpack.c.b16 %v3310, %v3308
  %v3373 = vpack.c.b16 %v3311, %v3309
  %v3374 = vpack.c.b16 %v3314, %v3312
  %v3375 = vpack.c.b16 %v3315, %v3313
  %v3376 = vpack.c.b16 %v3318, %v3316
  %v3377 = vpack.c.b16 %v3319, %v3317
  %v3378 = vpack.c.b16 %v3322, %v3320
  %v3379 = vpack.c.b16 %v3323, %v3321
  %v3380 = vpack.c.b16 %v3326, %v3324
  %v3381 = vpack.c.b16 %v3327, %v3325
  %v3382 = vpack.c.b16 %v3330, %v3328
  %v3383 = vpack.c.b16 %v3331, %v3329
  %v3384 = vpack.c.b16 %v3334, %v3332
  %v3385 = vpack.c.b16 %v3335, %v3333
  %v3386 = vpack.c.b16 %v3338, %v3336
  %v3387 = vpack.c.b16 %v3339, %v3337
  %v3388 = vpack.c.b16 %v3342, %v3340
  %v3389 = vpack.c.b16 %v3343, %v3341
  %v3390 = vpack.c.b16 %v3346, %v3344
  %v3391 = vpack.c.b16 %v3347, %v3345
  %v3392 = vpack.c.b16 %v3350, %v3348
  %v3393 = vpack.c.b16 %v3351, %v3349
  %v3394 = vpack.c.b16 %v3354, %v3352
  %v3395 = vpack.c.b16 %v3355, %v3353
  %v3396 = vpack.c.b16 %v3358, %v3356
  %v3397 = vpack.c.b16 %v3359, %v3357
  %v3398 = vpack.c.b16 %v3362, %v3360
  %v3399 = vpack.c.b16 %v3363, %v3361
  %v3400 = vpack.c.b16 %v3366, %v3364
  %v3401 = vpack.c.b16 %v3367, %v3365
  %v3402 = vpack.c.b16 %v3370, %v3368
  %v3403 = vpack.c.b16 %v3371, %v3369
  %3436 = vmatprep.subr.bf16.mxu0 %v3387
  %3437 = vmatpush1.bf16.msra.mxu0 %v3386
  %3438 = vmatprep.subr.bf16.mxu0 %v3385
  %3439 = vmatpush1.bf16.msra.mxu0 %v3384
  %3440 = vmatprep.subr.bf16.mxu0 %v3383
  %3441 = vmatpush1.bf16.msra.mxu0 %v3382
  %3442 = vmatprep.subr.bf16.mxu0 %v3381
  %3443 = vmatpush1.bf16.msra.mxu0 %v3380
  %3444 = vmatprep.subr.bf16.mxu0 %v3379
  %3445 = vmatpush1.bf16.msra.mxu0 %v3378
  %3446 = vmatprep.subr.bf16.mxu0 %v3377
  %3447 = vmatpush1.bf16.msra.mxu0 %v3376
  %3448 = vmatprep.subr.bf16.mxu0 %v3375
  %3449 = vmatpush1.bf16.msra.mxu0 %v3374
  %3450 = vmatprep.subr.bf16.mxu0 %v3373
  %3451 = vmatpush1.bf16.msra.mxu0 %v3372
  %3452 = vmatprep.subr.bf16.mxu0 %v3403
  %3453 = vmatpush2.bf16.msra.mxu0 %v3402
  %3454 = vmatprep.subr.bf16.mxu0 %v3401
  %3455 = vmatpush2.bf16.msra.mxu0 %v3400
  %3456 = vmatprep.subr.bf16.mxu0 %v3399
  %3457 = vmatpush2.bf16.msra.mxu0 %v3398
  %3458 = vmatprep.subr.bf16.mxu0 %v3397
  %3459 = vmatpush2.bf16.msra.mxu0 %v3396
  %3460 = vmatprep.subr.bf16.mxu0 %v3395
  %3461 = vmatpush2.bf16.msra.mxu0 %v3394
  %3462 = vmatprep.subr.bf16.mxu0 %v3393
  %3463 = vmatpush2.bf16.msra.mxu0 %v3392
  %3464 = vmatprep.subr.bf16.mxu0 %v3391
  %3465 = vmatpush2.bf16.msra.mxu0 %v3390
  %3466 = vmatprep.subr.bf16.mxu0 %v3389
  %3467 = vmatpush2.bf16.msra.mxu0 %v3388
  %3468 = vmatprep.mubr.bf16.mxu0 %v3245
  %3469 = vmatmul.mubr.bf16.gmra.mxu0 %v3244
  %v3470 = vpop.f32.mrf.mxu0
  %v3471 = vadd.f32 0.0, %v3470
  %v3472 = vpop.f32.mrf.mxu0
  %v3473 = vadd.f32 0.0, %v3472
  %v3474 = vpop.f32.mrf.mxu0
  %v3475 = vadd.f32 0.0, %v3474
  %v3476 = vpop.f32.mrf.mxu0
  %v3477 = vadd.f32 0.0, %v3476
  %3478 = vmatprep.mubr.bf16.mxu0 %v3247
  %3479 = vmatmul.mubr.bf16.gmra.mxu0 %v3246
  %v3480 = vpop.f32.mrf.mxu0
  %v3481 = vadd.f32 0.0, %v3480
  %v3482 = vpop.f32.mrf.mxu0
  %v3483 = vadd.f32 0.0, %v3482
  %v3484 = vpop.f32.mrf.mxu0
  %v3485 = vadd.f32 0.0, %v3484
  %v3486 = vpop.f32.mrf.mxu0
  %v3487 = vadd.f32 0.0, %v3486
  %3488 = vmatprep.mubr.bf16.mxu0 %v3249
  %3489 = vmatmul.mubr.bf16.gmra.mxu0 %v3248
  %v3490 = vpop.f32.mrf.mxu0
  %v3491 = vadd.f32 0.0, %v3490
  %v3492 = vpop.f32.mrf.mxu0
  %v3493 = vadd.f32 0.0, %v3492
  %v3494 = vpop.f32.mrf.mxu0
  %v3495 = vadd.f32 0.0, %v3494
  %v3496 = vpop.f32.mrf.mxu0
  %v3497 = vadd.f32 0.0, %v3496
  %3498 = vmatprep.mubr.bf16.mxu0 %v3251
  %3499 = vmatmul.mubr.bf16.gmra.mxu0 %v3250
  %v3500 = vpop.f32.mrf.mxu0
  %v3501 = vadd.f32 0.0, %v3500
  %v3502 = vpop.f32.mrf.mxu0
  %v3503 = vadd.f32 0.0, %v3502
  %v3504 = vpop.f32.mrf.mxu0
  %v3505 = vadd.f32 0.0, %v3504
  %v3506 = vpop.f32.mrf.mxu0
  %v3507 = vadd.f32 0.0, %v3506
  %3508 = vmatprep.mubr.bf16.mxu0 %v3253
  %3509 = vmatmul.mubr.bf16.gmra.mxu0 %v3252
  %v3510 = vpop.f32.mrf.mxu0
  %v3511 = vadd.f32 0.0, %v3510
  %v3512 = vpop.f32.mrf.mxu0
  %v3513 = vadd.f32 0.0, %v3512
  %v3514 = vpop.f32.mrf.mxu0
  %v3515 = vadd.f32 0.0, %v3514
  %v3516 = vpop.f32.mrf.mxu0
  %v3517 = vadd.f32 0.0, %v3516
  %3518 = vmatprep.mubr.bf16.mxu0 %v3255
  %3519 = vmatmul.mubr.bf16.gmra.mxu0 %v3254
  %v3520 = vpop.f32.mrf.mxu0
  %v3521 = vadd.f32 0.0, %v3520
  %v3522 = vpop.f32.mrf.mxu0
  %v3523 = vadd.f32 0.0, %v3522
  %v3524 = vpop.f32.mrf.mxu0
  %v3525 = vadd.f32 0.0, %v3524
  %v3526 = vpop.f32.mrf.mxu0
  %v3527 = vadd.f32 0.0, %v3526
  %3528 = vmatprep.mubr.bf16.mxu0 %v3257
  %3529 = vmatmul.mubr.bf16.gmra.mxu0 %v3256
  %v3530 = vpop.f32.mrf.mxu0
  %v3531 = vadd.f32 0.0, %v3530
  %v3532 = vpop.f32.mrf.mxu0
  %v3533 = vadd.f32 0.0, %v3532
  %v3534 = vpop.f32.mrf.mxu0
  %v3535 = vadd.f32 0.0, %v3534
  %v3536 = vpop.f32.mrf.mxu0
  %v3537 = vadd.f32 0.0, %v3536
  %3538 = vmatprep.mubr.bf16.mxu0 %v3259
  %3539 = vmatmul.mubr.bf16.gmra.mxu0 %v3258
  %v3540 = vpop.f32.mrf.mxu0
  %v3541 = vadd.f32 0.0, %v3540
  %v3542 = vpop.f32.mrf.mxu0
  %v3543 = vadd.f32 0.0, %v3542
  %v3544 = vpop.f32.mrf.mxu0
  %v3545 = vadd.f32 0.0, %v3544
  %v3546 = vpop.f32.mrf.mxu0
  %v3547 = vadd.f32 0.0, %v3546
  %3548 = vdwg.mxu0
  %v3549 = vadd.f32 %v3115, %v3471
  %v3550 = vadd.f32 %v3116, %v3473
  %v3551 = vadd.f32 %v3117, %v3475
  %v3552 = vadd.f32 %v3118, %v3477
  %v3553 = vadd.f32 %v3119, %v3481
  %v3554 = vadd.f32 %v3120, %v3483
  %v3555 = vadd.f32 %v3121, %v3485
  %v3556 = vadd.f32 %v3122, %v3487
  %v3557 = vadd.f32 %v3123, %v3491
  %v3558 = vadd.f32 %v3124, %v3493
  %v3559 = vadd.f32 %v3125, %v3495
  %v3560 = vadd.f32 %v3126, %v3497
  %v3561 = vadd.f32 %v3127, %v3501
  %v3562 = vadd.f32 %v3128, %v3503
  %v3563 = vadd.f32 %v3129, %v3505
  %v3564 = vadd.f32 %v3130, %v3507
  %v3565 = vadd.f32 %v3131, %v3511
  %v3566 = vadd.f32 %v3132, %v3513
  %v3567 = vadd.f32 %v3133, %v3515
  %v3568 = vadd.f32 %v3134, %v3517
  %v3569 = vadd.f32 %v3135, %v3521
  %v3570 = vadd.f32 %v3136, %v3523
  %v3571 = vadd.f32 %v3137, %v3525
  %v3572 = vadd.f32 %v3138, %v3527
  %v3573 = vadd.f32 %v3139, %v3531
  %v3574 = vadd.f32 %v3140, %v3533
  %v3575 = vadd.f32 %v3141, %v3535
  %v3576 = vadd.f32 %v3142, %v3537
  %v3577 = vadd.f32 %v3143, %v3541
  %v3578 = vadd.f32 %v3144, %v3543
  %v3579 = vadd.f32 %v3145, %v3545
  %v3580 = vadd.f32 %v3146, %v3547
  %v3581 = vld [vmem:[%s3147] sm:$0xff]
  %v3582 = vld [vmem:[%s3147 + $0x8] sm:$0x11]
  %v3583 = vld [vmem:[%s3147 + $0x10] sm:$0xff]
  %v3584 = vld [vmem:[%s3147 + $0x18] sm:$0x11]
  %v3585 = vld [vmem:[%s3147 + $0x20] sm:$0xff]
  %v3586 = vld [vmem:[%s3147 + $0x28] sm:$0x11]
  %v3587 = vld [vmem:[%s3147 + $0x30] sm:$0xff]
  %v3588 = vld [vmem:[%s3147 + $0x38] sm:$0x11]
  %v3589 = vld [vmem:[%s3147 + $0x40] sm:$0xff]
  %v3590 = vld [vmem:[%s3147 + $0x48] sm:$0x11]
  %v3591 = vld [vmem:[%s3147 + $0x50] sm:$0xff]
  %v3592 = vld [vmem:[%s3147 + $0x58] sm:$0x11]
  %v3593 = vld [vmem:[%s3147 + $0x60] sm:$0xff]
  %v3594 = vld [vmem:[%s3147 + $0x68] sm:$0x11]
  %v3595 = vld [vmem:[%s3147 + $0x70] sm:$0xff]
  %v3596 = vld [vmem:[%s3147 + $0x78] sm:$0x11]
  %v3597 = vld [vmem:[%s3147 + $0xa0] sm:$0xff]
  %v3598 = vld [vmem:[%s3147 + $0xa8] sm:$0x11]
  %v3599 = vld [vmem:[%s3147 + $0xb0] sm:$0xff]
  %v3600 = vld [vmem:[%s3147 + $0xb8] sm:$0x11]
  %v3601 = vld [vmem:[%s3147 + $0xc0] sm:$0xff]
  %v3602 = vld [vmem:[%s3147 + $0xc8] sm:$0x11]
  %v3603 = vld [vmem:[%s3147 + $0xd0] sm:$0xff]
  %v3604 = vld [vmem:[%s3147 + $0xd8] sm:$0x11]
  %v3605 = vld [vmem:[%s3147 + $0xe0] sm:$0xff]
  %v3606 = vld [vmem:[%s3147 + $0xe8] sm:$0x11]
  %v3607 = vld [vmem:[%s3147 + $0xf0] sm:$0xff]
  %v3608 = vld [vmem:[%s3147 + $0xf8] sm:$0x11]
  %v3609 = vld [vmem:[%s3147 + $0x100] sm:$0xff]
  %v3610 = vld [vmem:[%s3147 + $0x108] sm:$0x11]
  %v3611 = vld [vmem:[%s3147 + $0x110] sm:$0xff]
  %v3612 = vld [vmem:[%s3147 + $0x118] sm:$0x11]
  %v3614 = vshrl.u32 %v3581, 16
  %v3616 = vrot.slane %v3614, 4
  %v3617 = vshll.u32 %v3581, 16
  %v3619 = vrot.slane %v3617, 5
  %v3620 = vor.u32 %v3616, %v3619
  %v3621 = vrot.slane %v3620, 4
  %v3623 = vshll.u32 %v3582, 16
  %v3625 = vrot.slane %v3623, 5
  %v3626 = vsel %vm80, %v3621, %v3625
  %v3628 = vshrl.u32 %v3583, 16
  %v3630 = vrot.slane %v3628, 4
  %v3631 = vshll.u32 %v3583, 16
  %v3633 = vrot.slane %v3631, 5
  %v3634 = vor.u32 %v3630, %v3633
  %v3635 = vrot.slane %v3634, 4
  %v3637 = vshll.u32 %v3584, 16
  %v3639 = vrot.slane %v3637, 5
  %v3640 = vsel %vm80, %v3635, %v3639
  %v3642 = vshrl.u32 %v3585, 16
  %v3644 = vrot.slane %v3642, 4
  %v3645 = vshll.u32 %v3585, 16
  %v3647 = vrot.slane %v3645, 5
  %v3648 = vor.u32 %v3644, %v3647
  %v3649 = vrot.slane %v3648, 4
  %v3651 = vshll.u32 %v3586, 16
  %v3653 = vrot.slane %v3651, 5
  %v3654 = vsel %vm80, %v3649, %v3653
  %v3656 = vshrl.u32 %v3587, 16
  %v3658 = vrot.slane %v3656, 4
  %v3659 = vshll.u32 %v3587, 16
  %v3661 = vrot.slane %v3659, 5
  %v3662 = vor.u32 %v3658, %v3661
  %v3663 = vrot.slane %v3662, 4
  %v3665 = vshll.u32 %v3588, 16
  %v3667 = vrot.slane %v3665, 5
  %v3668 = vsel %vm80, %v3663, %v3667
  %v3670 = vshrl.u32 %v3589, 16
  %v3672 = vrot.slane %v3670, 4
  %v3673 = vshll.u32 %v3589, 16
  %v3675 = vrot.slane %v3673, 5
  %v3676 = vor.u32 %v3672, %v3675
  %v3677 = vrot.slane %v3676, 4
  %v3679 = vshll.u32 %v3590, 16
  %v3681 = vrot.slane %v3679, 5
  %v3682 = vsel %vm80, %v3677, %v3681
  %v3684 = vshrl.u32 %v3591, 16
  %v3686 = vrot.slane %v3684, 4
  %v3687 = vshll.u32 %v3591, 16
  %v3689 = vrot.slane %v3687, 5
  %v3690 = vor.u32 %v3686, %v3689
  %v3691 = vrot.slane %v3690, 4
  %v3693 = vshll.u32 %v3592, 16
  %v3695 = vrot.slane %v3693, 5
  %v3696 = vsel %vm80, %v3691, %v3695
  %v3698 = vshrl.u32 %v3593, 16
  %v3700 = vrot.slane %v3698, 4
  %v3701 = vshll.u32 %v3593, 16
  %v3703 = vrot.slane %v3701, 5
  %v3704 = vor.u32 %v3700, %v3703
  %v3705 = vrot.slane %v3704, 4
  %v3707 = vshll.u32 %v3594, 16
  %v3709 = vrot.slane %v3707, 5
  %v3710 = vsel %vm80, %v3705, %v3709
  %v3712 = vshrl.u32 %v3595, 16
  %v3714 = vrot.slane %v3712, 4
  %v3715 = vshll.u32 %v3595, 16
  %v3717 = vrot.slane %v3715, 5
  %v3718 = vor.u32 %v3714, %v3717
  %v3719 = vrot.slane %v3718, 4
  %v3721 = vshll.u32 %v3596, 16
  %v3723 = vrot.slane %v3721, 5
  %v3724 = vsel %vm80, %v3719, %v3723
  %v3726 = vshrl.u32 %v3597, 16
  %v3728 = vrot.slane %v3726, 4
  %v3729 = vshll.u32 %v3597, 16
  %v3731 = vrot.slane %v3729, 5
  %v3732 = vor.u32 %v3728, %v3731
  %v3733 = vrot.slane %v3732, 4
  %v3735 = vshll.u32 %v3598, 16
  %v3737 = vrot.slane %v3735, 5
  %v3738 = vsel %vm80, %v3733, %v3737
  %v3740 = vshrl.u32 %v3599, 16
  %v3742 = vrot.slane %v3740, 4
  %v3743 = vshll.u32 %v3599, 16
  %v3745 = vrot.slane %v3743, 5
  %v3746 = vor.u32 %v3742, %v3745
  %v3747 = vrot.slane %v3746, 4
  %v3749 = vshll.u32 %v3600, 16
  %v3751 = vrot.slane %v3749, 5
  %v3752 = vsel %vm80, %v3747, %v3751
  %v3754 = vshrl.u32 %v3601, 16
  %v3756 = vrot.slane %v3754, 4
  %v3757 = vshll.u32 %v3601, 16
  %v3759 = vrot.slane %v3757, 5
  %v3760 = vor.u32 %v3756, %v3759
  %v3761 = vrot.slane %v3760, 4
  %v3763 = vshll.u32 %v3602, 16
  %v3765 = vrot.slane %v3763, 5
  %v3766 = vsel %vm80, %v3761, %v3765
  %v3768 = vshrl.u32 %v3603, 16
  %v3770 = vrot.slane %v3768, 4
  %v3771 = vshll.u32 %v3603, 16
  %v3773 = vrot.slane %v3771, 5
  %v3774 = vor.u32 %v3770, %v3773
  %v3775 = vrot.slane %v3774, 4
  %v3777 = vshll.u32 %v3604, 16
  %v3779 = vrot.slane %v3777, 5
  %v3780 = vsel %vm80, %v3775, %v3779
  %v3782 = vshrl.u32 %v3605, 16
  %v3784 = vrot.slane %v3782, 4
  %v3785 = vshll.u32 %v3605, 16
  %v3787 = vrot.slane %v3785, 5
  %v3788 = vor.u32 %v3784, %v3787
  %v3789 = vrot.slane %v3788, 4
  %v3791 = vshll.u32 %v3606, 16
  %v3793 = vrot.slane %v3791, 5
  %v3794 = vsel %vm80, %v3789, %v3793
  %v3796 = vshrl.u32 %v3607, 16
  %v3798 = vrot.slane %v3796, 4
  %v3799 = vshll.u32 %v3607, 16
  %v3801 = vrot.slane %v3799, 5
  %v3802 = vor.u32 %v3798, %v3801
  %v3803 = vrot.slane %v3802, 4
  %v3805 = vshll.u32 %v3608, 16
  %v3807 = vrot.slane %v3805, 5
  %v3808 = vsel %vm80, %v3803, %v3807
  %v3810 = vshrl.u32 %v3609, 16
  %v3812 = vrot.slane %v3810, 4
  %v3813 = vshll.u32 %v3609, 16
  %v3815 = vrot.slane %v3813, 5
  %v3816 = vor.u32 %v3812, %v3815
  %v3817 = vrot.slane %v3816, 4
  %v3819 = vshll.u32 %v3610, 16
  %v3821 = vrot.slane %v3819, 5
  %v3822 = vsel %vm80, %v3817, %v3821
  %v3824 = vshrl.u32 %v3611, 16
  %v3826 = vrot.slane %v3824, 4
  %v3827 = vshll.u32 %v3611, 16
  %v3829 = vrot.slane %v3827, 5
  %v3830 = vor.u32 %v3826, %v3829
  %v3831 = vrot.slane %v3830, 4
  %v3833 = vshll.u32 %v3612, 16
  %v3835 = vrot.slane %v3833, 5
  %v3836 = vsel %vm80, %v3831, %v3835
  %v3837 = vld [vmem:[%s1 + $0x700] sm:$0xff]
  %v3838 = vld [vmem:[%s1 + $0x708] sm:$0xff]
  %v3839 = vld [vmem:[%s1 + $0x710] sm:$0xff]
  %v3840 = vld [vmem:[%s1 + $0x718] sm:$0xff]
  %v3841 = vld [vmem:[%s1 + $0x720] sm:$0xff]
  %v3842 = vld [vmem:[%s1 + $0x728] sm:$0xff]
  %v3843 = vld [vmem:[%s1 + $0x730] sm:$0xff]
  %v3844 = vld [vmem:[%s1 + $0x738] sm:$0xff]
  %v3845 = vld [vmem:[%s1 + $0x740] sm:$0xff]
  %v3846 = vld [vmem:[%s1 + $0x748] sm:$0xff]
  %v3847 = vld [vmem:[%s1 + $0x750] sm:$0xff]
  %v3848 = vld [vmem:[%s1 + $0x758] sm:$0xff]
  %v3849 = vld [vmem:[%s1 + $0x760] sm:$0xff]
  %v3850 = vld [vmem:[%s1 + $0x768] sm:$0xff]
  %v3851 = vld [vmem:[%s1 + $0x770] sm:$0xff]
  %v3852 = vld [vmem:[%s1 + $0x778] sm:$0xff]
  %v3853 = vld [vmem:[%s1 + $0x780] sm:$0xff]
  %v3854 = vld [vmem:[%s1 + $0x788] sm:$0xff]
  %v3855 = vld [vmem:[%s1 + $0x790] sm:$0xff]
  %v3856 = vld [vmem:[%s1 + $0x798] sm:$0xff]
  %v3857 = vld [vmem:[%s1 + $0x7a0] sm:$0xff]
  %v3858 = vld [vmem:[%s1 + $0x7a8] sm:$0xff]
  %v3859 = vld [vmem:[%s1 + $0x7b0] sm:$0xff]
  %v3860 = vld [vmem:[%s1 + $0x7b8] sm:$0xff]
  %v3861 = vld [vmem:[%s1 + $0x7c0] sm:$0xff]
  %v3862 = vld [vmem:[%s1 + $0x7c8] sm:$0xff]
  %v3863 = vld [vmem:[%s1 + $0x7d0] sm:$0xff]
  %v3864 = vld [vmem:[%s1 + $0x7d8] sm:$0xff]
  %v3865 = vld [vmem:[%s1 + $0x7e0] sm:$0xff]
  %v3866 = vld [vmem:[%s1 + $0x7e8] sm:$0xff]
  %v3867 = vld [vmem:[%s1 + $0x7f0] sm:$0xff]
  %v3868 = vld [vmem:[%s1 + $0x7f8] sm:$0xff]
  %v3869 = vunpack.c.l.b16 %v3626
  %v3870 = vunpack.c.h.b16 %v3626
  %v3871 = vunpack.c.l.b16 %v3640
  %v3872 = vunpack.c.h.b16 %v3640
  %v3873 = vunpack.c.l.b16 %v3654
  %v3874 = vunpack.c.h.b16 %v3654
  %v3875 = vunpack.c.l.b16 %v3668
  %v3876 = vunpack.c.h.b16 %v3668
  %v3877 = vunpack.c.l.b16 %v3682
  %v3878 = vunpack.c.h.b16 %v3682
  %v3879 = vunpack.c.l.b16 %v3696
  %v3880 = vunpack.c.h.b16 %v3696
  %v3881 = vunpack.c.l.b16 %v3710
  %v3882 = vunpack.c.h.b16 %v3710
  %v3883 = vunpack.c.l.b16 %v3724
  %v3884 = vunpack.c.h.b16 %v3724
  %v3885 = vunpack.c.l.b16 %v3738
  %v3886 = vunpack.c.h.b16 %v3738
  %v3887 = vunpack.c.l.b16 %v3752
  %v3888 = vunpack.c.h.b16 %v3752
  %v3889 = vunpack.c.l.b16 %v3766
  %v3890 = vunpack.c.h.b16 %v3766
  %v3891 = vunpack.c.l.b16 %v3780
  %v3892 = vunpack.c.h.b16 %v3780
  %v3893 = vunpack.c.l.b16 %v3794
  %v3894 = vunpack.c.h.b16 %v3794
  %v3895 = vunpack.c.l.b16 %v3808
  %v3896 = vunpack.c.h.b16 %v3808
  %v3897 = vunpack.c.l.b16 %v3822
  %v3898 = vunpack.c.h.b16 %v3822
  %v3899 = vunpack.c.l.b16 %v3836
  %v3900 = vunpack.c.h.b16 %v3836
  %v3901 = vpack.c.b16 %v3871, %v3869
  %v3902 = vpack.c.b16 %v3872, %v3870
  %v3903 = vpack.c.b16 %v3875, %v3873
  %v3904 = vpack.c.b16 %v3876, %v3874
  %v3905 = vpack.c.b16 %v3879, %v3877
  %v3906 = vpack.c.b16 %v3880, %v3878
  %v3907 = vpack.c.b16 %v3883, %v3881
  %v3908 = vpack.c.b16 %v3884, %v3882
  %v3909 = vpack.c.b16 %v3887, %v3885
  %v3910 = vpack.c.b16 %v3888, %v3886
  %v3911 = vpack.c.b16 %v3891, %v3889
  %v3912 = vpack.c.b16 %v3892, %v3890
  %v3913 = vpack.c.b16 %v3895, %v3893
  %v3914 = vpack.c.b16 %v3896, %v3894
  %v3915 = vpack.c.b16 %v3899, %v3897
  %v3916 = vpack.c.b16 %v3900, %v3898
  %v3965 = vunpack.c.l.b16 %v3837
  %v3966 = vunpack.c.h.b16 %v3837
  %v3967 = vunpack.c.l.b16 %v3838
  %v3968 = vunpack.c.h.b16 %v3838
  %v3969 = vunpack.c.l.b16 %v3839
  %v3970 = vunpack.c.h.b16 %v3839
  %v3971 = vunpack.c.l.b16 %v3840
  %v3972 = vunpack.c.h.b16 %v3840
  %v3973 = vunpack.c.l.b16 %v3841
  %v3974 = vunpack.c.h.b16 %v3841
  %v3975 = vunpack.c.l.b16 %v3842
  %v3976 = vunpack.c.h.b16 %v3842
  %v3977 = vunpack.c.l.b16 %v3843
  %v3978 = vunpack.c.h.b16 %v3843
  %v3979 = vunpack.c.l.b16 %v3844
  %v3980 = vunpack.c.h.b16 %v3844
  %v3981 = vunpack.c.l.b16 %v3845
  %v3982 = vunpack.c.h.b16 %v3845
  %v3983 = vunpack.c.l.b16 %v3846
  %v3984 = vunpack.c.h.b16 %v3846
  %v3985 = vunpack.c.l.b16 %v3847
  %v3986 = vunpack.c.h.b16 %v3847
  %v3987 = vunpack.c.l.b16 %v3848
  %v3988 = vunpack.c.h.b16 %v3848
  %v3989 = vunpack.c.l.b16 %v3849
  %v3990 = vunpack.c.h.b16 %v3849
  %v3991 = vunpack.c.l.b16 %v3850
  %v3992 = vunpack.c.h.b16 %v3850
  %v3993 = vunpack.c.l.b16 %v3851
  %v3994 = vunpack.c.h.b16 %v3851
  %v3995 = vunpack.c.l.b16 %v3852
  %v3996 = vunpack.c.h.b16 %v3852
  %v3997 = vunpack.c.l.b16 %v3853
  %v3998 = vunpack.c.h.b16 %v3853
  %v3999 = vunpack.c.l.b16 %v3854
  %v4000 = vunpack.c.h.b16 %v3854
  %v4001 = vunpack.c.l.b16 %v3855
  %v4002 = vunpack.c.h.b16 %v3855
  %v4003 = vunpack.c.l.b16 %v3856
  %v4004 = vunpack.c.h.b16 %v3856
  %v4005 = vunpack.c.l.b16 %v3857
  %v4006 = vunpack.c.h.b16 %v3857
  %v4007 = vunpack.c.l.b16 %v3858
  %v4008 = vunpack.c.h.b16 %v3858
  %v4009 = vunpack.c.l.b16 %v3859
  %v4010 = vunpack.c.h.b16 %v3859
  %v4011 = vunpack.c.l.b16 %v3860
  %v4012 = vunpack.c.h.b16 %v3860
  %v4013 = vunpack.c.l.b16 %v3861
  %v4014 = vunpack.c.h.b16 %v3861
  %v4015 = vunpack.c.l.b16 %v3862
  %v4016 = vunpack.c.h.b16 %v3862
  %v4017 = vunpack.c.l.b16 %v3863
  %v4018 = vunpack.c.h.b16 %v3863
  %v4019 = vunpack.c.l.b16 %v3864
  %v4020 = vunpack.c.h.b16 %v3864
  %v4021 = vunpack.c.l.b16 %v3865
  %v4022 = vunpack.c.h.b16 %v3865
  %v4023 = vunpack.c.l.b16 %v3866
  %v4024 = vunpack.c.h.b16 %v3866
  %v4025 = vunpack.c.l.b16 %v3867
  %v4026 = vunpack.c.h.b16 %v3867
  %v4027 = vunpack.c.l.b16 %v3868
  %v4028 = vunpack.c.h.b16 %v3868
  %v4029 = vpack.c.b16 %v3967, %v3965
  %v4030 = vpack.c.b16 %v3968, %v3966
  %v4031 = vpack.c.b16 %v3971, %v3969
  %v4032 = vpack.c.b16 %v3972, %v3970
  %v4033 = vpack.c.b16 %v3975, %v3973
  %v4034 = vpack.c.b16 %v3976, %v3974
  %v4035 = vpack.c.b16 %v3979, %v3977
  %v4036 = vpack.c.b16 %v3980, %v3978
  %v4037 = vpack.c.b16 %v3983, %v3981
  %v4038 = vpack.c.b16 %v3984, %v3982
  %v4039 = vpack.c.b16 %v3987, %v3985
  %v4040 = vpack.c.b16 %v3988, %v3986
  %v4041 = vpack.c.b16 %v3991, %v3989
  %v4042 = vpack.c.b16 %v3992, %v3990
  %v4043 = vpack.c.b16 %v3995, %v3993
  %v4044 = vpack.c.b16 %v3996, %v3994
  %v4045 = vpack.c.b16 %v3999, %v3997
  %v4046 = vpack.c.b16 %v4000, %v3998
  %v4047 = vpack.c.b16 %v4003, %v4001
  %v4048 = vpack.c.b16 %v4004, %v4002
  %v4049 = vpack.c.b16 %v4007, %v4005
  %v4050 = vpack.c.b16 %v4008, %v4006
  %v4051 = vpack.c.b16 %v4011, %v4009
  %v4052 = vpack.c.b16 %v4012, %v4010
  %v4053 = vpack.c.b16 %v4015, %v4013
  %v4054 = vpack.c.b16 %v4016, %v4014
  %v4055 = vpack.c.b16 %v4019, %v4017
  %v4056 = vpack.c.b16 %v4020, %v4018
  %v4057 = vpack.c.b16 %v4023, %v4021
  %v4058 = vpack.c.b16 %v4024, %v4022
  %v4059 = vpack.c.b16 %v4027, %v4025
  %v4060 = vpack.c.b16 %v4028, %v4026
  %4093 = vmatprep.subr.bf16.mxu0 %v4044
  %4094 = vmatpush1.bf16.msra.mxu0 %v4043
  %4095 = vmatprep.subr.bf16.mxu0 %v4042
  %4096 = vmatpush1.bf16.msra.mxu0 %v4041
  %4097 = vmatprep.subr.bf16.mxu0 %v4040
  %4098 = vmatpush1.bf16.msra.mxu0 %v4039
  %4099 = vmatprep.subr.bf16.mxu0 %v4038
  %4100 = vmatpush1.bf16.msra.mxu0 %v4037
  %4101 = vmatprep.subr.bf16.mxu0 %v4036
  %4102 = vmatpush1.bf16.msra.mxu0 %v4035
  %4103 = vmatprep.subr.bf16.mxu0 %v4034
  %4104 = vmatpush1.bf16.msra.mxu0 %v4033
  %4105 = vmatprep.subr.bf16.mxu0 %v4032
  %4106 = vmatpush1.bf16.msra.mxu0 %v4031
  %4107 = vmatprep.subr.bf16.mxu0 %v4030
  %4108 = vmatpush1.bf16.msra.mxu0 %v4029
  %4109 = vmatprep.subr.bf16.mxu0 %v4060
  %4110 = vmatpush2.bf16.msra.mxu0 %v4059
  %4111 = vmatprep.subr.bf16.mxu0 %v4058
  %4112 = vmatpush2.bf16.msra.mxu0 %v4057
  %4113 = vmatprep.subr.bf16.mxu0 %v4056
  %4114 = vmatpush2.bf16.msra.mxu0 %v4055
  %4115 = vmatprep.subr.bf16.mxu0 %v4054
  %4116 = vmatpush2.bf16.msra.mxu0 %v4053
  %4117 = vmatprep.subr.bf16.mxu0 %v4052
  %4118 = vmatpush2.bf16.msra.mxu0 %v4051
  %4119 = vmatprep.subr.bf16.mxu0 %v4050
  %4120 = vmatpush2.bf16.msra.mxu0 %v4049
  %4121 = vmatprep.subr.bf16.mxu0 %v4048
  %4122 = vmatpush2.bf16.msra.mxu0 %v4047
  %4123 = vmatprep.subr.bf16.mxu0 %v4046
  %4124 = vmatpush2.bf16.msra.mxu0 %v4045
  %4125 = vmatprep.mubr.bf16.mxu0 %v3902
  %4126 = vmatmul.mubr.bf16.gmra.mxu0 %v3901
  %v4127 = vpop.f32.mrf.mxu0
  %v4128 = vadd.f32 0.0, %v4127
  %v4129 = vpop.f32.mrf.mxu0
  %v4130 = vadd.f32 0.0, %v4129
  %v4131 = vpop.f32.mrf.mxu0
  %v4132 = vadd.f32 0.0, %v4131
  %v4133 = vpop.f32.mrf.mxu0
  %v4134 = vadd.f32 0.0, %v4133
  %4135 = vmatprep.mubr.bf16.mxu0 %v3904
  %4136 = vmatmul.mubr.bf16.gmra.mxu0 %v3903
  %v4137 = vpop.f32.mrf.mxu0
  %v4138 = vadd.f32 0.0, %v4137
  %v4139 = vpop.f32.mrf.mxu0
  %v4140 = vadd.f32 0.0, %v4139
  %v4141 = vpop.f32.mrf.mxu0
  %v4142 = vadd.f32 0.0, %v4141
  %v4143 = vpop.f32.mrf.mxu0
  %v4144 = vadd.f32 0.0, %v4143
  %4145 = vmatprep.mubr.bf16.mxu0 %v3906
  %4146 = vmatmul.mubr.bf16.gmra.mxu0 %v3905
  %v4147 = vpop.f32.mrf.mxu0
  %v4148 = vadd.f32 0.0, %v4147
  %v4149 = vpop.f32.mrf.mxu0
  %v4150 = vadd.f32 0.0, %v4149
  %v4151 = vpop.f32.mrf.mxu0
  %v4152 = vadd.f32 0.0, %v4151
  %v4153 = vpop.f32.mrf.mxu0
  %v4154 = vadd.f32 0.0, %v4153
  %4155 = vmatprep.mubr.bf16.mxu0 %v3908
  %4156 = vmatmul.mubr.bf16.gmra.mxu0 %v3907
  %v4157 = vpop.f32.mrf.mxu0
  %v4158 = vadd.f32 0.0, %v4157
  %v4159 = vpop.f32.mrf.mxu0
  %v4160 = vadd.f32 0.0, %v4159
  %v4161 = vpop.f32.mrf.mxu0
  %v4162 = vadd.f32 0.0, %v4161
  %v4163 = vpop.f32.mrf.mxu0
  %v4164 = vadd.f32 0.0, %v4163
  %4165 = vmatprep.mubr.bf16.mxu0 %v3910
  %4166 = vmatmul.mubr.bf16.gmra.mxu0 %v3909
  %v4167 = vpop.f32.mrf.mxu0
  %v4168 = vadd.f32 0.0, %v4167
  %v4169 = vpop.f32.mrf.mxu0
  %v4170 = vadd.f32 0.0, %v4169
  %v4171 = vpop.f32.mrf.mxu0
  %v4172 = vadd.f32 0.0, %v4171
  %v4173 = vpop.f32.mrf.mxu0
  %v4174 = vadd.f32 0.0, %v4173
  %4175 = vmatprep.mubr.bf16.mxu0 %v3912
  %4176 = vmatmul.mubr.bf16.gmra.mxu0 %v3911
  %v4177 = vpop.f32.mrf.mxu0
  %v4178 = vadd.f32 0.0, %v4177
  %v4179 = vpop.f32.mrf.mxu0
  %v4180 = vadd.f32 0.0, %v4179
  %v4181 = vpop.f32.mrf.mxu0
  %v4182 = vadd.f32 0.0, %v4181
  %v4183 = vpop.f32.mrf.mxu0
  %v4184 = vadd.f32 0.0, %v4183
  %4185 = vmatprep.mubr.bf16.mxu0 %v3914
  %4186 = vmatmul.mubr.bf16.gmra.mxu0 %v3913
  %v4187 = vpop.f32.mrf.mxu0
  %v4188 = vadd.f32 0.0, %v4187
  %v4189 = vpop.f32.mrf.mxu0
  %v4190 = vadd.f32 0.0, %v4189
  %v4191 = vpop.f32.mrf.mxu0
  %v4192 = vadd.f32 0.0, %v4191
  %v4193 = vpop.f32.mrf.mxu0
  %v4194 = vadd.f32 0.0, %v4193
  %4195 = vmatprep.mubr.bf16.mxu0 %v3916
  %4196 = vmatmul.mubr.bf16.gmra.mxu0 %v3915
  %v4197 = vpop.f32.mrf.mxu0
  %v4198 = vadd.f32 0.0, %v4197
  %v4199 = vpop.f32.mrf.mxu0
  %v4200 = vadd.f32 0.0, %v4199
  %v4201 = vpop.f32.mrf.mxu0
  %v4202 = vadd.f32 0.0, %v4201
  %v4203 = vpop.f32.mrf.mxu0
  %v4204 = vadd.f32 0.0, %v4203
  %4205 = vdwg.mxu0
  %v4206 = vadd.f32 %v3549, %v4128
  %v4207 = vadd.f32 %v3550, %v4130
  %v4208 = vadd.f32 %v3551, %v4132
  %v4209 = vadd.f32 %v3552, %v4134
  %v4210 = vadd.f32 %v3553, %v4138
  %v4211 = vadd.f32 %v3554, %v4140
  %v4212 = vadd.f32 %v3555, %v4142
  %v4213 = vadd.f32 %v3556, %v4144
  %v4214 = vadd.f32 %v3557, %v4148
  %v4215 = vadd.f32 %v3558, %v4150
  %v4216 = vadd.f32 %v3559, %v4152
  %v4217 = vadd.f32 %v3560, %v4154
  %v4218 = vadd.f32 %v3561, %v4158
  %v4219 = vadd.f32 %v3562, %v4160
  %v4220 = vadd.f32 %v3563, %v4162
  %v4221 = vadd.f32 %v3564, %v4164
  %v4222 = vadd.f32 %v3565, %v4168
  %v4223 = vadd.f32 %v3566, %v4170
  %v4224 = vadd.f32 %v3567, %v4172
  %v4225 = vadd.f32 %v3568, %v4174
  %v4226 = vadd.f32 %v3569, %v4178
  %v4227 = vadd.f32 %v3570, %v4180
  %v4228 = vadd.f32 %v3571, %v4182
  %v4229 = vadd.f32 %v3572, %v4184
  %v4230 = vadd.f32 %v3573, %v4188
  %v4231 = vadd.f32 %v3574, %v4190
  %v4232 = vadd.f32 %v3575, %v4192
  %v4233 = vadd.f32 %v3576, %v4194
  %v4234 = vadd.f32 %v3577, %v4198
  %v4235 = vadd.f32 %v3578, %v4200
  %v4236 = vadd.f32 %v3579, %v4202
  %v4237 = vadd.f32 %v3580, %v4204
  %v4238 = vld [vmem:[%s3147] sm:$0xee]
  %v4239 = vld [vmem:[%s3147 + $0x10] sm:$0xee]
  %v4240 = vld [vmem:[%s3147 + $0x20] sm:$0xee]
  %v4241 = vld [vmem:[%s3147 + $0x30] sm:$0xee]
  %v4242 = vld [vmem:[%s3147 + $0x40] sm:$0xee]
  %v4243 = vld [vmem:[%s3147 + $0x50] sm:$0xee]
  %v4244 = vld [vmem:[%s3147 + $0x60] sm:$0xee]
  %v4245 = vld [vmem:[%s3147 + $0x70] sm:$0xee]
  %v4246 = vld [vmem:[%s3147 + $0xa0] sm:$0xee]
  %v4247 = vld [vmem:[%s3147 + $0xb0] sm:$0xee]
  %v4248 = vld [vmem:[%s3147 + $0xc0] sm:$0xee]
  %v4249 = vld [vmem:[%s3147 + $0xd0] sm:$0xee]
  %v4250 = vld [vmem:[%s3147 + $0xe0] sm:$0xee]
  %v4251 = vld [vmem:[%s3147 + $0xf0] sm:$0xee]
  %v4252 = vld [vmem:[%s3147 + $0x100] sm:$0xee]
  %v4253 = vld [vmem:[%s3147 + $0x110] sm:$0xee]
  %v4286 = vrot.slane %v4238, 5
  %v4287 = vrot.slane %v4286, 4
  %v4288 = vrot.slane %v3582, 5
  %v4289 = vsel %vm1077, %v4287, %v4288
  %v4290 = vrot.slane %v4239, 5
  %v4291 = vrot.slane %v4290, 4
  %v4292 = vrot.slane %v3584, 5
  %v4293 = vsel %vm1077, %v4291, %v4292
  %v4294 = vrot.slane %v4240, 5
  %v4295 = vrot.slane %v4294, 4
  %v4296 = vrot.slane %v3586, 5
  %v4297 = vsel %vm1077, %v4295, %v4296
  %v4298 = vrot.slane %v4241, 5
  %v4299 = vrot.slane %v4298, 4
  %v4300 = vrot.slane %v3588, 5
  %v4301 = vsel %vm1077, %v4299, %v4300
  %v4302 = vrot.slane %v4242, 5
  %v4303 = vrot.slane %v4302, 4
  %v4304 = vrot.slane %v3590, 5
  %v4305 = vsel %vm1077, %v4303, %v4304
  %v4306 = vrot.slane %v4243, 5
  %v4307 = vrot.slane %v4306, 4
  %v4308 = vrot.slane %v3592, 5
  %v4309 = vsel %vm1077, %v4307, %v4308
  %v4310 = vrot.slane %v4244, 5
  %v4311 = vrot.slane %v4310, 4
  %v4312 = vrot.slane %v3594, 5
  %v4313 = vsel %vm1077, %v4311, %v4312
  %v4314 = vrot.slane %v4245, 5
  %v4315 = vrot.slane %v4314, 4
  %v4316 = vrot.slane %v3596, 5
  %v4317 = vsel %vm1077, %v4315, %v4316
  %v4318 = vrot.slane %v4246, 5
  %v4319 = vrot.slane %v4318, 4
  %v4320 = vrot.slane %v3598, 5
  %v4321 = vsel %vm1077, %v4319, %v4320
  %v4322 = vrot.slane %v4247, 5
  %v4323 = vrot.slane %v4322, 4
  %v4324 = vrot.slane %v3600, 5
  %v4325 = vsel %vm1077, %v4323, %v4324
  %v4326 = vrot.slane %v4248, 5
  %v4327 = vrot.slane %v4326, 4
  %v4328 = vrot.slane %v3602, 5
  %v4329 = vsel %vm1077, %v4327, %v4328
  %v4330 = vrot.slane %v4249, 5
  %v4331 = vrot.slane %v4330, 4
  %v4332 = vrot.slane %v3604, 5
  %v4333 = vsel %vm1077, %v4331, %v4332
  %v4334 = vrot.slane %v4250, 5
  %v4335 = vrot.slane %v4334, 4
  %v4336 = vrot.slane %v3606, 5
  %v4337 = vsel %vm1077, %v4335, %v4336
  %v4338 = vrot.slane %v4251, 5
  %v4339 = vrot.slane %v4338, 4
  %v4340 = vrot.slane %v3608, 5
  %v4341 = vsel %vm1077, %v4339, %v4340
  %v4342 = vrot.slane %v4252, 5
  %v4343 = vrot.slane %v4342, 4
  %v4344 = vrot.slane %v3610, 5
  %v4345 = vsel %vm1077, %v4343, %v4344
  %v4346 = vrot.slane %v4253, 5
  %v4347 = vrot.slane %v4346, 4
  %v4348 = vrot.slane %v3612, 5
  %v4349 = vsel %vm1077, %v4347, %v4348
  %v4350 = vld [vmem:[%s1 + $0x800] sm:$0xff]
  %v4351 = vld [vmem:[%s1 + $0x808] sm:$0xff]
  %v4352 = vld [vmem:[%s1 + $0x810] sm:$0xff]
  %v4353 = vld [vmem:[%s1 + $0x818] sm:$0xff]
  %v4354 = vld [vmem:[%s1 + $0x820] sm:$0xff]
  %v4355 = vld [vmem:[%s1 + $0x828] sm:$0xff]
  %v4356 = vld [vmem:[%s1 + $0x830] sm:$0xff]
  %v4357 = vld [vmem:[%s1 + $0x838] sm:$0xff]
  %v4358 = vld [vmem:[%s1 + $0x840] sm:$0xff]
  %v4359 = vld [vmem:[%s1 + $0x848] sm:$0xff]
  %v4360 = vld [vmem:[%s1 + $0x850] sm:$0xff]
  %v4361 = vld [vmem:[%s1 + $0x858] sm:$0xff]
  %v4362 = vld [vmem:[%s1 + $0x860] sm:$0xff]
  %v4363 = vld [vmem:[%s1 + $0x868] sm:$0xff]
  %v4364 = vld [vmem:[%s1 + $0x870] sm:$0xff]
  %v4365 = vld [vmem:[%s1 + $0x878] sm:$0xff]
  %v4366 = vld [vmem:[%s1 + $0x880] sm:$0xff]
  %v4367 = vld [vmem:[%s1 + $0x888] sm:$0xff]
  %v4368 = vld [vmem:[%s1 + $0x890] sm:$0xff]
  %v4369 = vld [vmem:[%s1 + $0x898] sm:$0xff]
  %v4370 = vld [vmem:[%s1 + $0x8a0] sm:$0xff]
  %v4371 = vld [vmem:[%s1 + $0x8a8] sm:$0xff]
  %v4372 = vld [vmem:[%s1 + $0x8b0] sm:$0xff]
  %v4373 = vld [vmem:[%s1 + $0x8b8] sm:$0xff]
  %v4374 = vld [vmem:[%s1 + $0x8c0] sm:$0xff]
  %v4375 = vld [vmem:[%s1 + $0x8c8] sm:$0xff]
  %v4376 = vld [vmem:[%s1 + $0x8d0] sm:$0xff]
  %v4377 = vld [vmem:[%s1 + $0x8d8] sm:$0xff]
  %v4378 = vld [vmem:[%s1 + $0x8e0] sm:$0xff]
  %v4379 = vld [vmem:[%s1 + $0x8e8] sm:$0xff]
  %v4380 = vld [vmem:[%s1 + $0x8f0] sm:$0xff]
  %v4381 = vld [vmem:[%s1 + $0x8f8] sm:$0xff]
  %v4382 = vunpack.c.l.b16 %v4289
  %v4383 = vunpack.c.h.b16 %v4289
  %v4384 = vunpack.c.l.b16 %v4293
  %v4385 = vunpack.c.h.b16 %v4293
  %v4386 = vunpack.c.l.b16 %v4297
  %v4387 = vunpack.c.h.b16 %v4297
  %v4388 = vunpack.c.l.b16 %v4301
  %v4389 = vunpack.c.h.b16 %v4301
  %v4390 = vunpack.c.l.b16 %v4305
  %v4391 = vunpack.c.h.b16 %v4305
  %v4392 = vunpack.c.l.b16 %v4309
  %v4393 = vunpack.c.h.b16 %v4309
  %v4394 = vunpack.c.l.b16 %v4313
  %v4395 = vunpack.c.h.b16 %v4313
  %v4396 = vunpack.c.l.b16 %v4317
  %v4397 = vunpack.c.h.b16 %v4317
  %v4398 = vunpack.c.l.b16 %v4321
  %v4399 = vunpack.c.h.b16 %v4321
  %v4400 = vunpack.c.l.b16 %v4325
  %v4401 = vunpack.c.h.b16 %v4325
  %v4402 = vunpack.c.l.b16 %v4329
  %v4403 = vunpack.c.h.b16 %v4329
  %v4404 = vunpack.c.l.b16 %v4333
  %v4405 = vunpack.c.h.b16 %v4333
  %v4406 = vunpack.c.l.b16 %v4337
  %v4407 = vunpack.c.h.b16 %v4337
  %v4408 = vunpack.c.l.b16 %v4341
  %v4409 = vunpack.c.h.b16 %v4341
  %v4410 = vunpack.c.l.b16 %v4345
  %v4411 = vunpack.c.h.b16 %v4345
  %v4412 = vunpack.c.l.b16 %v4349
  %v4413 = vunpack.c.h.b16 %v4349
  %v4414 = vpack.c.b16 %v4384, %v4382
  %v4415 = vpack.c.b16 %v4385, %v4383
  %v4416 = vpack.c.b16 %v4388, %v4386
  %v4417 = vpack.c.b16 %v4389, %v4387
  %v4418 = vpack.c.b16 %v4392, %v4390
  %v4419 = vpack.c.b16 %v4393, %v4391
  %v4420 = vpack.c.b16 %v4396, %v4394
  %v4421 = vpack.c.b16 %v4397, %v4395
  %v4422 = vpack.c.b16 %v4400, %v4398
  %v4423 = vpack.c.b16 %v4401, %v4399
  %v4424 = vpack.c.b16 %v4404, %v4402
  %v4425 = vpack.c.b16 %v4405, %v4403
  %v4426 = vpack.c.b16 %v4408, %v4406
  %v4427 = vpack.c.b16 %v4409, %v4407
  %v4428 = vpack.c.b16 %v4412, %v4410
  %v4429 = vpack.c.b16 %v4413, %v4411
  %v4478 = vunpack.c.l.b16 %v4350
  %v4479 = vunpack.c.h.b16 %v4350
  %v4480 = vunpack.c.l.b16 %v4351
  %v4481 = vunpack.c.h.b16 %v4351
  %v4482 = vunpack.c.l.b16 %v4352
  %v4483 = vunpack.c.h.b16 %v4352
  %v4484 = vunpack.c.l.b16 %v4353
  %v4485 = vunpack.c.h.b16 %v4353
  %v4486 = vunpack.c.l.b16 %v4354
  %v4487 = vunpack.c.h.b16 %v4354
  %v4488 = vunpack.c.l.b16 %v4355
  %v4489 = vunpack.c.h.b16 %v4355
  %v4490 = vunpack.c.l.b16 %v4356
  %v4491 = vunpack.c.h.b16 %v4356
  %v4492 = vunpack.c.l.b16 %v4357
  %v4493 = vunpack.c.h.b16 %v4357
  %v4494 = vunpack.c.l.b16 %v4358
  %v4495 = vunpack.c.h.b16 %v4358
  %v4496 = vunpack.c.l.b16 %v4359
  %v4497 = vunpack.c.h.b16 %v4359
  %v4498 = vunpack.c.l.b16 %v4360
  %v4499 = vunpack.c.h.b16 %v4360
  %v4500 = vunpack.c.l.b16 %v4361
  %v4501 = vunpack.c.h.b16 %v4361
  %v4502 = vunpack.c.l.b16 %v4362
  %v4503 = vunpack.c.h.b16 %v4362
  %v4504 = vunpack.c.l.b16 %v4363
  %v4505 = vunpack.c.h.b16 %v4363
  %v4506 = vunpack.c.l.b16 %v4364
  %v4507 = vunpack.c.h.b16 %v4364
  %v4508 = vunpack.c.l.b16 %v4365
  %v4509 = vunpack.c.h.b16 %v4365
  %v4510 = vunpack.c.l.b16 %v4366
  %v4511 = vunpack.c.h.b16 %v4366
  %v4512 = vunpack.c.l.b16 %v4367
  %v4513 = vunpack.c.h.b16 %v4367
  %v4514 = vunpack.c.l.b16 %v4368
  %v4515 = vunpack.c.h.b16 %v4368
  %v4516 = vunpack.c.l.b16 %v4369
  %v4517 = vunpack.c.h.b16 %v4369
  %v4518 = vunpack.c.l.b16 %v4370
  %v4519 = vunpack.c.h.b16 %v4370
  %v4520 = vunpack.c.l.b16 %v4371
  %v4521 = vunpack.c.h.b16 %v4371
  %v4522 = vunpack.c.l.b16 %v4372
  %v4523 = vunpack.c.h.b16 %v4372
  %v4524 = vunpack.c.l.b16 %v4373
  %v4525 = vunpack.c.h.b16 %v4373
  %v4526 = vunpack.c.l.b16 %v4374
  %v4527 = vunpack.c.h.b16 %v4374
  %v4528 = vunpack.c.l.b16 %v4375
  %v4529 = vunpack.c.h.b16 %v4375
  %v4530 = vunpack.c.l.b16 %v4376
  %v4531 = vunpack.c.h.b16 %v4376
  %v4532 = vunpack.c.l.b16 %v4377
  %v4533 = vunpack.c.h.b16 %v4377
  %v4534 = vunpack.c.l.b16 %v4378
  %v4535 = vunpack.c.h.b16 %v4378
  %v4536 = vunpack.c.l.b16 %v4379
  %v4537 = vunpack.c.h.b16 %v4379
  %v4538 = vunpack.c.l.b16 %v4380
  %v4539 = vunpack.c.h.b16 %v4380
  %v4540 = vunpack.c.l.b16 %v4381
  %v4541 = vunpack.c.h.b16 %v4381
  %v4542 = vpack.c.b16 %v4480, %v4478
  %v4543 = vpack.c.b16 %v4481, %v4479
  %v4544 = vpack.c.b16 %v4484, %v4482
  %v4545 = vpack.c.b16 %v4485, %v4483
  %v4546 = vpack.c.b16 %v4488, %v4486
  %v4547 = vpack.c.b16 %v4489, %v4487
  %v4548 = vpack.c.b16 %v4492, %v4490
  %v4549 = vpack.c.b16 %v4493, %v4491
  %v4550 = vpack.c.b16 %v4496, %v4494
  %v4551 = vpack.c.b16 %v4497, %v4495
  %v4552 = vpack.c.b16 %v4500, %v4498
  %v4553 = vpack.c.b16 %v4501, %v4499
  %v4554 = vpack.c.b16 %v4504, %v4502
  %v4555 = vpack.c.b16 %v4505, %v4503
  %v4556 = vpack.c.b16 %v4508, %v4506
  %v4557 = vpack.c.b16 %v4509, %v4507
  %v4558 = vpack.c.b16 %v4512, %v4510
  %v4559 = vpack.c.b16 %v4513, %v4511
  %v4560 = vpack.c.b16 %v4516, %v4514
  %v4561 = vpack.c.b16 %v4517, %v4515
  %v4562 = vpack.c.b16 %v4520, %v4518
  %v4563 = vpack.c.b16 %v4521, %v4519
  %v4564 = vpack.c.b16 %v4524, %v4522
  %v4565 = vpack.c.b16 %v4525, %v4523
  %v4566 = vpack.c.b16 %v4528, %v4526
  %v4567 = vpack.c.b16 %v4529, %v4527
  %v4568 = vpack.c.b16 %v4532, %v4530
  %v4569 = vpack.c.b16 %v4533, %v4531
  %v4570 = vpack.c.b16 %v4536, %v4534
  %v4571 = vpack.c.b16 %v4537, %v4535
  %v4572 = vpack.c.b16 %v4540, %v4538
  %v4573 = vpack.c.b16 %v4541, %v4539
  %4606 = vmatprep.subr.bf16.mxu0 %v4557
  %4607 = vmatpush1.bf16.msra.mxu0 %v4556
  %4608 = vmatprep.subr.bf16.mxu0 %v4555
  %4609 = vmatpush1.bf16.msra.mxu0 %v4554
  %4610 = vmatprep.subr.bf16.mxu0 %v4553
  %4611 = vmatpush1.bf16.msra.mxu0 %v4552
  %4612 = vmatprep.subr.bf16.mxu0 %v4551
  %4613 = vmatpush1.bf16.msra.mxu0 %v4550
  %4614 = vmatprep.subr.bf16.mxu0 %v4549
  %4615 = vmatpush1.bf16.msra.mxu0 %v4548
  %4616 = vmatprep.subr.bf16.mxu0 %v4547
  %4617 = vmatpush1.bf16.msra.mxu0 %v4546
  %4618 = vmatprep.subr.bf16.mxu0 %v4545
  %4619 = vmatpush1.bf16.msra.mxu0 %v4544
  %4620 = vmatprep.subr.bf16.mxu0 %v4543
  %4621 = vmatpush1.bf16.msra.mxu0 %v4542
  %4622 = vmatprep.subr.bf16.mxu0 %v4573
  %4623 = vmatpush2.bf16.msra.mxu0 %v4572
  %4624 = vmatprep.subr.bf16.mxu0 %v4571
  %4625 = vmatpush2.bf16.msra.mxu0 %v4570
  %4626 = vmatprep.subr.bf16.mxu0 %v4569
  %4627 = vmatpush2.bf16.msra.mxu0 %v4568
  %4628 = vmatprep.subr.bf16.mxu0 %v4567
  %4629 = vmatpush2.bf16.msra.mxu0 %v4566
  %4630 = vmatprep.subr.bf16.mxu0 %v4565
  %4631 = vmatpush2.bf16.msra.mxu0 %v4564
  %4632 = vmatprep.subr.bf16.mxu0 %v4563
  %4633 = vmatpush2.bf16.msra.mxu0 %v4562
  %4634 = vmatprep.subr.bf16.mxu0 %v4561
  %4635 = vmatpush2.bf16.msra.mxu0 %v4560
  %4636 = vmatprep.subr.bf16.mxu0 %v4559
  %4637 = vmatpush2.bf16.msra.mxu0 %v4558
  %4638 = vmatprep.mubr.bf16.mxu0 %v4415
  %4639 = vmatmul.mubr.bf16.gmra.mxu0 %v4414
  %v4640 = vpop.f32.mrf.mxu0
  %v4641 = vadd.f32 0.0, %v4640
  %v4642 = vpop.f32.mrf.mxu0
  %v4643 = vadd.f32 0.0, %v4642
  %v4644 = vpop.f32.mrf.mxu0
  %v4645 = vadd.f32 0.0, %v4644
  %v4646 = vpop.f32.mrf.mxu0
  %v4647 = vadd.f32 0.0, %v4646
  %4648 = vmatprep.mubr.bf16.mxu0 %v4417
  %4649 = vmatmul.mubr.bf16.gmra.mxu0 %v4416
  %v4650 = vpop.f32.mrf.mxu0
  %v4651 = vadd.f32 0.0, %v4650
  %v4652 = vpop.f32.mrf.mxu0
  %v4653 = vadd.f32 0.0, %v4652
  %v4654 = vpop.f32.mrf.mxu0
  %v4655 = vadd.f32 0.0, %v4654
  %v4656 = vpop.f32.mrf.mxu0
  %v4657 = vadd.f32 0.0, %v4656
  %4658 = vmatprep.mubr.bf16.mxu0 %v4419
  %4659 = vmatmul.mubr.bf16.gmra.mxu0 %v4418
  %v4660 = vpop.f32.mrf.mxu0
  %v4661 = vadd.f32 0.0, %v4660
  %v4662 = vpop.f32.mrf.mxu0
  %v4663 = vadd.f32 0.0, %v4662
  %v4664 = vpop.f32.mrf.mxu0
  %v4665 = vadd.f32 0.0, %v4664
  %v4666 = vpop.f32.mrf.mxu0
  %v4667 = vadd.f32 0.0, %v4666
  %4668 = vmatprep.mubr.bf16.mxu0 %v4421
  %4669 = vmatmul.mubr.bf16.gmra.mxu0 %v4420
  %v4670 = vpop.f32.mrf.mxu0
  %v4671 = vadd.f32 0.0, %v4670
  %v4672 = vpop.f32.mrf.mxu0
  %v4673 = vadd.f32 0.0, %v4672
  %v4674 = vpop.f32.mrf.mxu0
  %v4675 = vadd.f32 0.0, %v4674
  %v4676 = vpop.f32.mrf.mxu0
  %v4677 = vadd.f32 0.0, %v4676
  %4678 = vmatprep.mubr.bf16.mxu0 %v4423
  %4679 = vmatmul.mubr.bf16.gmra.mxu0 %v4422
  %v4680 = vpop.f32.mrf.mxu0
  %v4681 = vadd.f32 0.0, %v4680
  %v4682 = vpop.f32.mrf.mxu0
  %v4683 = vadd.f32 0.0, %v4682
  %v4684 = vpop.f32.mrf.mxu0
  %v4685 = vadd.f32 0.0, %v4684
  %v4686 = vpop.f32.mrf.mxu0
  %v4687 = vadd.f32 0.0, %v4686
  %4688 = vmatprep.mubr.bf16.mxu0 %v4425
  %4689 = vmatmul.mubr.bf16.gmra.mxu0 %v4424
  %v4690 = vpop.f32.mrf.mxu0
  %v4691 = vadd.f32 0.0, %v4690
  %v4692 = vpop.f32.mrf.mxu0
  %v4693 = vadd.f32 0.0, %v4692
  %v4694 = vpop.f32.mrf.mxu0
  %v4695 = vadd.f32 0.0, %v4694
  %v4696 = vpop.f32.mrf.mxu0
  %v4697 = vadd.f32 0.0, %v4696
  %4698 = vmatprep.mubr.bf16.mxu0 %v4427
  %4699 = vmatmul.mubr.bf16.gmra.mxu0 %v4426
  %v4700 = vpop.f32.mrf.mxu0
  %v4701 = vadd.f32 0.0, %v4700
  %v4702 = vpop.f32.mrf.mxu0
  %v4703 = vadd.f32 0.0, %v4702
  %v4704 = vpop.f32.mrf.mxu0
  %v4705 = vadd.f32 0.0, %v4704
  %v4706 = vpop.f32.mrf.mxu0
  %v4707 = vadd.f32 0.0, %v4706
  %4708 = vmatprep.mubr.bf16.mxu0 %v4429
  %4709 = vmatmul.mubr.bf16.gmra.mxu0 %v4428
  %v4710 = vpop.f32.mrf.mxu0
  %v4711 = vadd.f32 0.0, %v4710
  %v4712 = vpop.f32.mrf.mxu0
  %v4713 = vadd.f32 0.0, %v4712
  %v4714 = vpop.f32.mrf.mxu0
  %v4715 = vadd.f32 0.0, %v4714
  %v4716 = vpop.f32.mrf.mxu0
  %v4717 = vadd.f32 0.0, %v4716
  %4718 = vdwg.mxu0
  %v4719 = vadd.f32 %v4206, %v4641
  %v4720 = vadd.f32 %v4207, %v4643
  %v4721 = vadd.f32 %v4208, %v4645
  %v4722 = vadd.f32 %v4209, %v4647
  %v4723 = vadd.f32 %v4210, %v4651
  %v4724 = vadd.f32 %v4211, %v4653
  %v4725 = vadd.f32 %v4212, %v4655
  %v4726 = vadd.f32 %v4213, %v4657
  %v4727 = vadd.f32 %v4214, %v4661
  %v4728 = vadd.f32 %v4215, %v4663
  %v4729 = vadd.f32 %v4216, %v4665
  %v4730 = vadd.f32 %v4217, %v4667
  %v4731 = vadd.f32 %v4218, %v4671
  %v4732 = vadd.f32 %v4219, %v4673
  %v4733 = vadd.f32 %v4220, %v4675
  %v4734 = vadd.f32 %v4221, %v4677
  %v4735 = vadd.f32 %v4222, %v4681
  %v4736 = vadd.f32 %v4223, %v4683
  %v4737 = vadd.f32 %v4224, %v4685
  %v4738 = vadd.f32 %v4225, %v4687
  %v4739 = vadd.f32 %v4226, %v4691
  %v4740 = vadd.f32 %v4227, %v4693
  %v4741 = vadd.f32 %v4228, %v4695
  %v4742 = vadd.f32 %v4229, %v4697
  %v4743 = vadd.f32 %v4230, %v4701
  %v4744 = vadd.f32 %v4231, %v4703
  %v4745 = vadd.f32 %v4232, %v4705
  %v4746 = vadd.f32 %v4233, %v4707
  %v4747 = vadd.f32 %v4234, %v4711
  %v4748 = vadd.f32 %v4235, %v4713
  %v4749 = vadd.f32 %v4236, %v4715
  %v4750 = vadd.f32 %v4237, %v4717
  %v4751 = vld [vmem:[%s2] sm:$0x3]
  %v4753 = vlaneseq
  %v4754 = vshrl.u32 %v4753, 7
  %v4755 = vsub.s32 0, %v4754
  %v4756 = vrot.slane %v4751, %v4755
  %v4757 = vlaneseq
  %v4758 = vshrl.u32 %v4757, 7
  %v4759 = vsub.s32 1, %v4758
  %v4760 = vrot.slane %v4751, %v4759
  %v4763 = vadd.f32 %v4719, %v4756
  %v4764 = vadd.f32 %v4720, %v4760
  %v4765 = vadd.f32 %v4721, %v4756
  %v4766 = vadd.f32 %v4722, %v4760
  %v4767 = vadd.f32 %v4723, %v4756
  %v4768 = vadd.f32 %v4724, %v4760
  %v4769 = vadd.f32 %v4725, %v4756
  %v4770 = vadd.f32 %v4726, %v4760
  %v4771 = vadd.f32 %v4727, %v4756
  %v4772 = vadd.f32 %v4728, %v4760
  %v4773 = vadd.f32 %v4729, %v4756
  %v4774 = vadd.f32 %v4730, %v4760
  %v4775 = vadd.f32 %v4731, %v4756
  %v4776 = vadd.f32 %v4732, %v4760
  %v4777 = vadd.f32 %v4733, %v4756
  %v4778 = vadd.f32 %v4734, %v4760
  %v4779 = vadd.f32 %v4735, %v4756
  %v4780 = vadd.f32 %v4736, %v4760
  %v4781 = vadd.f32 %v4737, %v4756
  %v4782 = vadd.f32 %v4738, %v4760
  %v4783 = vadd.f32 %v4739, %v4756
  %v4784 = vadd.f32 %v4740, %v4760
  %v4785 = vadd.f32 %v4741, %v4756
  %v4786 = vadd.f32 %v4742, %v4760
  %v4787 = vadd.f32 %v4743, %v4756
  %v4788 = vadd.f32 %v4744, %v4760
  %v4789 = vadd.f32 %v4745, %v4756
  %v4790 = vadd.f32 %v4746, %v4760
  %v4791 = vadd.f32 %v4747, %v4756
  %v4792 = vadd.f32 %v4748, %v4760
  %v4793 = vadd.f32 %v4749, %v4756
  %v4794 = vadd.f32 %v4750, %v4760
  %v4795 = vpack.c.bf16 %v4765, %v4763
  %v4796 = vpack.c.bf16 %v4766, %v4764
  %v4797 = vpack.c.bf16 %v4769, %v4767
  %v4798 = vpack.c.bf16 %v4770, %v4768
  %v4799 = vpack.c.bf16 %v4773, %v4771
  %v4800 = vpack.c.bf16 %v4774, %v4772
  %v4801 = vpack.c.bf16 %v4777, %v4775
  %v4802 = vpack.c.bf16 %v4778, %v4776
  %v4803 = vpack.c.bf16 %v4781, %v4779
  %v4804 = vpack.c.bf16 %v4782, %v4780
  %v4805 = vpack.c.bf16 %v4785, %v4783
  %v4806 = vpack.c.bf16 %v4786, %v4784
  %v4807 = vpack.c.bf16 %v4789, %v4787
  %v4808 = vpack.c.bf16 %v4790, %v4788
  %v4809 = vpack.c.bf16 %v4793, %v4791
  %v4810 = vpack.c.bf16 %v4794, %v4792
  %v4827 = vunpack.c.l.b16 %v4795
  %v4828 = vunpack.c.l.b16 %v4796
  %v4829 = vunpack.c.h.b16 %v4795
  %v4830 = vunpack.c.h.b16 %v4796
  %v4831 = vunpack.c.l.b16 %v4797
  %v4832 = vunpack.c.l.b16 %v4798
  %v4833 = vunpack.c.h.b16 %v4797
  %v4834 = vunpack.c.h.b16 %v4798
  %v4835 = vunpack.c.l.b16 %v4799
  %v4836 = vunpack.c.l.b16 %v4800
  %v4837 = vunpack.c.h.b16 %v4799
  %v4838 = vunpack.c.h.b16 %v4800
  %v4839 = vunpack.c.l.b16 %v4801
  %v4840 = vunpack.c.l.b16 %v4802
  %v4841 = vunpack.c.h.b16 %v4801
  %v4842 = vunpack.c.h.b16 %v4802
  %v4843 = vunpack.c.l.b16 %v4803
  %v4844 = vunpack.c.l.b16 %v4804
  %v4845 = vunpack.c.h.b16 %v4803
  %v4846 = vunpack.c.h.b16 %v4804
  %v4847 = vunpack.c.l.b16 %v4805
  %v4848 = vunpack.c.l.b16 %v4806
  %v4849 = vunpack.c.h.b16 %v4805
  %v4850 = vunpack.c.h.b16 %v4806
  %v4851 = vunpack.c.l.b16 %v4807
  %v4852 = vunpack.c.l.b16 %v4808
  %v4853 = vunpack.c.h.b16 %v4807
  %v4854 = vunpack.c.h.b16 %v4808
  %v4855 = vunpack.c.l.b16 %v4809
  %v4856 = vunpack.c.l.b16 %v4810
  %v4857 = vunpack.c.h.b16 %v4809
  %v4858 = vunpack.c.h.b16 %v4810
  %v4859 = vpack.c.b16 %v4828, %v4827
  %v4860 = vpack.c.b16 %v4830, %v4829
  %v4861 = vpack.c.b16 %v4832, %v4831
  %v4862 = vpack.c.b16 %v4834, %v4833
  %v4863 = vpack.c.b16 %v4836, %v4835
  %v4864 = vpack.c.b16 %v4838, %v4837
  %v4865 = vpack.c.b16 %v4840, %v4839
  %v4866 = vpack.c.b16 %v4842, %v4841
  %v4867 = vpack.c.b16 %v4844, %v4843
  %v4868 = vpack.c.b16 %v4846, %v4845
  %v4869 = vpack.c.b16 %v4848, %v4847
  %v4870 = vpack.c.b16 %v4850, %v4849
  %v4871 = vpack.c.b16 %v4852, %v4851
  %v4872 = vpack.c.b16 %v4854, %v4853
  %v4873 = vpack.c.b16 %v4856, %v4855
  %v4874 = vpack.c.b16 %v4858, %v4857
  %4891 = vst [vmem:[%s3] sm:$0xff] %v4859
  %4892 = vst [vmem:[%s3 + $0x8] sm:$0xff] %v4860
  %4893 = vst [vmem:[%s3 + $0x10] sm:$0xff] %v4861
  %4894 = vst [vmem:[%s3 + $0x18] sm:$0xff] %v4862
  %4895 = vst [vmem:[%s3 + $0x20] sm:$0xff] %v4863
  %4896 = vst [vmem:[%s3 + $0x28] sm:$0xff] %v4864
  %4897 = vst [vmem:[%s3 + $0x30] sm:$0xff] %v4865
  %4898 = vst [vmem:[%s3 + $0x38] sm:$0xff] %v4866
  %4899 = vst [vmem:[%s3 + $0x40] sm:$0xff] %v4867
  %4900 = vst [vmem:[%s3 + $0x48] sm:$0xff] %v4868
  %4901 = vst [vmem:[%s3 + $0x50] sm:$0xff] %v4869
  %4902 = vst [vmem:[%s3 + $0x58] sm:$0xff] %v4870
  %4903 = vst [vmem:[%s3 + $0x60] sm:$0xff] %v4871
  %4904 = vst [vmem:[%s3 + $0x68] sm:$0xff] %v4872
  %4905 = vst [vmem:[%s3 + $0x70] sm:$0xff] %v4873
  %4906 = vst [vmem:[%s3 + $0x78] sm:$0xff] %v4874
  // Predicated region
  $region14: #{upsample2d_forward.1} parent=0 // pred_check
    _
  $region15: #{upsample2d_forward.1} parent=0 // pred_check_branch
    %4908 = sbr.rel (0) target = $region17
  $region16: #{upsample2d_forward.1} parent=0 // pred_region
    _
  $region17: #{upsample2d_forward.1} parent=0 // pred_fallthru
    _
  // Predicated region
  $region18: #{upsample2d_forward.1} parent=0 // pred_check
    _
  $region19: #{upsample2d_forward.1} parent=0 // pred_check_branch
    %4910 = sbr.rel (0) target = $region21
  $region20: #{upsample2d_forward.1} parent=0 // pred_region
    _
  $region21: #{upsample2d_forward.1} parent=0 // pred_fallthru
    _

</llo_original>
